<compile_context>
chip_gen: v6e
topology: v6e:2x2x1
jax: 0.10.0
libtpu: 0.0.40
codegen_flags: <defaults>
</compile_context>

<pallas_src>
import functools

import jax
import jax.numpy as jnp
import numpy as np
from jax.experimental import pallas as pl
from jax.experimental.pallas import tpu as pltpu


# ------------------------------------------------------------------------------- kernel
def _meshae_kernel(x_ref, slab_ref, y_ref, z_ref, scr, *, layout, dims, B):
    f32 = jnp.float32
    K, V0 = dims["K"], dims["V0"]
    V_enc, C_enc = dims["V_enc"], dims["C_enc"]
    V_dec, C0 = dims["V_dec"], dims["C_dec0"]
    L = dims["latent"]
    L2 = 2 * L

    def p(name, r0=0, nrows=None):
        """Carve one parameter (or a row sub-block of it) out of the packed slab."""
        off, (r, c) = layout[name]
        nr = r if nrows is None else nrows
        return slab_ref[off + r0: off + r0 + nr, 0:c]

    def spiral_cat(h, V, C):
        """Synthetic circular spiral: out[v, k*C + c] = h[(v + k) % V, c]."""
        ext = jnp.concatenate([h, h[0:K - 1, :]], axis=0) if K > 1 else h
        return jnp.concatenate([ext[k:k + V, :] for k in range(K)], axis=1)   # (V, K*C)

    x = x_ref[...].astype(f32)                                   # (B, V0, C_in)
    # canonical activation layout: samples stacked along the vertex (sublane) axis
    h = jnp.concatenate([x[b] for b in range(B)], axis=0)        # (B*V0, C_in)

    # ------------- encoder: merged spiral conv -> relu -> pool (even vertices) --------
    for s, (V, Cin, Cout) in enumerate(dims["enc"]):
        sp = jnp.concatenate(
            [spiral_cat(h[b * V:(b + 1) * V, :], V, Cin) for b in range(B)], axis=0)
        y = jnp.dot(sp, p(f"enc{s}_w"), preferred_element_type=f32) + p(f"enc{s}_b")
        y = jnp.maximum(y, 0.0)
        scr[0:B * V, 0:Cout] = y                                 # stage through scratch
        h = scr[pl.ds(0, (B * V) // 2, 2), 0:Cout]               # keep even vertices

    # ---- encoder MLP; the (V_enc, C) flatten is folded into per-vertex weight blocks --
    scr[0:B * V_enc, 0:C_enc] = h
    z = p("emlp0_b")                                             # (1, 2L)
    for v in range(V_enc):
        rows_v = scr[pl.ds(v, B, V_enc), 0:C_enc]                # vertex v of every sample
        z = z + jnp.dot(rows_v, p("emlp0_w", r0=v * C_enc, nrows=C_enc),
                        preferred_element_type=f32)
    z = jnp.maximum(z, 0.0)
    z = jnp.maximum(jnp.dot(z, p("emlp1_w"), preferred_element_type=f32) + p("emlp1_b"), 0.0)
    z = jnp.tanh(jnp.dot(z, p("emlp2_w"), preferred_element_type=f32) + p("emlp2_b"))
    z_ref[...] = z.astype(z_ref.dtype)                           # (B, latent)

    # ---- decoder MLP; unflatten folded into per-vertex column blocks of the last layer -
    d = jnp.maximum(jnp.dot(z, p("dmlp0_w"), preferred_element_type=f32) + p("dmlp0_b"), 0.0)
    d = jnp.maximum(jnp.dot(d, p("dmlp1_w"), preferred_element_type=f32) + p("dmlp1_b"), 0.0)
    for v in range(V_dec):
        hd_v = jnp.maximum(
            jnp.dot(d, p("dmlp2_w", r0=v * L2, nrows=L2), preferred_element_type=f32)
            + p("dmlp2_b", r0=v, nrows=1), 0.0)                  # (B, C0)
        scr[pl.ds(v, B, V_dec), 0:C0] = hd_v                     # stacked row b*V_dec + v
    h = scr[0:B * V_dec, 0:C0]                                   # (B*V_dec, C0)

    # ------------- decoder: unpool (repeat vertices) -> merged spiral conv -------------
    n_dec = len(dims["dec"])
    for s, (Vin, Cin, Cout) in enumerate(dims["dec"]):
        Vup = 2 * Vin
        for b in range(B):                                       # unpool via strided stores
            hb = h[b * Vin:(b + 1) * Vin, :]
            scr[pl.ds(b * Vup, Vin, 2), 0:Cin] = hb              # even rows
            scr[pl.ds(b * Vup + 1, Vin, 2), 0:Cin] = hb          # odd rows
        up = scr[0:B * Vup, 0:Cin]
        sp = jnp.concatenate(
            [spiral_cat(up[b * Vup:(b + 1) * Vup, :], Vup, Cin) for b in range(B)], axis=0)
        h = jnp.dot(sp, p(f"dec{s}_w"), preferred_element_type=f32) + p(f"dec{s}_b")
        if s != n_dec - 1:
            h = jnp.maximum(h, 0.0)                              # output_activation = identity

    for b in range(B):
        y_ref[b] = h[b * V0:(b + 1) * V0, :].astype(y_ref.dtype)


# ------------------------------------------------------------------------ host helpers
def init_logical_params(cfg, key):
    """Logical (unpacked) parameters + static dims; also used by the pure-JAX reference."""
    K, V0 = cfg["spiral_k"], cfg["n_verts"]
    hid = tuple(cfg["hidden_channels"])
    hid_rev = tuple(reversed(hid))
    L, in_c, out_c = cfg["latent_channels"], cfg["in_channels"], cfg["out_channels"]

    keys = iter(jax.random.split(key, 32))

    def lin(fan_in, fan_out):
        kw, kb = jax.random.split(next(keys))
        s = float(1.0 / np.sqrt(fan_in))
        w = np.asarray(jax.random.uniform(kw, (fan_in, fan_out), jnp.float32, -s, s))
        b = np.asarray(jax.random.uniform(kb, (1, fan_out), jnp.float32, -s, s))
        return w, b

    P = {"enc_conv": [], "enc_mlp": [], "dec_mlp": [], "dec_conv": []}

    v, c = V0, in_c
    enc_stages = []
    for c_out in hid:                       # conv at v verts, then pool v -> v//2
        P["enc_conv"].append(lin(K * c, c_out))
        enc_stages.append((v, c, c_out))
        c, v = c_out, v // 2
    V_enc, C_enc = v, c

    mlp_e = [V_enc * C_enc, 2 * L, 2 * L, L]
    for i in range(3):
        P["enc_mlp"].append(lin(mlp_e[i], mlp_e[i + 1]))

    V_dec, C_dec0 = V_enc, hid_rev[0]
    mlp_d = [L, 2 * L, 2 * L, V_dec * C_dec0]
    for i in range(3):
        P["dec_mlp"].append(lin(mlp_d[i], mlp_d[i + 1]))

    dec_out = tuple(hid_rev[1:]) + (out_c,)
    v, c = V_dec, C_dec0
    dec_stages = []
    for c_out in dec_out:                   # unpool v -> 2v, then conv at 2v verts
        P["dec_conv"].append(lin(K * c, c_out))
        dec_stages.append((v, c, c_out))
        c, v = c_out, 2 * v
    assert v == V0

    dims = dict(K=K, V0=V0, out_c=out_c, latent=L, enc=enc_stages, dec=dec_stages,
                V_enc=V_enc, C_enc=C_enc, V_dec=V_dec, C_dec0=C_dec0)
    return P, dims


def pack_params(P, dims):
    """Pack every parameter into one f32 slab (rows padded to 8) + a static layout table."""
    L2 = 2 * dims["latent"]
    V_dec, C0 = dims["V_dec"], dims["C_dec0"]

    named = []
    for s, (w, b) in enumerate(P["enc_conv"]):
        named += [(f"enc{s}_w", w), (f"enc{s}_b", b)]
    for i, (w, b) in enumerate(P["enc_mlp"]):
        named += [(f"emlp{i}_w", w), (f"emlp{i}_b", b)]
    for i, (w, b) in enumerate(P["dec_mlp"][:2]):
        named += [(f"dmlp{i}_w", w), (f"dmlp{i}_b", b)]
    w3, b3 = P["dec_mlp"][2]                                   # (2L, V_dec*C0), (1, V_dec*C0)
    w3s = np.concatenate([w3[:, v * C0:(v + 1) * C0] for v in range(V_dec)], axis=0)
    named += [("dmlp2_w", w3s), ("dmlp2_b", b3.reshape(V_dec, C0))]
    for s, (w, b) in enumerate(P["dec_conv"]):
        named += [(f"dec{s}_w", w), (f"dec{s}_b", b)]

    width = max(a.shape[1] for _, a in named)
    layout, off = {}, 0
    for name, a in named:
        layout[name] = (off, a.shape)
        off += -(-a.shape[0] // 8) * 8                         # pad rows to sublane tiles
    slab = np.zeros((off, width), np.float32)
    for name, a in named:
        o, (r, c) = layout[name]
        slab[o:o + r, :c] = a
    return jnp.asarray(slab), layout


def reference_forward(x, P, dims):
    """Pure-JAX reference (same synthetic template) used to validate the kernel."""
    K = dims["K"]

    def spiral(h):
        B, V, C = h.shape
        idx = (np.arange(V)[:, None] + np.arange(K)[None, :]) % V
        return h[:, idx, :].reshape(B, V, K * C)

    h = x
    for (w, b) in P["enc_conv"]:
        h = jax.nn.relu(spiral(h) @ w + b)
        h = h[:, ::2, :]
    z = h.reshape(h.shape[0], -1)
    for i, (w, b) in enumerate(P["enc_mlp"]):
        z = z @ w + b
        z = jnp.tanh(z) if i == 2 else jax.nn.relu(z)
    d = z
    for (w, b) in P["dec_mlp"]:
        d = jax.nn.relu(d @ w + b)
    h = d.reshape(d.shape[0], dims["V_dec"], dims["C_dec0"])
    n = len(P["dec_conv"])
    for i, (w, b) in enumerate(P["dec_conv"]):
        h = jnp.repeat(h, 2, axis=1)
        h = spiral(h) @ w + b
        if i != n - 1:
            h = jax.nn.relu(h)
    return h, z


def _flops(dims, B):
    K, L = dims["K"], dims["latent"]
    f = 0
    for (V, Cin, Cout) in dims["enc"]:
        f += 2 * B * V * (K * Cin) * Cout
    f += 2 * B * dims["V_enc"] * dims["C_enc"] * 2 * L
    f += 2 * B * (2 * L) * (2 * L) + 2 * B * (2 * L) * L
    f += 2 * B * L * (2 * L) + 2 * B * (2 * L) * (2 * L)
    f += 2 * B * (2 * L) * dims["V_dec"] * dims["C_dec0"]
    for (V, Cin, Cout) in dims["dec"]:
        f += 2 * B * (2 * V) * (K * Cin) * Cout
    return int(f)


# --------------------------------------------------------------------------- forward
def mesh_conv_ae_forward(x, slab, layout, dims):
    assert x.ndim == 3
    B, V0, Cin = x.shape
    out_c, L = dims["out_c"], dims["latent"]

    kernel = functools.partial(_meshae_kernel, layout=layout, dims=dims, B=B)
    bytes_accessed = 4 * (x.size + slab.size + B * V0 * out_c + B * L)

    y, z = pl.pallas_call(
        kernel,
        grid=(1,),                                    # whole batch in one grid step
        in_specs=[pl.BlockSpec((B, V0, Cin), lambda i: (0, 0, 0)),
                  pl.BlockSpec(slab.shape, lambda i: (0, 0))],
        out_specs=(pl.BlockSpec((B, V0, out_c), lambda i: (0, 0, 0)),
                   pl.BlockSpec((B, L), lambda i: (0, 0))),
        out_shape=(jax.ShapeDtypeStruct((B, V0, out_c), x.dtype),
                   jax.ShapeDtypeStruct((B, L), x.dtype)),
        scratch_shapes=[pltpu.VMEM((B * V0, max(dims["C_enc"], dims["C_dec0"])),
                                   jnp.float32)],
        compiler_params=pltpu.CompilerParams(
            dimension_semantics=("arbitrary",),
            vmem_limit_bytes=16 * 1024 * 1024,        # safe on v5e/v6e/v7x
        ),
        cost_estimate=pl.CostEstimate(flops=_flops(dims, B),
                                      transcendentals=B * L,
                                      bytes_accessed=int(bytes_accessed)),
    )(x, slab)
    return y, z


# ------------------------------------------------------------------------------ main
if __name__ == "__main__":
    cfg = dict(
        in_channels=3,
        out_channels=3,
        hidden_channels=(16, 32),
        latent_channels=8,
        spiral_k=4,
        n_verts=32,
    )
    key = jax.random.PRNGKey(0)
    k_param, k_x = jax.random.split(key)

    P, dims = init_logical_params(cfg, k_param)
    slab, layout = pack_params(P, dims)

    B = 2
    x = jax.random.normal(k_x, (B, cfg["n_verts"], cfg["in_channels"]), jnp.float32)

    y, z = mesh_conv_ae_forward(x, slab, layout, dims)
    jax.block_until_ready((y, z))

    # pure-JAX reference check (validates spiral / pool / unpool / flatten-fold semantics)
    with jax.default_matmul_precision("highest"):
        y_ref, z_ref = reference_forward(x, P, dims)

    assert y.shape == (B, cfg["n_verts"], cfg["out_channels"]), y.shape
    assert z.shape == (B, cfg["latent_channels"]), z.shape
    assert bool(jnp.isfinite(y).all()) and bool(jnp.isfinite(z).all())
    assert bool(jnp.allclose(y, y_ref, atol=2e-2, rtol=2e-2)), float(jnp.abs(y - y_ref).max())
    assert bool(jnp.allclose(z, z_ref, atol=2e-2, rtol=2e-2)), float(jnp.abs(z - z_ref).max())
    print("KERNEL_OK")
</pallas_src>

<mosaic_0001>
module attributes {stable_mosaic.version = 11 : i64} {
  func.func @_meshae_kernel(%arg0: i32, %arg1: memref<2x32x3xf32, #tpu.memory_space<vmem>>, %arg2: memref<792x32xf32, #tpu.memory_space<vmem>>, %arg3: memref<2x32x3xf32, #tpu.memory_space<vmem>>, %arg4: memref<2x8xf32, #tpu.memory_space<vmem>>, %arg5: memref<64x32xf32, #tpu.memory_space<vmem>>) attributes {dimension_semantics = [#tpu.dimension_semantics<arbitrary>], iteration_bounds = array<i64: 1>, scalar_prefetch = 0 : i64, scratch_operands = 1 : i64, tpu.core_type = #tpu.core_type<tc>, window_params = [{pipeline_mode = #tpu.pipeline_mode<synchronous>, transform_indices = @transform_0, window_bounds = array<i64: 2, 32, 3>}, {pipeline_mode = #tpu.pipeline_mode<synchronous>, transform_indices = @transform_1, window_bounds = array<i64: 792, 32>}, {pipeline_mode = #tpu.pipeline_mode<synchronous>, transform_indices = @transform_2, window_bounds = array<i64: 2, 32, 3>}, {pipeline_mode = #tpu.pipeline_mode<synchronous>, transform_indices = @transform_3, window_bounds = array<i64: 2, 8>}]} {
    %c0 = arith.constant 0 : index
    %c0_0 = arith.constant 0 : index
    %c0_1 = arith.constant 0 : index
    %0 = vector.load %arg1[%c0, %c0_0, %c0_1] : memref<2x32x3xf32, #tpu.memory_space<vmem>>, vector<2x32x3xf32>
    %1 = vector.extract_strided_slice %0 {offsets = [0, 0, 0], sizes = [1, 32, 3], strides = [1, 1, 1]} : vector<2x32x3xf32> to vector<1x32x3xf32>
    %2 = vector.shape_cast %1 : vector<1x32x3xf32> to vector<32x3xf32>
    %3 = vector.extract_strided_slice %0 {offsets = [1, 0, 0], sizes = [1, 32, 3], strides = [1, 1, 1]} : vector<2x32x3xf32> to vector<1x32x3xf32>
    %4 = vector.shape_cast %3 : vector<1x32x3xf32> to vector<32x3xf32>
    %5 = tpu.concatenate %2, %4 in 0 : vector<32x3xf32>, vector<32x3xf32> -> vector<64x3xf32>
    %6 = vector.extract_strided_slice %5 {offsets = [0, 0], sizes = [32, 3], strides = [1, 1]} : vector<64x3xf32> to vector<32x3xf32>
    %7 = vector.extract_strided_slice %6 {offsets = [0, 0], sizes = [3, 3], strides = [1, 1]} : vector<32x3xf32> to vector<3x3xf32>
    %8 = tpu.concatenate %6, %7 in 0 : vector<32x3xf32>, vector<3x3xf32> -> vector<35x3xf32>
    %9 = vector.extract_strided_slice %8 {offsets = [0, 0], sizes = [32, 3], strides = [1, 1]} : vector<35x3xf32> to vector<32x3xf32>
    %10 = vector.extract_strided_slice %8 {offsets = [1, 0], sizes = [32, 3], strides = [1, 1]} : vector<35x3xf32> to vector<32x3xf32>
    %11 = vector.extract_strided_slice %8 {offsets = [2, 0], sizes = [32, 3], strides = [1, 1]} : vector<35x3xf32> to vector<32x3xf32>
    %12 = vector.extract_strided_slice %8 {offsets = [3, 0], sizes = [32, 3], strides = [1, 1]} : vector<35x3xf32> to vector<32x3xf32>
    %13 = tpu.concatenate %9, %10, %11, %12 in 1 : vector<32x3xf32>, vector<32x3xf32>, vector<32x3xf32>, vector<32x3xf32> -> vector<32x12xf32>
    %14 = vector.extract_strided_slice %5 {offsets = [32, 0], sizes = [32, 3], strides = [1, 1]} : vector<64x3xf32> to vector<32x3xf32>
    %15 = vector.extract_strided_slice %14 {offsets = [0, 0], sizes = [3, 3], strides = [1, 1]} : vector<32x3xf32> to vector<3x3xf32>
    %16 = tpu.concatenate %14, %15 in 0 : vector<32x3xf32>, vector<3x3xf32> -> vector<35x3xf32>
    %17 = vector.extract_strided_slice %16 {offsets = [0, 0], sizes = [32, 3], strides = [1, 1]} : vector<35x3xf32> to vector<32x3xf32>
    %18 = vector.extract_strided_slice %16 {offsets = [1, 0], sizes = [32, 3], strides = [1, 1]} : vector<35x3xf32> to vector<32x3xf32>
    %19 = vector.extract_strided_slice %16 {offsets = [2, 0], sizes = [32, 3], strides = [1, 1]} : vector<35x3xf32> to vector<32x3xf32>
    %20 = vector.extract_strided_slice %16 {offsets = [3, 0], sizes = [32, 3], strides = [1, 1]} : vector<35x3xf32> to vector<32x3xf32>
    %21 = tpu.concatenate %17, %18, %19, %20 in 1 : vector<32x3xf32>, vector<32x3xf32>, vector<32x3xf32>, vector<32x3xf32> -> vector<32x12xf32>
    %22 = tpu.concatenate %13, %21 in 0 : vector<32x12xf32>, vector<32x12xf32> -> vector<64x12xf32>
    %c0_2 = arith.constant 0 : index
    %c0_3 = arith.constant 0 : index
    %23 = vector.load %arg2[%c0_2, %c0_3] : memref<792x32xf32, #tpu.memory_space<vmem>>, vector<12x16xf32>
    %cst = arith.constant dense<0.000000e+00> : vector<64x16xf32>
    %24 = tpu.matmul %22, %23, %cst {dimension_numbers = #tpu.dot_dimension_numbers<[1], [0], [0], [1], [0, 0, 1, 1], [], []>} : vector<64x12xf32>, vector<12x16xf32>, vector<64x16xf32> -> vector<64x16xf32>
    %c16 = arith.constant 16 : index
    %c0_4 = arith.constant 0 : index
    %25 = vector.load %arg2[%c16, %c0_4] : memref<792x32xf32, #tpu.memory_space<vmem>>, vector<1x16xf32>
    %26 = vector.broadcast %25 : vector<1x16xf32> to vector<64x16xf32>
    %27 = arith.addf %24, %26 : vector<64x16xf32>
    %cst_5 = arith.constant 0.000000e+00 : f32
    %28 = vector.broadcast %cst_5 : f32 to vector<64x16xf32>
    %29 = arith.maximumf %27, %28 : vector<64x16xf32>
    %c0_6 = arith.constant 0 : index
    %c0_7 = arith.constant 0 : index
    %30 = vector.load %arg5[%c0_6, %c0_7] : memref<64x32xf32, #tpu.memory_space<vmem>>, vector<64x16xf32>
    tpu.vector_store %arg5[%c0_6, %c0_7], %29 {strides = array<i32>} : memref<64x32xf32, #tpu.memory_space<vmem>>, vector<64x16xf32>,
    %c0_8 = arith.constant 0 : index
    %c0_9 = arith.constant 0 : index
    %31 = tpu.strided_load %arg5[%c0_8, %c0_9] {strides = array<i32: 2, 1>} : memref<64x32xf32, #tpu.memory_space<vmem>>, vector<32x16xf32>
    %32 = vector.extract_strided_slice %31 {offsets = [0, 0], sizes = [16, 16], strides = [1, 1]} : vector<32x16xf32> to vector<16x16xf32>
    %33 = vector.extract_strided_slice %32 {offsets = [0, 0], sizes = [3, 16], strides = [1, 1]} : vector<16x16xf32> to vector<3x16xf32>
    %34 = tpu.concatenate %32, %33 in 0 : vector<16x16xf32>, vector<3x16xf32> -> vector<19x16xf32>
    %35 = vector.extract_strided_slice %34 {offsets = [0, 0], sizes = [16, 16], strides = [1, 1]} : vector<19x16xf32> to vector<16x16xf32>
    %36 = vector.extract_strided_slice %34 {offsets = [1, 0], sizes = [16, 16], strides = [1, 1]} : vector<19x16xf32> to vector<16x16xf32>
    %37 = vector.extract_strided_slice %34 {offsets = [2, 0], sizes = [16, 16], strides = [1, 1]} : vector<19x16xf32> to vector<16x16xf32>
    %38 = vector.extract_strided_slice %34 {offsets = [3, 0], sizes = [16, 16], strides = [1, 1]} : vector<19x16xf32> to vector<16x16xf32>
    %39 = tpu.concatenate %35, %36, %37, %38 in 1 : vector<16x16xf32>, vector<16x16xf32>, vector<16x16xf32>, vector<16x16xf32> -> vector<16x64xf32>
    %40 = vector.extract_strided_slice %31 {offsets = [16, 0], sizes = [16, 16], strides = [1, 1]} : vector<32x16xf32> to vector<16x16xf32>
    %41 = vector.extract_strided_slice %40 {offsets = [0, 0], sizes = [3, 16], strides = [1, 1]} : vector<16x16xf32> to vector<3x16xf32>
    %42 = tpu.concatenate %40, %41 in 0 : vector<16x16xf32>, vector<3x16xf32> -> vector<19x16xf32>
    %43 = vector.extract_strided_slice %42 {offsets = [0, 0], sizes = [16, 16], strides = [1, 1]} : vector<19x16xf32> to vector<16x16xf32>
    %44 = vector.extract_strided_slice %42 {offsets = [1, 0], sizes = [16, 16], strides = [1, 1]} : vector<19x16xf32> to vector<16x16xf32>
    %45 = vector.extract_strided_slice %42 {offsets = [2, 0], sizes = [16, 16], strides = [1, 1]} : vector<19x16xf32> to vector<16x16xf32>
    %46 = vector.extract_strided_slice %42 {offsets = [3, 0], sizes = [16, 16], strides = [1, 1]} : vector<19x16xf32> to vector<16x16xf32>
    %47 = tpu.concatenate %43, %44, %45, %46 in 1 : vector<16x16xf32>, vector<16x16xf32>, vector<16x16xf32>, vector<16x16xf32> -> vector<16x64xf32>
    %48 = tpu.concatenate %39, %47 in 0 : vector<16x64xf32>, vector<16x64xf32> -> vector<32x64xf32>
    %c24 = arith.constant 24 : index
    %c0_10 = arith.constant 0 : index
    %49 = vector.load %arg2[%c24, %c0_10] : memref<792x32xf32, #tpu.memory_space<vmem>>, vector<64x32xf32>
    %cst_11 = arith.constant dense<0.000000e+00> : vector<32x32xf32>
    %50 = tpu.matmul %48, %49, %cst_11 {dimension_numbers = #tpu.dot_dimension_numbers<[1], [0], [0], [1], [0, 0, 1, 1], [], []>} : vector<32x64xf32>, vector<64x32xf32>, vector<32x32xf32> -> vector<32x32xf32>
    %c88 = arith.constant 88 : index
    %c0_12 = arith.constant 0 : index
    %51 = vector.load %arg2[%c88, %c0_12] : memref<792x32xf32, #tpu.memory_space<vmem>>, vector<1x32xf32>
    %52 = vector.broadcast %51 : vector<1x32xf32> to vector<32x32xf32>
    %53 = arith.addf %50, %52 : vector<32x32xf32>
    %cst_13 = arith.constant 0.000000e+00 : f32
    %54 = vector.broadcast %cst_13 : f32 to vector<32x32xf32>
    %55 = arith.maximumf %53, %54 : vector<32x32xf32>
    %c0_14 = arith.constant 0 : index
    %c0_15 = arith.constant 0 : index
    %56 = vector.load %arg5[%c0_14, %c0_15] : memref<64x32xf32, #tpu.memory_space<vmem>>, vector<32x32xf32>
    tpu.vector_store %arg5[%c0_14, %c0_15], %55 {strides = array<i32>} : memref<64x32xf32, #tpu.memory_space<vmem>>, vector<32x32xf32>,
    %c0_16 = arith.constant 0 : index
    %c0_17 = arith.constant 0 : index
    %57 = tpu.strided_load %arg5[%c0_16, %c0_17] {strides = array<i32: 2, 1>} : memref<64x32xf32, #tpu.memory_space<vmem>>, vector<16x32xf32>
    %c0_18 = arith.constant 0 : index
    %c0_19 = arith.constant 0 : index
    %58 = vector.load %arg5[%c0_18, %c0_19] : memref<64x32xf32, #tpu.memory_space<vmem>>, vector<16x32xf32>
    tpu.vector_store %arg5[%c0_18, %c0_19], %57 {strides = array<i32>} : memref<64x32xf32, #tpu.memory_space<vmem>>, vector<16x32xf32>,
    %c352 = arith.constant 352 : index
    %c0_20 = arith.constant 0 : index
    %59 = vector.load %arg2[%c352, %c0_20] : memref<792x32xf32, #tpu.memory_space<vmem>>, vector<1x16xf32>
    %c0_21 = arith.constant 0 : index
    %c0_22 = arith.constant 0 : index
    %60 = tpu.strided_load %arg5[%c0_21, %c0_22] {strides = array<i32: 8, 1>} : memref<64x32xf32, #tpu.memory_space<vmem>>, vector<2x32xf32>
    %c96 = arith.constant 96 : index
    %c0_23 = arith.constant 0 : index
    %61 = vector.load %arg2[%c96, %c0_23] : memref<792x32xf32, #tpu.memory_space<vmem>>, vector<32x16xf32>
    %cst_24 = arith.constant dense<0.000000e+00> : vector<2x16xf32>
    %62 = tpu.matmul %60, %61, %cst_24 {dimension_numbers = #tpu.dot_dimension_numbers<[1], [0], [0], [1], [0, 0, 1, 1], [], []>} : vector<2x32xf32>, vector<32x16xf32>, vector<2x16xf32> -> vector<2x16xf32>
    %63 = vector.broadcast %59 : vector<1x16xf32> to vector<2x16xf32>
    %64 = arith.addf %63, %62 : vector<2x16xf32>
    %c1 = arith.constant 1 : index
    %c0_25 = arith.constant 0 : index
    %65 = tpu.strided_load %arg5[%c1, %c0_25] {strides = array<i32: 8, 1>} : memref<64x32xf32, #tpu.memory_space<vmem>>, vector<2x32xf32>
    %c128 = arith.constant 128 : index
    %c0_26 = arith.constant 0 : index
    %66 = vector.load %arg2[%c128, %c0_26] : memref<792x32xf32, #tpu.memory_space<vmem>>, vector<32x16xf32>
    %cst_27 = arith.constant dense<0.000000e+00> : vector<2x16xf32>
    %67 = tpu.matmul %65, %66, %cst_27 {dimension_numbers = #tpu.dot_dimension_numbers<[1], [0], [0], [1], [0, 0, 1, 1], [], []>} : vector<2x32xf32>, vector<32x16xf32>, vector<2x16xf32> -> vector<2x16xf32>
    %68 = arith.addf %64, %67 : vector<2x16xf32>
    %c2 = arith.constant 2 : index
    %c0_28 = arith.constant 0 : index
    %69 = tpu.strided_load %arg5[%c2, %c0_28] {strides = array<i32: 8, 1>} : memref<64x32xf32, #tpu.memory_space<vmem>>, vector<2x32xf32>
    %c160 = arith.constant 160 : index
    %c0_29 = arith.constant 0 : index
    %70 = vector.load %arg2[%c160, %c0_29] : memref<792x32xf32, #tpu.memory_space<vmem>>, vector<32x16xf32>
    %cst_30 = arith.constant dense<0.000000e+00> : vector<2x16xf32>
    %71 = tpu.matmul %69, %70, %cst_30 {dimension_numbers = #tpu.dot_dimension_numbers<[1], [0], [0], [1], [0, 0, 1, 1], [], []>} : vector<2x32xf32>, vector<32x16xf32>, vector<2x16xf32> -> vector<2x16xf32>
    %72 = arith.addf %68, %71 : vector<2x16xf32>
    %c3 = arith.constant 3 : index
    %c0_31 = arith.constant 0 : index
    %73 = tpu.strided_load %arg5[%c3, %c0_31] {strides = array<i32: 8, 1>} : memref<64x32xf32, #tpu.memory_space<vmem>>, vector<2x32xf32>
    %c192 = arith.constant 192 : index
    %c0_32 = arith.constant 0 : index
    %74 = vector.load %arg2[%c192, %c0_32] : memref<792x32xf32, #tpu.memory_space<vmem>>, vector<32x16xf32>
    %cst_33 = arith.constant dense<0.000000e+00> : vector<2x16xf32>
    %75 = tpu.matmul %73, %74, %cst_33 {dimension_numbers = #tpu.dot_dimension_numbers<[1], [0], [0], [1], [0, 0, 1, 1], [], []>} : vector<2x32xf32>, vector<32x16xf32>, vector<2x16xf32> -> vector<2x16xf32>
    %76 = arith.addf %72, %75 : vector<2x16xf32>
    %c4 = arith.constant 4 : index
    %c0_34 = arith.constant 0 : index
    %77 = tpu.strided_load %arg5[%c4, %c0_34] {strides = array<i32: 8, 1>} : memref<64x32xf32, #tpu.memory_space<vmem>>, vector<2x32xf32>
    %c224 = arith.constant 224 : index
    %c0_35 = arith.constant 0 : index
    %78 = vector.load %arg2[%c224, %c0_35] : memref<792x32xf32, #tpu.memory_space<vmem>>, vector<32x16xf32>
    %cst_36 = arith.constant dense<0.000000e+00> : vector<2x16xf32>
    %79 = tpu.matmul %77, %78, %cst_36 {dimension_numbers = #tpu.dot_dimension_numbers<[1], [0], [0], [1], [0, 0, 1, 1], [], []>} : vector<2x32xf32>, vector<32x16xf32>, vector<2x16xf32> -> vector<2x16xf32>
    %80 = arith.addf %76, %79 : vector<2x16xf32>
    %c5 = arith.constant 5 : index
    %c0_37 = arith.constant 0 : index
    %81 = tpu.strided_load %arg5[%c5, %c0_37] {strides = array<i32: 8, 1>} : memref<64x32xf32, #tpu.memory_space<vmem>>, vector<2x32xf32>
    %c256 = arith.constant 256 : index
    %c0_38 = arith.constant 0 : index
    %82 = vector.load %arg2[%c256, %c0_38] : memref<792x32xf32, #tpu.memory_space<vmem>>, vector<32x16xf32>
    %cst_39 = arith.constant dense<0.000000e+00> : vector<2x16xf32>
    %83 = tpu.matmul %81, %82, %cst_39 {dimension_numbers = #tpu.dot_dimension_numbers<[1], [0], [0], [1], [0, 0, 1, 1], [], []>} : vector<2x32xf32>, vector<32x16xf32>, vector<2x16xf32> -> vector<2x16xf32>
    %84 = arith.addf %80, %83 : vector<2x16xf32>
    %c6 = arith.constant 6 : index
    %c0_40 = arith.constant 0 : index
    %85 = tpu.strided_load %arg5[%c6, %c0_40] {strides = array<i32: 8, 1>} : memref<64x32xf32, #tpu.memory_space<vmem>>, vector<2x32xf32>
    %c288 = arith.constant 288 : index
    %c0_41 = arith.constant 0 : index
    %86 = vector.load %arg2[%c288, %c0_41] : memref<792x32xf32, #tpu.memory_space<vmem>>, vector<32x16xf32>
    %cst_42 = arith.constant dense<0.000000e+00> : vector<2x16xf32>
    %87 = tpu.matmul %85, %86, %cst_42 {dimension_numbers = #tpu.dot_dimension_numbers<[1], [0], [0], [1], [0, 0, 1, 1], [], []>} : vector<2x32xf32>, vector<32x16xf32>, vector<2x16xf32> -> vector<2x16xf32>
    %88 = arith.addf %84, %87 : vector<2x16xf32>
    %c7 = arith.constant 7 : index
    %c0_43 = arith.constant 0 : index
    %89 = tpu.strided_load %arg5[%c7, %c0_43] {strides = array<i32: 8, 1>} : memref<64x32xf32, #tpu.memory_space<vmem>>, vector<2x32xf32>
    %c320 = arith.constant 320 : index
    %c0_44 = arith.constant 0 : index
    %90 = vector.load %arg2[%c320, %c0_44] : memref<792x32xf32, #tpu.memory_space<vmem>>, vector<32x16xf32>
    %cst_45 = arith.constant dense<0.000000e+00> : vector<2x16xf32>
    %91 = tpu.matmul %89, %90, %cst_45 {dimension_numbers = #tpu.dot_dimension_numbers<[1], [0], [0], [1], [0, 0, 1, 1], [], []>} : vector<2x32xf32>, vector<32x16xf32>, vector<2x16xf32> -> vector<2x16xf32>
    %92 = arith.addf %88, %91 : vector<2x16xf32>
    %cst_46 = arith.constant 0.000000e+00 : f32
    %93 = vector.broadcast %cst_46 : f32 to vector<2x16xf32>
    %94 = arith.maximumf %92, %93 : vector<2x16xf32>
    %c360 = arith.constant 360 : index
    %c0_47 = arith.constant 0 : index
    %95 = vector.load %arg2[%c360, %c0_47] : memref<792x32xf32, #tpu.memory_space<vmem>>, vector<16x16xf32>
    %cst_48 = arith.constant dense<0.000000e+00> : vector<2x16xf32>
    %96 = tpu.matmul %94, %95, %cst_48 {dimension_numbers = #tpu.dot_dimension_numbers<[1], [0], [0], [1], [0, 0, 1, 1], [], []>} : vector<2x16xf32>, vector<16x16xf32>, vector<2x16xf32> -> vector<2x16xf32>
    %c376 = arith.constant 376 : index
    %c0_49 = arith.constant 0 : index
    %97 = vector.load %arg2[%c376, %c0_49] : memref<792x32xf32, #tpu.memory_space<vmem>>, vector<1x16xf32>
    %98 = vector.broadcast %97 : vector<1x16xf32> to vector<2x16xf32>
    %99 = arith.addf %96, %98 : vector<2x16xf32>
    %cst_50 = arith.constant 0.000000e+00 : f32
    %100 = vector.broadcast %cst_50 : f32 to vector<2x16xf32>
    %101 = arith.maximumf %99, %100 : vector<2x16xf32>
    %c384 = arith.constant 384 : index
    %c0_51 = arith.constant 0 : index
    %102 = vector.load %arg2[%c384, %c0_51] : memref<792x32xf32, #tpu.memory_space<vmem>>, vector<16x8xf32>
    %cst_52 = arith.constant dense<0.000000e+00> : vector<2x8xf32>
    %103 = tpu.matmul %101, %102, %cst_52 {dimension_numbers = #tpu.dot_dimension_numbers<[1], [0], [0], [1], [0, 0, 1, 1], [], []>} : vector<2x16xf32>, vector<16x8xf32>, vector<2x8xf32> -> vector<2x8xf32>
    %c400 = arith.constant 400 : index
    %c0_53 = arith.constant 0 : index
    %104 = vector.load %arg2[%c400, %c0_53] : memref<792x32xf32, #tpu.memory_space<vmem>>, vector<1x8xf32>
    %105 = vector.broadcast %104 : vector<1x8xf32> to vector<2x8xf32>
    %106 = arith.addf %103, %105 : vector<2x8xf32>
    %107 = math.tanh %106 : vector<2x8xf32>
    %c0_54 = arith.constant 0 : index
    %c0_55 = arith.constant 0 : index
    %108 = vector.load %arg4[%c0_54, %c0_55] : memref<2x8xf32, #tpu.memory_space<vmem>>, vector<2x8xf32>
    tpu.vector_store %arg4[%c0_54, %c0_55], %107 {strides = array<i32>} : memref<2x8xf32, #tpu.memory_space<vmem>>, vector<2x8xf32>,
    %c408 = arith.constant 408 : index
    %c0_56 = arith.constant 0 : index
    %109 = vector.load %arg2[%c408, %c0_56] : memref<792x32xf32, #tpu.memory_space<vmem>>, vector<8x16xf32>
    %cst_57 = arith.constant dense<0.000000e+00> : vector<2x16xf32>
    %110 = tpu.matmul %107, %109, %cst_57 {dimension_numbers = #tpu.dot_dimension_numbers<[1], [0], [0], [1], [0, 0, 1, 1], [], []>} : vector<2x8xf32>, vector<8x16xf32>, vector<2x16xf32> -> vector<2x16xf32>
    %c416 = arith.constant 416 : index
    %c0_58 = arith.constant 0 : index
    %111 = vector.load %arg2[%c416, %c0_58] : memref<792x32xf32, #tpu.memory_space<vmem>>, vector<1x16xf32>
    %112 = vector.broadcast %111 : vector<1x16xf32> to vector<2x16xf32>
    %113 = arith.addf %110, %112 : vector<2x16xf32>
    %cst_59 = arith.constant 0.000000e+00 : f32
    %114 = vector.broadcast %cst_59 : f32 to vector<2x16xf32>
    %115 = arith.maximumf %113, %114 : vector<2x16xf32>
    %c424 = arith.constant 424 : index
    %c0_60 = arith.constant 0 : index
    %116 = vector.load %arg2[%c424, %c0_60] : memref<792x32xf32, #tpu.memory_space<vmem>>, vector<16x16xf32>
    %cst_61 = arith.constant dense<0.000000e+00> : vector<2x16xf32>
    %117 = tpu.matmul %115, %116, %cst_61 {dimension_numbers = #tpu.dot_dimension_numbers<[1], [0], [0], [1], [0, 0, 1, 1], [], []>} : vector<2x16xf32>, vector<16x16xf32>, vector<2x16xf32> -> vector<2x16xf32>
    %c440 = arith.constant 440 : index
    %c0_62 = arith.constant 0 : index
    %118 = vector.load %arg2[%c440, %c0_62] : memref<792x32xf32, #tpu.memory_space<vmem>>, vector<1x16xf32>
    %119 = vector.broadcast %118 : vector<1x16xf32> to vector<2x16xf32>
    %120 = arith.addf %117, %119 : vector<2x16xf32>
    %cst_63 = arith.constant 0.000000e+00 : f32
    %121 = vector.broadcast %cst_63 : f32 to vector<2x16xf32>
    %122 = arith.maximumf %120, %121 : vector<2x16xf32>
    %c448 = arith.constant 448 : index
    %c0_64 = arith.constant 0 : index
    %123 = vector.load %arg2[%c448, %c0_64] : memref<792x32xf32, #tpu.memory_space<vmem>>, vector<16x32xf32>
    %cst_65 = arith.constant dense<0.000000e+00> : vector<2x32xf32>
    %124 = tpu.matmul %122, %123, %cst_65 {dimension_numbers = #tpu.dot_dimension_numbers<[1], [0], [0], [1], [0, 0, 1, 1], [], []>} : vector<2x16xf32>, vector<16x32xf32>, vector<2x32xf32> -> vector<2x32xf32>
    %c576 = arith.constant 576 : index
    %c0_66 = arith.constant 0 : index
    %125 = vector.load %arg2[%c576, %c0_66] : memref<792x32xf32, #tpu.memory_space<vmem>>, vector<1x32xf32>
    %126 = vector.broadcast %125 : vector<1x32xf32> to vector<2x32xf32>
    %127 = arith.addf %124, %126 : vector<2x32xf32>
    %cst_67 = arith.constant 0.000000e+00 : f32
    %128 = vector.broadcast %cst_67 : f32 to vector<2x32xf32>
    %129 = arith.maximumf %127, %128 : vector<2x32xf32>
    %c0_68 = arith.constant 0 : index
    %c0_69 = arith.constant 0 : index
    %130 = tpu.strided_load %arg5[%c0_68, %c0_69] {strides = array<i32: 8, 1>} : memref<64x32xf32, #tpu.memory_space<vmem>>, vector<2x32xf32>
    tpu.strided_store %arg5[%c0_68, %c0_69], %129 {strides = array<i32: 8, 1>} : memref<64x32xf32, #tpu.memory_space<vmem>>, vector<2x32xf32>
    %c464 = arith.constant 464 : index
    %c0_70 = arith.constant 0 : index
    %131 = vector.load %arg2[%c464, %c0_70] : memref<792x32xf32, #tpu.memory_space<vmem>>, vector<16x32xf32>
    %cst_71 = arith.constant dense<0.000000e+00> : vector<2x32xf32>
    %132 = tpu.matmul %122, %131, %cst_71 {dimension_numbers = #tpu.dot_dimension_numbers<[1], [0], [0], [1], [0, 0, 1, 1], [], []>} : vector<2x16xf32>, vector<16x32xf32>, vector<2x32xf32> -> vector<2x32xf32>
    %c577 = arith.constant 577 : index
    %c0_72 = arith.constant 0 : index
    %133 = vector.load %arg2[%c577, %c0_72] : memref<792x32xf32, #tpu.memory_space<vmem>>, vector<1x32xf32>
    %134 = vector.broadcast %133 : vector<1x32xf32> to vector<2x32xf32>
    %135 = arith.addf %132, %134 : vector<2x32xf32>
    %cst_73 = arith.constant 0.000000e+00 : f32
    %136 = vector.broadcast %cst_73 : f32 to vector<2x32xf32>
    %137 = arith.maximumf %135, %136 : vector<2x32xf32>
    %c1_74 = arith.constant 1 : index
    %c0_75 = arith.constant 0 : index
    %138 = tpu.strided_load %arg5[%c1_74, %c0_75] {strides = array<i32: 8, 1>} : memref<64x32xf32, #tpu.memory_space<vmem>>, vector<2x32xf32>
    tpu.strided_store %arg5[%c1_74, %c0_75], %137 {strides = array<i32: 8, 1>} : memref<64x32xf32, #tpu.memory_space<vmem>>, vector<2x32xf32>
    %c480 = arith.constant 480 : index
    %c0_76 = arith.constant 0 : index
    %139 = vector.load %arg2[%c480, %c0_76] : memref<792x32xf32, #tpu.memory_space<vmem>>, vector<16x32xf32>
    %cst_77 = arith.constant dense<0.000000e+00> : vector<2x32xf32>
    %140 = tpu.matmul %122, %139, %cst_77 {dimension_numbers = #tpu.dot_dimension_numbers<[1], [0], [0], [1], [0, 0, 1, 1], [], []>} : vector<2x16xf32>, vector<16x32xf32>, vector<2x32xf32> -> vector<2x32xf32>
    %c578 = arith.constant 578 : index
    %c0_78 = arith.constant 0 : index
    %141 = vector.load %arg2[%c578, %c0_78] : memref<792x32xf32, #tpu.memory_space<vmem>>, vector<1x32xf32>
    %142 = vector.broadcast %141 : vector<1x32xf32> to vector<2x32xf32>
    %143 = arith.addf %140, %142 : vector<2x32xf32>
    %cst_79 = arith.constant 0.000000e+00 : f32
    %144 = vector.broadcast %cst_79 : f32 to vector<2x32xf32>
    %145 = arith.maximumf %143, %144 : vector<2x32xf32>
    %c2_80 = arith.constant 2 : index
    %c0_81 = arith.constant 0 : index
    %146 = tpu.strided_load %arg5[%c2_80, %c0_81] {strides = array<i32: 8, 1>} : memref<64x32xf32, #tpu.memory_space<vmem>>, vector<2x32xf32>
    tpu.strided_store %arg5[%c2_80, %c0_81], %145 {strides = array<i32: 8, 1>} : memref<64x32xf32, #tpu.memory_space<vmem>>, vector<2x32xf32>
    %c496 = arith.constant 496 : index
    %c0_82 = arith.constant 0 : index
    %147 = vector.load %arg2[%c496, %c0_82] : memref<792x32xf32, #tpu.memory_space<vmem>>, vector<16x32xf32>
    %cst_83 = arith.constant dense<0.000000e+00> : vector<2x32xf32>
    %148 = tpu.matmul %122, %147, %cst_83 {dimension_numbers = #tpu.dot_dimension_numbers<[1], [0], [0], [1], [0, 0, 1, 1], [], []>} : vector<2x16xf32>, vector<16x32xf32>, vector<2x32xf32> -> vector<2x32xf32>
    %c579 = arith.constant 579 : index
    %c0_84 = arith.constant 0 : index
    %149 = vector.load %arg2[%c579, %c0_84] : memref<792x32xf32, #tpu.memory_space<vmem>>, vector<1x32xf32>
    %150 = vector.broadcast %149 : vector<1x32xf32> to vector<2x32xf32>
    %151 = arith.addf %148, %150 : vector<2x32xf32>
    %cst_85 = arith.constant 0.000000e+00 : f32
    %152 = vector.broadcast %cst_85 : f32 to vector<2x32xf32>
    %153 = arith.maximumf %151, %152 : vector<2x32xf32>
    %c3_86 = arith.constant 3 : index
    %c0_87 = arith.constant 0 : index
    %154 = tpu.strided_load %arg5[%c3_86, %c0_87] {strides = array<i32: 8, 1>} : memref<64x32xf32, #tpu.memory_space<vmem>>, vector<2x32xf32>
    tpu.strided_store %arg5[%c3_86, %c0_87], %153 {strides = array<i32: 8, 1>} : memref<64x32xf32, #tpu.memory_space<vmem>>, vector<2x32xf32>
    %c512 = arith.constant 512 : index
    %c0_88 = arith.constant 0 : index
    %155 = vector.load %arg2[%c512, %c0_88] : memref<792x32xf32, #tpu.memory_space<vmem>>, vector<16x32xf32>
    %cst_89 = arith.constant dense<0.000000e+00> : vector<2x32xf32>
    %156 = tpu.matmul %122, %155, %cst_89 {dimension_numbers = #tpu.dot_dimension_numbers<[1], [0], [0], [1], [0, 0, 1, 1], [], []>} : vector<2x16xf32>, vector<16x32xf32>, vector<2x32xf32> -> vector<2x32xf32>
    %c580 = arith.constant 580 : index
    %c0_90 = arith.constant 0 : index
    %157 = vector.load %arg2[%c580, %c0_90] : memref<792x32xf32, #tpu.memory_space<vmem>>, vector<1x32xf32>
    %158 = vector.broadcast %157 : vector<1x32xf32> to vector<2x32xf32>
    %159 = arith.addf %156, %158 : vector<2x32xf32>
    %cst_91 = arith.constant 0.000000e+00 : f32
    %160 = vector.broadcast %cst_91 : f32 to vector<2x32xf32>
    %161 = arith.maximumf %159, %160 : vector<2x32xf32>
    %c4_92 = arith.constant 4 : index
    %c0_93 = arith.constant 0 : index
    %162 = tpu.strided_load %arg5[%c4_92, %c0_93] {strides = array<i32: 8, 1>} : memref<64x32xf32, #tpu.memory_space<vmem>>, vector<2x32xf32>
    tpu.strided_store %arg5[%c4_92, %c0_93], %161 {strides = array<i32: 8, 1>} : memref<64x32xf32, #tpu.memory_space<vmem>>, vector<2x32xf32>
    %c528 = arith.constant 528 : index
    %c0_94 = arith.constant 0 : index
    %163 = vector.load %arg2[%c528, %c0_94] : memref<792x32xf32, #tpu.memory_space<vmem>>, vector<16x32xf32>
    %cst_95 = arith.constant dense<0.000000e+00> : vector<2x32xf32>
    %164 = tpu.matmul %122, %163, %cst_95 {dimension_numbers = #tpu.dot_dimension_numbers<[1], [0], [0], [1], [0, 0, 1, 1], [], []>} : vector<2x16xf32>, vector<16x32xf32>, vector<2x32xf32> -> vector<2x32xf32>
    %c581 = arith.constant 581 : index
    %c0_96 = arith.constant 0 : index
    %165 = vector.load %arg2[%c581, %c0_96] : memref<792x32xf32, #tpu.memory_space<vmem>>, vector<1x32xf32>
    %166 = vector.broadcast %165 : vector<1x32xf32> to vector<2x32xf32>
    %167 = arith.addf %164, %166 : vector<2x32xf32>
    %cst_97 = arith.constant 0.000000e+00 : f32
    %168 = vector.broadcast %cst_97 : f32 to vector<2x32xf32>
    %169 = arith.maximumf %167, %168 : vector<2x32xf32>
    %c5_98 = arith.constant 5 : index
    %c0_99 = arith.constant 0 : index
    %170 = tpu.strided_load %arg5[%c5_98, %c0_99] {strides = array<i32: 8, 1>} : memref<64x32xf32, #tpu.memory_space<vmem>>, vector<2x32xf32>
    tpu.strided_store %arg5[%c5_98, %c0_99], %169 {strides = array<i32: 8, 1>} : memref<64x32xf32, #tpu.memory_space<vmem>>, vector<2x32xf32>
    %c544 = arith.constant 544 : index
    %c0_100 = arith.constant 0 : index
    %171 = vector.load %arg2[%c544, %c0_100] : memref<792x32xf32, #tpu.memory_space<vmem>>, vector<16x32xf32>
    %cst_101 = arith.constant dense<0.000000e+00> : vector<2x32xf32>
    %172 = tpu.matmul %122, %171, %cst_101 {dimension_numbers = #tpu.dot_dimension_numbers<[1], [0], [0], [1], [0, 0, 1, 1], [], []>} : vector<2x16xf32>, vector<16x32xf32>, vector<2x32xf32> -> vector<2x32xf32>
    %c582 = arith.constant 582 : index
    %c0_102 = arith.constant 0 : index
    %173 = vector.load %arg2[%c582, %c0_102] : memref<792x32xf32, #tpu.memory_space<vmem>>, vector<1x32xf32>
    %174 = vector.broadcast %173 : vector<1x32xf32> to vector<2x32xf32>
    %175 = arith.addf %172, %174 : vector<2x32xf32>
    %cst_103 = arith.constant 0.000000e+00 : f32
    %176 = vector.broadcast %cst_103 : f32 to vector<2x32xf32>
    %177 = arith.maximumf %175, %176 : vector<2x32xf32>
    %c6_104 = arith.constant 6 : index
    %c0_105 = arith.constant 0 : index
    %178 = tpu.strided_load %arg5[%c6_104, %c0_105] {strides = array<i32: 8, 1>} : memref<64x32xf32, #tpu.memory_space<vmem>>, vector<2x32xf32>
    tpu.strided_store %arg5[%c6_104, %c0_105], %177 {strides = array<i32: 8, 1>} : memref<64x32xf32, #tpu.memory_space<vmem>>, vector<2x32xf32>
    %c560 = arith.constant 560 : index
    %c0_106 = arith.constant 0 : index
    %179 = vector.load %arg2[%c560, %c0_106] : memref<792x32xf32, #tpu.memory_space<vmem>>, vector<16x32xf32>
    %cst_107 = arith.constant dense<0.000000e+00> : vector<2x32xf32>
    %180 = tpu.matmul %122, %179, %cst_107 {dimension_numbers = #tpu.dot_dimension_numbers<[1], [0], [0], [1], [0, 0, 1, 1], [], []>} : vector<2x16xf32>, vector<16x32xf32>, vector<2x32xf32> -> vector<2x32xf32>
    %c583 = arith.constant 583 : index
    %c0_108 = arith.constant 0 : index
    %181 = vector.load %arg2[%c583, %c0_108] : memref<792x32xf32, #tpu.memory_space<vmem>>, vector<1x32xf32>
    %182 = vector.broadcast %181 : vector<1x32xf32> to vector<2x32xf32>
    %183 = arith.addf %180, %182 : vector<2x32xf32>
    %cst_109 = arith.constant 0.000000e+00 : f32
    %184 = vector.broadcast %cst_109 : f32 to vector<2x32xf32>
    %185 = arith.maximumf %183, %184 : vector<2x32xf32>
    %c7_110 = arith.constant 7 : index
    %c0_111 = arith.constant 0 : index
    %186 = tpu.strided_load %arg5[%c7_110, %c0_111] {strides = array<i32: 8, 1>} : memref<64x32xf32, #tpu.memory_space<vmem>>, vector<2x32xf32>
    tpu.strided_store %arg5[%c7_110, %c0_111], %185 {strides = array<i32: 8, 1>} : memref<64x32xf32, #tpu.memory_space<vmem>>, vector<2x32xf32>
    %c0_112 = arith.constant 0 : index
    %c0_113 = arith.constant 0 : index
    %187 = vector.load %arg5[%c0_112, %c0_113] : memref<64x32xf32, #tpu.memory_space<vmem>>, vector<16x32xf32>
    %188 = vector.extract_strided_slice %187 {offsets = [0, 0], sizes = [8, 32], strides = [1, 1]} : vector<16x32xf32> to vector<8x32xf32>
    %c0_114 = arith.constant 0 : index
    %c0_115 = arith.constant 0 : index
    %189 = tpu.strided_load %arg5[%c0_114, %c0_115] {strides = array<i32: 2, 1>} : memref<64x32xf32, #tpu.memory_space<vmem>>, vector<8x32xf32>
    tpu.strided_store %arg5[%c0_114, %c0_115], %188 {strides = array<i32: 2, 1>} : memref<64x32xf32, #tpu.memory_space<vmem>>, vector<8x32xf32>
    %c1_116 = arith.constant 1 : index
    %c0_117 = arith.constant 0 : index
    %190 = tpu.strided_load %arg5[%c1_116, %c0_117] {strides = array<i32: 2, 1>} : memref<64x32xf32, #tpu.memory_space<vmem>>, vector<8x32xf32>
    tpu.strided_store %arg5[%c1_116, %c0_117], %188 {strides = array<i32: 2, 1>} : memref<64x32xf32, #tpu.memory_space<vmem>>, vector<8x32xf32>
    %191 = vector.extract_strided_slice %187 {offsets = [8, 0], sizes = [8, 32], strides = [1, 1]} : vector<16x32xf32> to vector<8x32xf32>
    %c16_118 = arith.constant 16 : index
    %c0_119 = arith.constant 0 : index
    %192 = tpu.strided_load %arg5[%c16_118, %c0_119] {strides = array<i32: 2, 1>} : memref<64x32xf32, #tpu.memory_space<vmem>>, vector<8x32xf32>
    tpu.strided_store %arg5[%c16_118, %c0_119], %191 {strides = array<i32: 2, 1>} : memref<64x32xf32, #tpu.memory_space<vmem>>, vector<8x32xf32>
    %c17 = arith.constant 17 : index
    %c0_120 = arith.constant 0 : index
    %193 = tpu.strided_load %arg5[%c17, %c0_120] {strides = array<i32: 2, 1>} : memref<64x32xf32, #tpu.memory_space<vmem>>, vector<8x32xf32>
    tpu.strided_store %arg5[%c17, %c0_120], %191 {strides = array<i32: 2, 1>} : memref<64x32xf32, #tpu.memory_space<vmem>>, vector<8x32xf32>
    %c0_121 = arith.constant 0 : index
    %c0_122 = arith.constant 0 : index
    %194 = vector.load %arg5[%c0_121, %c0_122] : memref<64x32xf32, #tpu.memory_space<vmem>>, vector<32x32xf32>
    %195 = vector.extract_strided_slice %194 {offsets = [0, 0], sizes = [16, 32], strides = [1, 1]} : vector<32x32xf32> to vector<16x32xf32>
    %196 = vector.extract_strided_slice %195 {offsets = [0, 0], sizes = [3, 32], strides = [1, 1]} : vector<16x32xf32> to vector<3x32xf32>
    %197 = tpu.concatenate %195, %196 in 0 : vector<16x32xf32>, vector<3x32xf32> -> vector<19x32xf32>
    %198 = vector.extract_strided_slice %197 {offsets = [0, 0], sizes = [16, 32], strides = [1, 1]} : vector<19x32xf32> to vector<16x32xf32>
    %199 = vector.extract_strided_slice %197 {offsets = [1, 0], sizes = [16, 32], strides = [1, 1]} : vector<19x32xf32> to vector<16x32xf32>
    %200 = vector.extract_strided_slice %197 {offsets = [2, 0], sizes = [16, 32], strides = [1, 1]} : vector<19x32xf32> to vector<16x32xf32>
    %201 = vector.extract_strided_slice %197 {offsets = [3, 0], sizes = [16, 32], strides = [1, 1]} : vector<19x32xf32> to vector<16x32xf32>
    %202 = tpu.concatenate %198, %199, %200, %201 in 1 : vector<16x32xf32>, vector<16x32xf32>, vector<16x32xf32>, vector<16x32xf32> -> vector<16x128xf32>
    %203 = vector.extract_strided_slice %194 {offsets = [16, 0], sizes = [16, 32], strides = [1, 1]} : vector<32x32xf32> to vector<16x32xf32>
    %204 = vector.extract_strided_slice %203 {offsets = [0, 0], sizes = [3, 32], strides = [1, 1]} : vector<16x32xf32> to vector<3x32xf32>
    %205 = tpu.concatenate %203, %204 in 0 : vector<16x32xf32>, vector<3x32xf32> -> vector<19x32xf32>
    %206 = vector.extract_strided_slice %205 {offsets = [0, 0], sizes = [16, 32], strides = [1, 1]} : vector<19x32xf32> to vector<16x32xf32>
    %207 = vector.extract_strided_slice %205 {offsets = [1, 0], sizes = [16, 32], strides = [1, 1]} : vector<19x32xf32> to vector<16x32xf32>
    %208 = vector.extract_strided_slice %205 {offsets = [2, 0], sizes = [16, 32], strides = [1, 1]} : vector<19x32xf32> to vector<16x32xf32>
    %209 = vector.extract_strided_slice %205 {offsets = [3, 0], sizes = [16, 32], strides = [1, 1]} : vector<19x32xf32> to vector<16x32xf32>
    %210 = tpu.concatenate %206, %207, %208, %209 in 1 : vector<16x32xf32>, vector<16x32xf32>, vector<16x32xf32>, vector<16x32xf32> -> vector<16x128xf32>
    %211 = tpu.concatenate %202, %210 in 0 : vector<16x128xf32>, vector<16x128xf32> -> vector<32x128xf32>
    %c584 = arith.constant 584 : index
    %c0_123 = arith.constant 0 : index
    %212 = vector.load %arg2[%c584, %c0_123] : memref<792x32xf32, #tpu.memory_space<vmem>>, vector<128x16xf32>
    %cst_124 = arith.constant dense<0.000000e+00> : vector<32x16xf32>
    %213 = tpu.matmul %211, %212, %cst_124 {dimension_numbers = #tpu.dot_dimension_numbers<[1], [0], [0], [1], [0, 0, 1, 1], [], []>} : vector<32x128xf32>, vector<128x16xf32>, vector<32x16xf32> -> vector<32x16xf32>
    %c712 = arith.constant 712 : index
    %c0_125 = arith.constant 0 : index
    %214 = vector.load %arg2[%c712, %c0_125] : memref<792x32xf32, #tpu.memory_space<vmem>>, vector<1x16xf32>
    %215 = vector.broadcast %214 : vector<1x16xf32> to vector<32x16xf32>
    %216 = arith.addf %213, %215 : vector<32x16xf32>
    %cst_126 = arith.constant 0.000000e+00 : f32
    %217 = vector.broadcast %cst_126 : f32 to vector<32x16xf32>
    %218 = arith.maximumf %216, %217 : vector<32x16xf32>
    %219 = vector.extract_strided_slice %218 {offsets = [0, 0], sizes = [16, 16], strides = [1, 1]} : vector<32x16xf32> to vector<16x16xf32>
    %c0_127 = arith.constant 0 : index
    %c0_128 = arith.constant 0 : index
    %220 = tpu.strided_load %arg5[%c0_127, %c0_128] {strides = array<i32: 2, 1>} : memref<64x32xf32, #tpu.memory_space<vmem>>, vector<16x16xf32>
    tpu.strided_store %arg5[%c0_127, %c0_128], %219 {strides = array<i32: 2, 1>} : memref<64x32xf32, #tpu.memory_space<vmem>>, vector<16x16xf32>
    %c1_129 = arith.constant 1 : index
    %c0_130 = arith.constant 0 : index
    %221 = tpu.strided_load %arg5[%c1_129, %c0_130] {strides = array<i32: 2, 1>} : memref<64x32xf32, #tpu.memory_space<vmem>>, vector<16x16xf32>
    tpu.strided_store %arg5[%c1_129, %c0_130], %219 {strides = array<i32: 2, 1>} : memref<64x32xf32, #tpu.memory_space<vmem>>, vector<16x16xf32>
    %222 = vector.extract_strided_slice %218 {offsets = [16, 0], sizes = [16, 16], strides = [1, 1]} : vector<32x16xf32> to vector<16x16xf32>
    %c32 = arith.constant 32 : index
    %c0_131 = arith.constant 0 : index
    %223 = tpu.strided_load %arg5[%c32, %c0_131] {strides = array<i32: 2, 1>} : memref<64x32xf32, #tpu.memory_space<vmem>>, vector<16x16xf32>
    tpu.strided_store %arg5[%c32, %c0_131], %222 {strides = array<i32: 2, 1>} : memref<64x32xf32, #tpu.memory_space<vmem>>, vector<16x16xf32>
    %c33 = arith.constant 33 : index
    %c0_132 = arith.constant 0 : index
    %224 = tpu.strided_load %arg5[%c33, %c0_132] {strides = array<i32: 2, 1>} : memref<64x32xf32, #tpu.memory_space<vmem>>, vector<16x16xf32>
    tpu.strided_store %arg5[%c33, %c0_132], %222 {strides = array<i32: 2, 1>} : memref<64x32xf32, #tpu.memory_space<vmem>>, vector<16x16xf32>
    %c0_133 = arith.constant 0 : index
    %c0_134 = arith.constant 0 : index
    %225 = vector.load %arg5[%c0_133, %c0_134] : memref<64x32xf32, #tpu.memory_space<vmem>>, vector<64x16xf32>
    %226 = vector.extract_strided_slice %225 {offsets = [0, 0], sizes = [32, 16], strides = [1, 1]} : vector<64x16xf32> to vector<32x16xf32>
    %227 = vector.extract_strided_slice %226 {offsets = [0, 0], sizes = [3, 16], strides = [1, 1]} : vector<32x16xf32> to vector<3x16xf32>
    %228 = tpu.concatenate %226, %227 in 0 : vector<32x16xf32>, vector<3x16xf32> -> vector<35x16xf32>
    %229 = vector.extract_strided_slice %228 {offsets = [0, 0], sizes = [32, 16], strides = [1, 1]} : vector<35x16xf32> to vector<32x16xf32>
    %230 = vector.extract_strided_slice %228 {offsets = [1, 0], sizes = [32, 16], strides = [1, 1]} : vector<35x16xf32> to vector<32x16xf32>
    %231 = vector.extract_strided_slice %228 {offsets = [2, 0], sizes = [32, 16], strides = [1, 1]} : vector<35x16xf32> to vector<32x16xf32>
    %232 = vector.extract_strided_slice %228 {offsets = [3, 0], sizes = [32, 16], strides = [1, 1]} : vector<35x16xf32> to vector<32x16xf32>
    %233 = tpu.concatenate %229, %230, %231, %232 in 1 : vector<32x16xf32>, vector<32x16xf32>, vector<32x16xf32>, vector<32x16xf32> -> vector<32x64xf32>
    %234 = vector.extract_strided_slice %225 {offsets = [32, 0], sizes = [32, 16], strides = [1, 1]} : vector<64x16xf32> to vector<32x16xf32>
    %235 = vector.extract_strided_slice %234 {offsets = [0, 0], sizes = [3, 16], strides = [1, 1]} : vector<32x16xf32> to vector<3x16xf32>
    %236 = tpu.concatenate %234, %235 in 0 : vector<32x16xf32>, vector<3x16xf32> -> vector<35x16xf32>
    %237 = vector.extract_strided_slice %236 {offsets = [0, 0], sizes = [32, 16], strides = [1, 1]} : vector<35x16xf32> to vector<32x16xf32>
    %238 = vector.extract_strided_slice %236 {offsets = [1, 0], sizes = [32, 16], strides = [1, 1]} : vector<35x16xf32> to vector<32x16xf32>
    %239 = vector.extract_strided_slice %236 {offsets = [2, 0], sizes = [32, 16], strides = [1, 1]} : vector<35x16xf32> to vector<32x16xf32>
    %240 = vector.extract_strided_slice %236 {offsets = [3, 0], sizes = [32, 16], strides = [1, 1]} : vector<35x16xf32> to vector<32x16xf32>
    %241 = tpu.concatenate %237, %238, %239, %240 in 1 : vector<32x16xf32>, vector<32x16xf32>, vector<32x16xf32>, vector<32x16xf32> -> vector<32x64xf32>
    %242 = tpu.concatenate %233, %241 in 0 : vector<32x64xf32>, vector<32x64xf32> -> vector<64x64xf32>
    %c720 = arith.constant 720 : index
    %c0_135 = arith.constant 0 : index
    %243 = vector.load %arg2[%c720, %c0_135] : memref<792x32xf32, #tpu.memory_space<vmem>>, vector<64x3xf32>
    %cst_136 = arith.constant dense<0.000000e+00> : vector<64x3xf32>
    %244 = tpu.matmul %242, %243, %cst_136 {dimension_numbers = #tpu.dot_dimension_numbers<[1], [0], [0], [1], [0, 0, 1, 1], [], []>} : vector<64x64xf32>, vector<64x3xf32>, vector<64x3xf32> -> vector<64x3xf32>
    %c784 = arith.constant 784 : index
    %c0_137 = arith.constant 0 : index
    %245 = vector.load %arg2[%c784, %c0_137] : memref<792x32xf32, #tpu.memory_space<vmem>>, vector<1x3xf32>
    %246 = vector.broadcast %245 : vector<1x3xf32> to vector<64x3xf32>
    %247 = arith.addf %244, %246 : vector<64x3xf32>
    %248 = vector.extract_strided_slice %247 {offsets = [0, 0], sizes = [32, 3], strides = [1, 1]} : vector<64x3xf32> to vector<32x3xf32>
    %c0_138 = arith.constant 0 : index
    %c0_139 = arith.constant 0 : index
    %c0_140 = arith.constant 0 : index
    %249 = vector.load %arg3[%c0_138, %c0_139, %c0_140] : memref<2x32x3xf32, #tpu.memory_space<vmem>>, vector<1x32x3xf32>
    %250 = vector.shape_cast %249 : vector<1x32x3xf32> to vector<32x3xf32>
    %251 = vector.shape_cast %248 : vector<32x3xf32> to vector<1x32x3xf32>
    tpu.vector_store %arg3[%c0_138, %c0_139, %c0_140], %251 {strides = array<i32>} : memref<2x32x3xf32, #tpu.memory_space<vmem>>, vector<1x32x3xf32>,
    %252 = vector.extract_strided_slice %247 {offsets = [32, 0], sizes = [32, 3], strides = [1, 1]} : vector<64x3xf32> to vector<32x3xf32>
    %c1_141 = arith.constant 1 : index
    %c0_142 = arith.constant 0 : index
    %c0_143 = arith.constant 0 : index
    %253 = vector.load %arg3[%c1_141, %c0_142, %c0_143] : memref<2x32x3xf32, #tpu.memory_space<vmem>>, vector<1x32x3xf32>
    %254 = vector.shape_cast %253 : vector<1x32x3xf32> to vector<32x3xf32>
    %255 = vector.shape_cast %252 : vector<32x3xf32> to vector<1x32x3xf32>
    tpu.vector_store %arg3[%c1_141, %c0_142, %c0_143], %255 {strides = array<i32>} : memref<2x32x3xf32, #tpu.memory_space<vmem>>, vector<1x32x3xf32>,
    return
  }
  func.func @transform_0(%arg0: i32) -> (i32, i32, i32) {
    %c0_i32 = arith.constant 0 : i32
    %c0_i32_0 = arith.constant 0 : i32
    %c0_i32_1 = arith.constant 0 : i32
    %c0_i32_2 = arith.constant 0 : i32
    return %c0_i32, %c0_i32_0, %c0_i32_1 : i32, i32, i32
  }
  func.func @transform_1(%arg0: i32) -> (i32, i32) {
    %c0_i32 = arith.constant 0 : i32
    %c0_i32_0 = arith.constant 0 : i32
    %c0_i32_1 = arith.constant 0 : i32
    return %c0_i32, %c0_i32_0 : i32, i32
  }
  func.func @transform_2(%arg0: i32) -> (i32, i32, i32) {
    %c0_i32 = arith.constant 0 : i32
    %c0_i32_0 = arith.constant 0 : i32
    %c0_i32_1 = arith.constant 0 : i32
    %c0_i32_2 = arith.constant 0 : i32
    return %c0_i32, %c0_i32_0, %c0_i32_1 : i32, i32, i32
  }
  func.func @transform_3(%arg0: i32) -> (i32, i32) {
    %c0_i32 = arith.constant 0 : i32
    %c0_i32_0 = arith.constant 0 : i32
    %c0_i32_1 = arith.constant 0 : i32
    return %c0_i32, %c0_i32_0 : i32, i32
  }
}

</mosaic_0001>

<llo_original>
// kernel: tpu_custom_call.1
$region0: #{tpu_custom_call.1}
  #allocation0 [shape = 'u32[]', space=smem, size = 0x4, offset = 0x4, fixed_abs, tag = 'smem constant byte address 0x4 - core index']
  #allocation1 [shape = 'u32[144,128]{1,0:T(1,128)}', space=vmem, size = 0x12000, scoped, tag = 'internal scratch']
  #allocation2 [shape = 'f32[64,32]{1,0:T(8,128)}', space=vmem, size = 0x8000, scoped, tag = 'scratch operand']
  %s0 = inlined_call_operand.vmem [shape: f32[2,32,3], index: 0, kind: input, shape index: {}]
  %s1 = inlined_call_operand.vmem [shape: f32[792,32], index: 1, kind: input, shape index: {}]
  %s2 = inlined_call_operand.vmem [shape: f32[2,32,3], index: 2, kind: output, shape index: {0}]
  %s3 = inlined_call_operand.hbm [shape: f32[2,8], index: 3, kind: output, shape index: {1}]
  %4 = xla_tuple %s2, %s3
  %s5 = sld [smem:[#allocation0]]
  $region26: #{tpu_custom_call.1} parent=0
    _
  %s7 = ssub.s32 1, %s5
  %s8 = scalar_select 0, %s7, %s5
  $region1: #{tpu_custom_call.1} parent=0
    #allocation3 [shape = 'u8[1024]{0}', space=vmem, size = 0x400, scoped, tag = 'output window, operand 1, single buffered']
    #allocation4 [shape = 's32[1]{0}', space=sflag, size = 0x4, scoped, tag = 'scoped memory for tpu_custom_call.1']
    %9 = vsyncpa [#allocation4], 0
    // Predicated region
    $region2: #{tpu_custom_call.1} parent=1 // pred_check
      _
    $region3: #{tpu_custom_call.1} parent=1 // pred_check_branch
      %11 = sbr.rel (0) target = $region5
    $region4: #{tpu_custom_call.1} parent=1 // pred_region
      _
    $region5: #{tpu_custom_call.1} parent=1 // pred_fallthru
      _
    // Predicated region
    $region6: #{tpu_custom_call.1} parent=1 // pred_check
      _
    $region7: #{tpu_custom_call.1} parent=1 // pred_check_branch
      %13 = sbr.rel (0) target = $region9
    $region8: #{tpu_custom_call.1} parent=1 // pred_region
      _
    $region9: #{tpu_custom_call.1} parent=1 // pred_fallthru
      _
    %v14 = vld [vmem:[%s0] sm:$0xff]
    %v15 = vld [vmem:[%s0 + $0x8] sm:$0xff]
    %v16 = vld [vmem:[%s0 + $0x10] sm:$0xff]
    %v17 = vld [vmem:[%s0 + $0x18] sm:$0xff]
    %v18 = vld [vmem:[%s0 + $0x20] sm:$0xff]
    %v19 = vld [vmem:[%s0 + $0x28] sm:$0xff]
    %v20 = vld [vmem:[%s0 + $0x30] sm:$0xff]
    %v21 = vld [vmem:[%s0 + $0x38] sm:$0xff]
    %vm26 = vcmask 1046528
    %v27 = vrot.slane %v14, 1
    %v28 = vrot.slane %v15, 1
    %v29 = vsel %vm26, %v27, %v28
    %v30 = vrot.slane %v16, 1
    %v31 = vsel %vm26, %v28, %v30
    %v32 = vrot.slane %v17, 1
    %v33 = vsel %vm26, %v30, %v32
    %v34 = vsel %vm26, %v32, %v27
    %35 = vrot.lane.b32.xlu0 %v29, 3
    %v36 = vpop.permute.xlu0 %35
    %37 = vrot.lane.b32.xlu0 %v31, 3
    %v38 = vpop.permute.xlu0 %37
    %39 = vrot.lane.b32.xlu0 %v33, 3
    %v40 = vpop.permute.xlu0 %39
    %41 = vrot.lane.b32.xlu0 %v34, 3
    %v42 = vpop.permute.xlu0 %41
    %vm47 = vcmask 1045504
    %v48 = vrot.slane %v14, 2
    %v49 = vrot.slane %v15, 2
    %v50 = vsel %vm47, %v48, %v49
    %v51 = vrot.slane %v16, 2
    %v52 = vsel %vm47, %v49, %v51
    %v53 = vrot.slane %v17, 2
    %v54 = vsel %vm47, %v51, %v53
    %v55 = vsel %vm47, %v53, %v48
    %56 = vrot.lane.b32.xlu0 %v50, 6
    %v57 = vpop.permute.xlu0 %56
    %58 = vrot.lane.b32.xlu0 %v52, 6
    %v59 = vpop.permute.xlu0 %58
    %60 = vrot.lane.b32.xlu0 %v54, 6
    %v61 = vpop.permute.xlu0 %60
    %62 = vrot.lane.b32.xlu0 %v55, 6
    %v63 = vpop.permute.xlu0 %62
    %vm68 = vcmask 1044480
    %v69 = vrot.slane %v14, 3
    %v70 = vrot.slane %v15, 3
    %v71 = vsel %vm68, %v69, %v70
    %v72 = vrot.slane %v16, 3
    %v73 = vsel %vm68, %v70, %v72
    %v74 = vrot.slane %v17, 3
    %v75 = vsel %vm68, %v72, %v74
    %v76 = vsel %vm68, %v74, %v69
    %77 = vrot.lane.b32.xlu0 %v71, 9
    %v78 = vpop.permute.xlu0 %77
    %79 = vrot.lane.b32.xlu0 %v73, 9
    %v80 = vpop.permute.xlu0 %79
    %81 = vrot.lane.b32.xlu0 %v75, 9
    %v82 = vpop.permute.xlu0 %81
    %83 = vrot.lane.b32.xlu0 %v76, 9
    %v84 = vpop.permute.xlu0 %83
    %vm89 = vcmask 23552
    %v90 = vsel %vm89, %v14, %v36
    %v91 = vsel %vm89, %v15, %v38
    %v92 = vsel %vm89, %v16, %v40
    %v93 = vsel %vm89, %v17, %v42
    %vm94 = vcmask 48128
    %v95 = vsel %vm94, %v90, %v57
    %v96 = vsel %vm94, %v91, %v59
    %v97 = vsel %vm94, %v92, %v61
    %v98 = vsel %vm94, %v93, %v63
    %vm99 = vcmask 72704
    %v100 = vsel %vm99, %v95, %v78
    %v101 = vsel %vm99, %v96, %v80
    %v102 = vsel %vm99, %v97, %v82
    %v103 = vsel %vm99, %v98, %v84
    %v108 = vrot.slane %v18, 1
    %v109 = vrot.slane %v19, 1
    %v110 = vsel %vm26, %v108, %v109
    %v111 = vrot.slane %v20, 1
    %v112 = vsel %vm26, %v109, %v111
    %v113 = vrot.slane %v21, 1
    %v114 = vsel %vm26, %v111, %v113
    %v115 = vsel %vm26, %v113, %v108
    %116 = vrot.lane.b32.xlu0 %v110, 3
    %v117 = vpop.permute.xlu0 %116
    %118 = vrot.lane.b32.xlu0 %v112, 3
    %v119 = vpop.permute.xlu0 %118
    %120 = vrot.lane.b32.xlu0 %v114, 3
    %v121 = vpop.permute.xlu0 %120
    %122 = vrot.lane.b32.xlu0 %v115, 3
    %v123 = vpop.permute.xlu0 %122
    %v128 = vrot.slane %v18, 2
    %v129 = vrot.slane %v19, 2
    %v130 = vsel %vm47, %v128, %v129
    %v131 = vrot.slane %v20, 2
    %v132 = vsel %vm47, %v129, %v131
    %v133 = vrot.slane %v21, 2
    %v134 = vsel %vm47, %v131, %v133
    %v135 = vsel %vm47, %v133, %v128
    %136 = vrot.lane.b32.xlu0 %v130, 6
    %v137 = vpop.permute.xlu0 %136
    %138 = vrot.lane.b32.xlu0 %v132, 6
    %v139 = vpop.permute.xlu0 %138
    %140 = vrot.lane.b32.xlu0 %v134, 6
    %v141 = vpop.permute.xlu0 %140
    %142 = vrot.lane.b32.xlu0 %v135, 6
    %v143 = vpop.permute.xlu0 %142
    %v148 = vrot.slane %v18, 3
    %v149 = vrot.slane %v19, 3
    %v150 = vsel %vm68, %v148, %v149
    %v151 = vrot.slane %v20, 3
    %v152 = vsel %vm68, %v149, %v151
    %v153 = vrot.slane %v21, 3
    %v154 = vsel %vm68, %v151, %v153
    %v155 = vsel %vm68, %v153, %v148
    %156 = vrot.lane.b32.xlu0 %v150, 9
    %v157 = vpop.permute.xlu0 %156
    %158 = vrot.lane.b32.xlu0 %v152, 9
    %v159 = vpop.permute.xlu0 %158
    %160 = vrot.lane.b32.xlu0 %v154, 9
    %v161 = vpop.permute.xlu0 %160
    %162 = vrot.lane.b32.xlu0 %v155, 9
    %v163 = vpop.permute.xlu0 %162
    %v168 = vsel %vm89, %v18, %v117
    %v169 = vsel %vm89, %v19, %v119
    %v170 = vsel %vm89, %v20, %v121
    %v171 = vsel %vm89, %v21, %v123
    %v172 = vsel %vm94, %v168, %v137
    %v173 = vsel %vm94, %v169, %v139
    %v174 = vsel %vm94, %v170, %v141
    %v175 = vsel %vm94, %v171, %v143
    %v176 = vsel %vm99, %v172, %v157
    %v177 = vsel %vm99, %v173, %v159
    %v178 = vsel %vm99, %v174, %v161
    %v179 = vsel %vm99, %v175, %v163
    %v180 = vld [vmem:[%s1] sm:$0xff]
    %v181 = vld [vmem:[%s1 + $0x8] sm:$0xf]
    %v182 = vld [vmem:[%s1 + $0x10] sm:$0x1]
    %v183 = vlaneseq
    %v184 = vshrl.u32 %v183, 7
    %v185 = vsub.s32 0, %v184
    %v186 = vrot.slane %v182, %v185
    %vm187 = vcmask 97280
    %v189 = vsel %vm187, %v100, 0
    %v192 = vsel %vm187, %v101, 0
    %v195 = vsel %vm187, %v102, 0
    %v198 = vsel %vm187, %v103, 0
    %v201 = vsel %vm187, %v176, 0
    %v204 = vsel %vm187, %v177, 0
    %v207 = vsel %vm187, %v178, 0
    %v210 = vsel %vm187, %v179, 0
    %vm212 = vcmask 1043456
    %v214 = vsel %vm212, %v181, 0
    %216 = vmatprep.subr.mxu0 0.0
    %217 = vmatpush1.msra.mxu0 0.0
    %218 = vmatprep.subr.mxu0 0.0
    %219 = vmatpush1.msra.mxu0 0.0
    %220 = vmatprep.subr.mxu0 0.0
    %221 = vmatpush1.msra.mxu0 0.0
    %222 = vmatprep.subr.mxu0 0.0
    %223 = vmatpush1.msra.mxu0 0.0
    %224 = vmatprep.subr.mxu0 0.0
    %225 = vmatpush1.msra.mxu0 0.0
    %226 = vmatprep.subr.mxu0 0.0
    %227 = vmatpush1.msra.mxu0 0.0
    %228 = vmatprep.subr.mxu0 0.0
    %229 = vmatpush1.msra.mxu0 0.0
    %230 = vmatprep.subr.mxu0 0.0
    %231 = vmatpush1.msra.mxu0 0.0
    %232 = vmatprep.subr.mxu0 0.0
    %233 = vmatpush1.msra.mxu0 0.0
    %234 = vmatprep.subr.mxu0 0.0
    %235 = vmatpush1.msra.mxu0 0.0
    %236 = vmatprep.subr.mxu0 0.0
    %237 = vmatpush1.msra.mxu0 0.0
    %238 = vmatprep.subr.mxu0 0.0
    %239 = vmatpush1.msra.mxu0 0.0
    %240 = vmatprep.subr.mxu0 0.0
    %241 = vmatpush1.msra.mxu0 0.0
    %242 = vmatprep.subr.mxu0 0.0
    %243 = vmatpush1.msra.mxu0 0.0
    %244 = vmatprep.subr.mxu0 0.0
    %245 = vmatpush1.msra.mxu0 %v214
    %246 = vmatprep.subr.mxu0 0.0
    %247 = vmatpush1.msra.mxu0 %v180
    %248 = vmatprep.subr.mxu0 0.0
    %249 = vmatpush2.msra.mxu0 0.0
    %250 = vmatprep.subr.mxu0 0.0
    %251 = vmatpush2.msra.mxu0 0.0
    %252 = vmatprep.subr.mxu0 0.0
    %253 = vmatpush2.msra.mxu0 0.0
    %254 = vmatprep.subr.mxu0 0.0
    %255 = vmatpush2.msra.mxu0 0.0
    %256 = vmatprep.subr.mxu0 0.0
    %257 = vmatpush2.msra.mxu0 0.0
    %258 = vmatprep.subr.mxu0 0.0
    %259 = vmatpush2.msra.mxu0 0.0
    %260 = vmatprep.subr.mxu0 0.0
    %261 = vmatpush2.msra.mxu0 0.0
    %262 = vmatprep.subr.mxu0 0.0
    %263 = vmatpush2.msra.mxu0 0.0
    %264 = vmatprep.subr.mxu0 0.0
    %265 = vmatpush2.msra.mxu0 0.0
    %266 = vmatprep.subr.mxu0 0.0
    %267 = vmatpush2.msra.mxu0 0.0
    %268 = vmatprep.subr.mxu0 0.0
    %269 = vmatpush2.msra.mxu0 0.0
    %270 = vmatprep.subr.mxu0 0.0
    %271 = vmatpush2.msra.mxu0 0.0
    %272 = vmatprep.subr.mxu0 0.0
    %273 = vmatpush2.msra.mxu0 0.0
    %274 = vmatprep.subr.mxu0 0.0
    %275 = vmatpush2.msra.mxu0 0.0
    %276 = vmatprep.subr.mxu0 0.0
    %277 = vmatpush2.msra.mxu0 0.0
    %278 = vmatprep.subr.mxu0 0.0
    %279 = vmatpush2.msra.mxu0 0.0
    %280 = vmatprep.mubr.f32.mxu0 0.0
    %281 = vmatmul.mubr.f32.gmra.mxu0 %v189
    %v282 = vpop.f32.mrf.mxu0
    %v283 = vadd.f32 %v186, %v282
    %v284 = vpop.f32.mrf.mxu0
    %285 = vmatprep.mubr.f32.mxu0 0.0
    %286 = vmatmul.mubr.f32.gmra.mxu0 %v192
    %v287 = vpop.f32.mrf.mxu0
    %v288 = vadd.f32 %v186, %v287
    %v289 = vpop.f32.mrf.mxu0
    %290 = vmatprep.mubr.f32.mxu0 0.0
    %291 = vmatmul.mubr.f32.gmra.mxu0 %v195
    %v292 = vpop.f32.mrf.mxu0
    %v293 = vadd.f32 %v186, %v292
    %v294 = vpop.f32.mrf.mxu0
    %295 = vmatprep.mubr.f32.mxu0 0.0
    %296 = vmatmul.mubr.f32.gmra.mxu0 %v198
    %v297 = vpop.f32.mrf.mxu0
    %v298 = vadd.f32 %v186, %v297
    %v299 = vpop.f32.mrf.mxu0
    %300 = vmatprep.mubr.f32.mxu0 0.0
    %301 = vmatmul.mubr.f32.gmra.mxu0 %v201
    %v302 = vpop.f32.mrf.mxu0
    %v303 = vadd.f32 %v186, %v302
    %v304 = vpop.f32.mrf.mxu0
    %305 = vmatprep.mubr.f32.mxu0 0.0
    %306 = vmatmul.mubr.f32.gmra.mxu0 %v204
    %v307 = vpop.f32.mrf.mxu0
    %v308 = vadd.f32 %v186, %v307
    %v309 = vpop.f32.mrf.mxu0
    %310 = vmatprep.mubr.f32.mxu0 0.0
    %311 = vmatmul.mubr.f32.gmra.mxu0 %v207
    %v312 = vpop.f32.mrf.mxu0
    %v313 = vadd.f32 %v186, %v312
    %v314 = vpop.f32.mrf.mxu0
    %315 = vmatprep.mubr.f32.mxu0 0.0
    %316 = vmatmul.mubr.f32.gmra.mxu0 %v210
    %v317 = vpop.f32.mrf.mxu0
    %v318 = vadd.f32 %v186, %v317
    %v319 = vpop.f32.mrf.mxu0
    %320 = vdwg.mxu0
    %v321 = vmax.f32 %v283, 0.0
    %v322 = vmax.f32 %v288, 0.0
    %v323 = vmax.f32 %v293, 0.0
    %v324 = vmax.f32 %v298, 0.0
    %v325 = vmax.f32 %v303, 0.0
    %v326 = vmax.f32 %v308, 0.0
    %v327 = vmax.f32 %v313, 0.0
    %v328 = vmax.f32 %v318, 0.0
    %vm329 = vcmask 130048
    %330 = vst.msk [vmem:[#allocation2] sm:$0xff] %vm329, %v321
    %331 = vst.msk [vmem:[#allocation2 + $0x8] sm:$0xff] %vm329, %v322
    %332 = vst.msk [vmem:[#allocation2 + $0x10] sm:$0xff] %vm329, %v323
    %333 = vst.msk [vmem:[#allocation2 + $0x18] sm:$0xff] %vm329, %v324
    %334 = vst.msk [vmem:[#allocation2 + $0x20] sm:$0xff] %vm329, %v325
    %335 = vst.msk [vmem:[#allocation2 + $0x28] sm:$0xff] %vm329, %v326
    %336 = vst.msk [vmem:[#allocation2 + $0x30] sm:$0xff] %vm329, %v327
    %337 = vst.msk [vmem:[#allocation2 + $0x38] sm:$0xff] %vm329, %v328
    %v338 = vld [vmem:[#allocation2] ss:$2 sm:$0xff]
    %s339 = scalar_lea.vmem [#allocation2], 16
    %v340 = vld [vmem:[%s339] ss:$2 sm:$0xff]
    %s341 = scalar_lea.vmem [#allocation2], 32
    %v342 = vld [vmem:[%s341] ss:$2 sm:$0xff]
    %s343 = scalar_lea.vmem [#allocation2], 48
    %v344 = vld [vmem:[%s343] ss:$2 sm:$0xff]
    %v347 = vrot.slane %v338, 1
    %v348 = vrot.slane %v340, 1
    %v349 = vsel %vm26, %v347, %v348
    %v350 = vsel %vm26, %v348, %v347
    %351 = vrot.lane.b32.xlu0 %v349, 16
    %v352 = vpop.permute.xlu0 %351
    %353 = vrot.lane.b32.xlu0 %v350, 16
    %v354 = vpop.permute.xlu0 %353
    %v357 = vrot.slane %v338, 2
    %v358 = vrot.slane %v340, 2
    %v359 = vsel %vm47, %v357, %v358
    %v360 = vsel %vm47, %v358, %v357
    %361 = vrot.lane.b32.xlu0 %v359, 32
    %v362 = vpop.permute.xlu0 %361
    %363 = vrot.lane.b32.xlu0 %v360, 32
    %v364 = vpop.permute.xlu0 %363
    %v367 = vrot.slane %v338, 3
    %v368 = vrot.slane %v340, 3
    %v369 = vsel %vm68, %v367, %v368
    %v370 = vsel %vm68, %v368, %v367
    %371 = vrot.lane.b32.xlu0 %v369, 48
    %v372 = vpop.permute.xlu0 %371
    %373 = vrot.lane.b32.xlu0 %v370, 48
    %v374 = vpop.permute.xlu0 %373
    %v377 = vsel %vm329, %v338, %v352
    %v378 = vsel %vm329, %v340, %v354
    %vm379 = vcmask 261120
    %v380 = vsel %vm379, %v377, %v362
    %v381 = vsel %vm379, %v378, %v364
    %vm382 = vcmask 392192
    %v383 = vsel %vm382, %v380, %v372
    %v384 = vsel %vm382, %v381, %v374
    %v387 = vrot.slane %v342, 1
    %v388 = vrot.slane %v344, 1
    %v389 = vsel %vm26, %v387, %v388
    %v390 = vsel %vm26, %v388, %v387
    %391 = vrot.lane.b32.xlu0 %v389, 16
    %v392 = vpop.permute.xlu0 %391
    %393 = vrot.lane.b32.xlu0 %v390, 16
    %v394 = vpop.permute.xlu0 %393
    %v397 = vrot.slane %v342, 2
    %v398 = vrot.slane %v344, 2
    %v399 = vsel %vm47, %v397, %v398
    %v400 = vsel %vm47, %v398, %v397
    %401 = vrot.lane.b32.xlu0 %v399, 32
    %v402 = vpop.permute.xlu0 %401
    %403 = vrot.lane.b32.xlu0 %v400, 32
    %v404 = vpop.permute.xlu0 %403
    %v407 = vrot.slane %v342, 3
    %v408 = vrot.slane %v344, 3
    %v409 = vsel %vm68, %v407, %v408
    %v410 = vsel %vm68, %v408, %v407
    %411 = vrot.lane.b32.xlu0 %v409, 48
    %v412 = vpop.permute.xlu0 %411
    %413 = vrot.lane.b32.xlu0 %v410, 48
    %v414 = vpop.permute.xlu0 %413
    %v417 = vsel %vm329, %v342, %v392
    %v418 = vsel %vm329, %v344, %v394
    %v419 = vsel %vm379, %v417, %v402
    %v420 = vsel %vm379, %v418, %v404
    %v421 = vsel %vm382, %v419, %v412
    %v422 = vsel %vm382, %v420, %v414
    %v423 = vld [vmem:[%s1 + $0x18] sm:$0xff]
    %v424 = vld [vmem:[%s1 + $0x20] sm:$0xff]
    %v425 = vld [vmem:[%s1 + $0x28] sm:$0xff]
    %v426 = vld [vmem:[%s1 + $0x30] sm:$0xff]
    %v427 = vld [vmem:[%s1 + $0x38] sm:$0xff]
    %v428 = vld [vmem:[%s1 + $0x40] sm:$0xff]
    %v429 = vld [vmem:[%s1 + $0x48] sm:$0xff]
    %v430 = vld [vmem:[%s1 + $0x50] sm:$0xff]
    %v431 = vld [vmem:[%s1 + $0x58] sm:$0x1]
    %v432 = vlaneseq
    %v433 = vshrl.u32 %v432, 7
    %v434 = vsub.s32 0, %v433
    %v435 = vrot.slane %v431, %v434
    %vm436 = vcmask 523264
    %v438 = vsel %vm436, %v383, 0
    %v441 = vsel %vm436, %v384, 0
    %v444 = vsel %vm436, %v421, 0
    %v447 = vsel %vm436, %v422, 0
    %449 = vmatprep.subr.mxu0 0.0
    %450 = vmatpush1.msra.mxu0 0.0
    %451 = vmatprep.subr.mxu0 0.0
    %452 = vmatpush1.msra.mxu0 0.0
    %453 = vmatprep.subr.mxu0 0.0
    %454 = vmatpush1.msra.mxu0 0.0
    %455 = vmatprep.subr.mxu0 0.0
    %456 = vmatpush1.msra.mxu0 0.0
    %457 = vmatprep.subr.mxu0 0.0
    %458 = vmatpush1.msra.mxu0 0.0
    %459 = vmatprep.subr.mxu0 0.0
    %460 = vmatpush1.msra.mxu0 0.0
    %461 = vmatprep.subr.mxu0 0.0
    %462 = vmatpush1.msra.mxu0 0.0
    %463 = vmatprep.subr.mxu0 0.0
    %464 = vmatpush1.msra.mxu0 0.0
    %465 = vmatprep.subr.mxu0 0.0
    %466 = vmatpush1.msra.mxu0 %v430
    %467 = vmatprep.subr.mxu0 0.0
    %468 = vmatpush1.msra.mxu0 %v429
    %469 = vmatprep.subr.mxu0 0.0
    %470 = vmatpush1.msra.mxu0 %v428
    %471 = vmatprep.subr.mxu0 0.0
    %472 = vmatpush1.msra.mxu0 %v427
    %473 = vmatprep.subr.mxu0 0.0
    %474 = vmatpush1.msra.mxu0 %v426
    %475 = vmatprep.subr.mxu0 0.0
    %476 = vmatpush1.msra.mxu0 %v425
    %477 = vmatprep.subr.mxu0 0.0
    %478 = vmatpush1.msra.mxu0 %v424
    %479 = vmatprep.subr.mxu0 0.0
    %480 = vmatpush1.msra.mxu0 %v423
    %481 = vmatprep.subr.mxu0 0.0
    %482 = vmatpush2.msra.mxu0 0.0
    %483 = vmatprep.subr.mxu0 0.0
    %484 = vmatpush2.msra.mxu0 0.0
    %485 = vmatprep.subr.mxu0 0.0
    %486 = vmatpush2.msra.mxu0 0.0
    %487 = vmatprep.subr.mxu0 0.0
    %488 = vmatpush2.msra.mxu0 0.0
    %489 = vmatprep.subr.mxu0 0.0
    %490 = vmatpush2.msra.mxu0 0.0
    %491 = vmatprep.subr.mxu0 0.0
    %492 = vmatpush2.msra.mxu0 0.0
    %493 = vmatprep.subr.mxu0 0.0
    %494 = vmatpush2.msra.mxu0 0.0
    %495 = vmatprep.subr.mxu0 0.0
    %496 = vmatpush2.msra.mxu0 0.0
    %497 = vmatprep.subr.mxu0 0.0
    %498 = vmatpush2.msra.mxu0 0.0
    %499 = vmatprep.subr.mxu0 0.0
    %500 = vmatpush2.msra.mxu0 0.0
    %501 = vmatprep.subr.mxu0 0.0
    %502 = vmatpush2.msra.mxu0 0.0
    %503 = vmatprep.subr.mxu0 0.0
    %504 = vmatpush2.msra.mxu0 0.0
    %505 = vmatprep.subr.mxu0 0.0
    %506 = vmatpush2.msra.mxu0 0.0
    %507 = vmatprep.subr.mxu0 0.0
    %508 = vmatpush2.msra.mxu0 0.0
    %509 = vmatprep.subr.mxu0 0.0
    %510 = vmatpush2.msra.mxu0 0.0
    %511 = vmatprep.subr.mxu0 0.0
    %512 = vmatpush2.msra.mxu0 0.0
    %513 = vmatprep.mubr.f32.mxu0 0.0
    %514 = vmatmul.mubr.f32.gmra.mxu0 %v438
    %v515 = vpop.f32.mrf.mxu0
    %v516 = vadd.f32 %v435, %v515
    %v517 = vpop.f32.mrf.mxu0
    %518 = vmatprep.mubr.f32.mxu0 0.0
    %519 = vmatmul.mubr.f32.gmra.mxu0 %v441
    %v520 = vpop.f32.mrf.mxu0
    %v521 = vadd.f32 %v435, %v520
    %v522 = vpop.f32.mrf.mxu0
    %523 = vmatprep.mubr.f32.mxu0 0.0
    %524 = vmatmul.mubr.f32.gmra.mxu0 %v444
    %v525 = vpop.f32.mrf.mxu0
    %v526 = vadd.f32 %v435, %v525
    %v527 = vpop.f32.mrf.mxu0
    %528 = vmatprep.mubr.f32.mxu0 0.0
    %529 = vmatmul.mubr.f32.gmra.mxu0 %v447
    %v530 = vpop.f32.mrf.mxu0
    %v531 = vadd.f32 %v435, %v530
    %v532 = vpop.f32.mrf.mxu0
    %533 = vdwg.mxu0
    %v534 = vmax.f32 %v516, 0.0
    %v535 = vmax.f32 %v521, 0.0
    %v536 = vmax.f32 %v526, 0.0
    %v537 = vmax.f32 %v531, 0.0
    %538 = vst.msk [vmem:[#allocation2] sm:$0xff] %vm379, %v534
    %539 = vst.msk [vmem:[#allocation2 + $0x8] sm:$0xff] %vm379, %v535
    %540 = vst.msk [vmem:[#allocation2 + $0x10] sm:$0xff] %vm379, %v536
    %541 = vst.msk [vmem:[#allocation2 + $0x18] sm:$0xff] %vm379, %v537
    %v542 = vld [vmem:[#allocation2] ss:$2 sm:$0xff]
    %v543 = vld [vmem:[%s339] ss:$2 sm:$0xff]
    %544 = vst.msk [vmem:[#allocation2] sm:$0xff] %vm379, %v542
    %545 = vst.msk [vmem:[#allocation2 + $0x8] sm:$0xff] %vm379, %v543
    %v546 = vld [vmem:[%s1 + $0x160] sm:$0x1]
    %v547 = vld [vmem:[#allocation2] ss:$8 sm:$0x3]
    %v548 = vld [vmem:[%s1 + $0x60] sm:$0xff]
    %v549 = vld [vmem:[%s1 + $0x68] sm:$0xff]
    %v550 = vld [vmem:[%s1 + $0x70] sm:$0xff]
    %v551 = vld [vmem:[%s1 + $0x78] sm:$0xff]
    %v553 = vsel %vm379, %v547, 0
    %555 = vmatprep.subr.mxu0 0.0
    %556 = vmatpush1.msra.mxu0 0.0
    %557 = vmatprep.subr.mxu0 0.0
    %558 = vmatpush1.msra.mxu0 0.0
    %559 = vmatprep.subr.mxu0 0.0
    %560 = vmatpush1.msra.mxu0 0.0
    %561 = vmatprep.subr.mxu0 0.0
    %562 = vmatpush1.msra.mxu0 0.0
    %563 = vmatprep.subr.mxu0 0.0
    %564 = vmatpush1.msra.mxu0 0.0
    %565 = vmatprep.subr.mxu0 0.0
    %566 = vmatpush1.msra.mxu0 0.0
    %567 = vmatprep.subr.mxu0 0.0
    %568 = vmatpush1.msra.mxu0 0.0
    %569 = vmatprep.subr.mxu0 0.0
    %570 = vmatpush1.msra.mxu0 0.0
    %571 = vmatprep.subr.mxu0 0.0
    %572 = vmatpush1.msra.mxu0 0.0
    %573 = vmatprep.subr.mxu0 0.0
    %574 = vmatpush1.msra.mxu0 0.0
    %575 = vmatprep.subr.mxu0 0.0
    %576 = vmatpush1.msra.mxu0 0.0
    %577 = vmatprep.subr.mxu0 0.0
    %578 = vmatpush1.msra.mxu0 0.0
    %579 = vmatprep.subr.mxu0 0.0
    %580 = vmatpush1.msra.mxu0 %v551
    %581 = vmatprep.subr.mxu0 0.0
    %582 = vmatpush1.msra.mxu0 %v550
    %583 = vmatprep.subr.mxu0 0.0
    %584 = vmatpush1.msra.mxu0 %v549
    %585 = vmatprep.subr.mxu0 0.0
    %586 = vmatpush1.msra.mxu0 %v548
    %587 = vmatprep.subr.mxu0 0.0
    %588 = vmatpush2.msra.mxu0 0.0
    %589 = vmatprep.subr.mxu0 0.0
    %590 = vmatpush2.msra.mxu0 0.0
    %591 = vmatprep.subr.mxu0 0.0
    %592 = vmatpush2.msra.mxu0 0.0
    %593 = vmatprep.subr.mxu0 0.0
    %594 = vmatpush2.msra.mxu0 0.0
    %595 = vmatprep.subr.mxu0 0.0
    %596 = vmatpush2.msra.mxu0 0.0
    %597 = vmatprep.subr.mxu0 0.0
    %598 = vmatpush2.msra.mxu0 0.0
    %599 = vmatprep.subr.mxu0 0.0
    %600 = vmatpush2.msra.mxu0 0.0
    %601 = vmatprep.subr.mxu0 0.0
    %602 = vmatpush2.msra.mxu0 0.0
    %603 = vmatprep.subr.mxu0 0.0
    %604 = vmatpush2.msra.mxu0 0.0
    %605 = vmatprep.subr.mxu0 0.0
    %606 = vmatpush2.msra.mxu0 0.0
    %607 = vmatprep.subr.mxu0 0.0
    %608 = vmatpush2.msra.mxu0 0.0
    %609 = vmatprep.subr.mxu0 0.0
    %610 = vmatpush2.msra.mxu0 0.0
    %611 = vmatprep.subr.mxu0 0.0
    %612 = vmatpush2.msra.mxu0 0.0
    %613 = vmatprep.subr.mxu0 0.0
    %614 = vmatpush2.msra.mxu0 0.0
    %615 = vmatprep.subr.mxu0 0.0
    %616 = vmatpush2.msra.mxu0 0.0
    %617 = vmatprep.subr.mxu0 0.0
    %618 = vmatpush2.msra.mxu0 0.0
    %619 = vmatprep.mubr.f32.mxu0 0.0
    %620 = vmatmul.mubr.f32.gmra.mxu0 %v553
    %v621 = vpop.f32.mrf.mxu0
    %v622 = vadd.f32 0.0, %v621
    %v623 = vpop.f32.mrf.mxu0
    %624 = vdwg.mxu0
    %v625 = vlaneseq
    %v626 = vshrl.u32 %v625, 7
    %v627 = vsub.s32 0, %v626
    %v628 = vrot.slane %v546, %v627
    %v629 = vadd.f32 %v628, %v622
    %s630 = scalar_lea.vmem [#allocation2], 1
    %v631 = vld [vmem:[%s630] ss:$8 sm:$0x3]
    %v632 = vld [vmem:[%s1 + $0x80] sm:$0xff]
    %v633 = vld [vmem:[%s1 + $0x88] sm:$0xff]
    %v634 = vld [vmem:[%s1 + $0x90] sm:$0xff]
    %v635 = vld [vmem:[%s1 + $0x98] sm:$0xff]
    %v637 = vsel %vm379, %v631, 0
    %639 = vmatprep.subr.mxu0 0.0
    %640 = vmatpush1.msra.mxu0 0.0
    %641 = vmatprep.subr.mxu0 0.0
    %642 = vmatpush1.msra.mxu0 0.0
    %643 = vmatprep.subr.mxu0 0.0
    %644 = vmatpush1.msra.mxu0 0.0
    %645 = vmatprep.subr.mxu0 0.0
    %646 = vmatpush1.msra.mxu0 0.0
    %647 = vmatprep.subr.mxu0 0.0
    %648 = vmatpush1.msra.mxu0 0.0
    %649 = vmatprep.subr.mxu0 0.0
    %650 = vmatpush1.msra.mxu0 0.0
    %651 = vmatprep.subr.mxu0 0.0
    %652 = vmatpush1.msra.mxu0 0.0
    %653 = vmatprep.subr.mxu0 0.0
    %654 = vmatpush1.msra.mxu0 0.0
    %655 = vmatprep.subr.mxu0 0.0
    %656 = vmatpush1.msra.mxu0 0.0
    %657 = vmatprep.subr.mxu0 0.0
    %658 = vmatpush1.msra.mxu0 0.0
    %659 = vmatprep.subr.mxu0 0.0
    %660 = vmatpush1.msra.mxu0 0.0
    %661 = vmatprep.subr.mxu0 0.0
    %662 = vmatpush1.msra.mxu0 0.0
    %663 = vmatprep.subr.mxu0 0.0
    %664 = vmatpush1.msra.mxu0 %v635
    %665 = vmatprep.subr.mxu0 0.0
    %666 = vmatpush1.msra.mxu0 %v634
    %667 = vmatprep.subr.mxu0 0.0
    %668 = vmatpush1.msra.mxu0 %v633
    %669 = vmatprep.subr.mxu0 0.0
    %670 = vmatpush1.msra.mxu0 %v632
    %671 = vmatprep.subr.mxu0 0.0
    %672 = vmatpush2.msra.mxu0 0.0
    %673 = vmatprep.subr.mxu0 0.0
    %674 = vmatpush2.msra.mxu0 0.0
    %675 = vmatprep.subr.mxu0 0.0
    %676 = vmatpush2.msra.mxu0 0.0
    %677 = vmatprep.subr.mxu0 0.0
    %678 = vmatpush2.msra.mxu0 0.0
    %679 = vmatprep.subr.mxu0 0.0
    %680 = vmatpush2.msra.mxu0 0.0
    %681 = vmatprep.subr.mxu0 0.0
    %682 = vmatpush2.msra.mxu0 0.0
    %683 = vmatprep.subr.mxu0 0.0
    %684 = vmatpush2.msra.mxu0 0.0
    %685 = vmatprep.subr.mxu0 0.0
    %686 = vmatpush2.msra.mxu0 0.0
    %687 = vmatprep.subr.mxu0 0.0
    %688 = vmatpush2.msra.mxu0 0.0
    %689 = vmatprep.subr.mxu0 0.0
    %690 = vmatpush2.msra.mxu0 0.0
    %691 = vmatprep.subr.mxu0 0.0
    %692 = vmatpush2.msra.mxu0 0.0
    %693 = vmatprep.subr.mxu0 0.0
    %694 = vmatpush2.msra.mxu0 0.0
    %695 = vmatprep.subr.mxu0 0.0
    %696 = vmatpush2.msra.mxu0 0.0
    %697 = vmatprep.subr.mxu0 0.0
    %698 = vmatpush2.msra.mxu0 0.0
    %699 = vmatprep.subr.mxu0 0.0
    %700 = vmatpush2.msra.mxu0 0.0
    %701 = vmatprep.subr.mxu0 0.0
    %702 = vmatpush2.msra.mxu0 0.0
    %703 = vmatprep.mubr.f32.mxu0 0.0
    %704 = vmatmul.mubr.f32.gmra.mxu0 %v637
    %v705 = vpop.f32.mrf.mxu0
    %v706 = vadd.f32 0.0, %v705
    %v707 = vpop.f32.mrf.mxu0
    %708 = vdwg.mxu0
    %v709 = vadd.f32 %v629, %v706
    %s710 = scalar_lea.vmem [#allocation2], 2
    %v711 = vld [vmem:[%s710] ss:$8 sm:$0x3]
    %v712 = vld [vmem:[%s1 + $0xa0] sm:$0xff]
    %v713 = vld [vmem:[%s1 + $0xa8] sm:$0xff]
    %v714 = vld [vmem:[%s1 + $0xb0] sm:$0xff]
    %v715 = vld [vmem:[%s1 + $0xb8] sm:$0xff]
    %v717 = vsel %vm379, %v711, 0
    %719 = vmatprep.subr.mxu0 0.0
    %720 = vmatpush1.msra.mxu0 0.0
    %721 = vmatprep.subr.mxu0 0.0
    %722 = vmatpush1.msra.mxu0 0.0
    %723 = vmatprep.subr.mxu0 0.0
    %724 = vmatpush1.msra.mxu0 0.0
    %725 = vmatprep.subr.mxu0 0.0
    %726 = vmatpush1.msra.mxu0 0.0
    %727 = vmatprep.subr.mxu0 0.0
    %728 = vmatpush1.msra.mxu0 0.0
    %729 = vmatprep.subr.mxu0 0.0
    %730 = vmatpush1.msra.mxu0 0.0
    %731 = vmatprep.subr.mxu0 0.0
    %732 = vmatpush1.msra.mxu0 0.0
    %733 = vmatprep.subr.mxu0 0.0
    %734 = vmatpush1.msra.mxu0 0.0
    %735 = vmatprep.subr.mxu0 0.0
    %736 = vmatpush1.msra.mxu0 0.0
    %737 = vmatprep.subr.mxu0 0.0
    %738 = vmatpush1.msra.mxu0 0.0
    %739 = vmatprep.subr.mxu0 0.0
    %740 = vmatpush1.msra.mxu0 0.0
    %741 = vmatprep.subr.mxu0 0.0
    %742 = vmatpush1.msra.mxu0 0.0
    %743 = vmatprep.subr.mxu0 0.0
    %744 = vmatpush1.msra.mxu0 %v715
    %745 = vmatprep.subr.mxu0 0.0
    %746 = vmatpush1.msra.mxu0 %v714
    %747 = vmatprep.subr.mxu0 0.0
    %748 = vmatpush1.msra.mxu0 %v713
    %749 = vmatprep.subr.mxu0 0.0
    %750 = vmatpush1.msra.mxu0 %v712
    %751 = vmatprep.subr.mxu0 0.0
    %752 = vmatpush2.msra.mxu0 0.0
    %753 = vmatprep.subr.mxu0 0.0
    %754 = vmatpush2.msra.mxu0 0.0
    %755 = vmatprep.subr.mxu0 0.0
    %756 = vmatpush2.msra.mxu0 0.0
    %757 = vmatprep.subr.mxu0 0.0
    %758 = vmatpush2.msra.mxu0 0.0
    %759 = vmatprep.subr.mxu0 0.0
    %760 = vmatpush2.msra.mxu0 0.0
    %761 = vmatprep.subr.mxu0 0.0
    %762 = vmatpush2.msra.mxu0 0.0
    %763 = vmatprep.subr.mxu0 0.0
    %764 = vmatpush2.msra.mxu0 0.0
    %765 = vmatprep.subr.mxu0 0.0
    %766 = vmatpush2.msra.mxu0 0.0
    %767 = vmatprep.subr.mxu0 0.0
    %768 = vmatpush2.msra.mxu0 0.0
    %769 = vmatprep.subr.mxu0 0.0
    %770 = vmatpush2.msra.mxu0 0.0
    %771 = vmatprep.subr.mxu0 0.0
    %772 = vmatpush2.msra.mxu0 0.0
    %773 = vmatprep.subr.mxu0 0.0
    %774 = vmatpush2.msra.mxu0 0.0
    %775 = vmatprep.subr.mxu0 0.0
    %776 = vmatpush2.msra.mxu0 0.0
    %777 = vmatprep.subr.mxu0 0.0
    %778 = vmatpush2.msra.mxu0 0.0
    %779 = vmatprep.subr.mxu0 0.0
    %780 = vmatpush2.msra.mxu0 0.0
    %781 = vmatprep.subr.mxu0 0.0
    %782 = vmatpush2.msra.mxu0 0.0
    %783 = vmatprep.mubr.f32.mxu0 0.0
    %784 = vmatmul.mubr.f32.gmra.mxu0 %v717
    %v785 = vpop.f32.mrf.mxu0
    %v786 = vadd.f32 0.0, %v785
    %v787 = vpop.f32.mrf.mxu0
    %788 = vdwg.mxu0
    %v789 = vadd.f32 %v709, %v786
    %s790 = scalar_lea.vmem [#allocation2], 3
    %v791 = vld [vmem:[%s790] ss:$8 sm:$0x3]
    %v792 = vld [vmem:[%s1 + $0xc0] sm:$0xff]
    %v793 = vld [vmem:[%s1 + $0xc8] sm:$0xff]
    %v794 = vld [vmem:[%s1 + $0xd0] sm:$0xff]
    %v795 = vld [vmem:[%s1 + $0xd8] sm:$0xff]
    %v797 = vsel %vm379, %v791, 0
    %799 = vmatprep.subr.mxu0 0.0
    %800 = vmatpush1.msra.mxu0 0.0
    %801 = vmatprep.subr.mxu0 0.0
    %802 = vmatpush1.msra.mxu0 0.0
    %803 = vmatprep.subr.mxu0 0.0
    %804 = vmatpush1.msra.mxu0 0.0
    %805 = vmatprep.subr.mxu0 0.0
    %806 = vmatpush1.msra.mxu0 0.0
    %807 = vmatprep.subr.mxu0 0.0
    %808 = vmatpush1.msra.mxu0 0.0
    %809 = vmatprep.subr.mxu0 0.0
    %810 = vmatpush1.msra.mxu0 0.0
    %811 = vmatprep.subr.mxu0 0.0
    %812 = vmatpush1.msra.mxu0 0.0
    %813 = vmatprep.subr.mxu0 0.0
    %814 = vmatpush1.msra.mxu0 0.0
    %815 = vmatprep.subr.mxu0 0.0
    %816 = vmatpush1.msra.mxu0 0.0
    %817 = vmatprep.subr.mxu0 0.0
    %818 = vmatpush1.msra.mxu0 0.0
    %819 = vmatprep.subr.mxu0 0.0
    %820 = vmatpush1.msra.mxu0 0.0
    %821 = vmatprep.subr.mxu0 0.0
    %822 = vmatpush1.msra.mxu0 0.0
    %823 = vmatprep.subr.mxu0 0.0
    %824 = vmatpush1.msra.mxu0 %v795
    %825 = vmatprep.subr.mxu0 0.0
    %826 = vmatpush1.msra.mxu0 %v794
    %827 = vmatprep.subr.mxu0 0.0
    %828 = vmatpush1.msra.mxu0 %v793
    %829 = vmatprep.subr.mxu0 0.0
    %830 = vmatpush1.msra.mxu0 %v792
    %831 = vmatprep.subr.mxu0 0.0
    %832 = vmatpush2.msra.mxu0 0.0
    %833 = vmatprep.subr.mxu0 0.0
    %834 = vmatpush2.msra.mxu0 0.0
    %835 = vmatprep.subr.mxu0 0.0
    %836 = vmatpush2.msra.mxu0 0.0
    %837 = vmatprep.subr.mxu0 0.0
    %838 = vmatpush2.msra.mxu0 0.0
    %839 = vmatprep.subr.mxu0 0.0
    %840 = vmatpush2.msra.mxu0 0.0
    %841 = vmatprep.subr.mxu0 0.0
    %842 = vmatpush2.msra.mxu0 0.0
    %843 = vmatprep.subr.mxu0 0.0
    %844 = vmatpush2.msra.mxu0 0.0
    %845 = vmatprep.subr.mxu0 0.0
    %846 = vmatpush2.msra.mxu0 0.0
    %847 = vmatprep.subr.mxu0 0.0
    %848 = vmatpush2.msra.mxu0 0.0
    %849 = vmatprep.subr.mxu0 0.0
    %850 = vmatpush2.msra.mxu0 0.0
    %851 = vmatprep.subr.mxu0 0.0
    %852 = vmatpush2.msra.mxu0 0.0
    %853 = vmatprep.subr.mxu0 0.0
    %854 = vmatpush2.msra.mxu0 0.0
    %855 = vmatprep.subr.mxu0 0.0
    %856 = vmatpush2.msra.mxu0 0.0
    %857 = vmatprep.subr.mxu0 0.0
    %858 = vmatpush2.msra.mxu0 0.0
    %859 = vmatprep.subr.mxu0 0.0
    %860 = vmatpush2.msra.mxu0 0.0
    %861 = vmatprep.subr.mxu0 0.0
    %862 = vmatpush2.msra.mxu0 0.0
    %863 = vmatprep.mubr.f32.mxu0 0.0
    %864 = vmatmul.mubr.f32.gmra.mxu0 %v797
    %v865 = vpop.f32.mrf.mxu0
    %v866 = vadd.f32 0.0, %v865
    %v867 = vpop.f32.mrf.mxu0
    %868 = vdwg.mxu0
    %v869 = vadd.f32 %v789, %v866
    %s870 = scalar_lea.vmem [#allocation2], 4
    %v871 = vld [vmem:[%s870] ss:$8 sm:$0x3]
    %v872 = vld [vmem:[%s1 + $0xe0] sm:$0xff]
    %v873 = vld [vmem:[%s1 + $0xe8] sm:$0xff]
    %v874 = vld [vmem:[%s1 + $0xf0] sm:$0xff]
    %v875 = vld [vmem:[%s1 + $0xf8] sm:$0xff]
    %v877 = vsel %vm379, %v871, 0
    %879 = vmatprep.subr.mxu0 0.0
    %880 = vmatpush1.msra.mxu0 0.0
    %881 = vmatprep.subr.mxu0 0.0
    %882 = vmatpush1.msra.mxu0 0.0
    %883 = vmatprep.subr.mxu0 0.0
    %884 = vmatpush1.msra.mxu0 0.0
    %885 = vmatprep.subr.mxu0 0.0
    %886 = vmatpush1.msra.mxu0 0.0
    %887 = vmatprep.subr.mxu0 0.0
    %888 = vmatpush1.msra.mxu0 0.0
    %889 = vmatprep.subr.mxu0 0.0
    %890 = vmatpush1.msra.mxu0 0.0
    %891 = vmatprep.subr.mxu0 0.0
    %892 = vmatpush1.msra.mxu0 0.0
    %893 = vmatprep.subr.mxu0 0.0
    %894 = vmatpush1.msra.mxu0 0.0
    %895 = vmatprep.subr.mxu0 0.0
    %896 = vmatpush1.msra.mxu0 0.0
    %897 = vmatprep.subr.mxu0 0.0
    %898 = vmatpush1.msra.mxu0 0.0
    %899 = vmatprep.subr.mxu0 0.0
    %900 = vmatpush1.msra.mxu0 0.0
    %901 = vmatprep.subr.mxu0 0.0
    %902 = vmatpush1.msra.mxu0 0.0
    %903 = vmatprep.subr.mxu0 0.0
    %904 = vmatpush1.msra.mxu0 %v875
    %905 = vmatprep.subr.mxu0 0.0
    %906 = vmatpush1.msra.mxu0 %v874
    %907 = vmatprep.subr.mxu0 0.0
    %908 = vmatpush1.msra.mxu0 %v873
    %909 = vmatprep.subr.mxu0 0.0
    %910 = vmatpush1.msra.mxu0 %v872
    %911 = vmatprep.subr.mxu0 0.0
    %912 = vmatpush2.msra.mxu0 0.0
    %913 = vmatprep.subr.mxu0 0.0
    %914 = vmatpush2.msra.mxu0 0.0
    %915 = vmatprep.subr.mxu0 0.0
    %916 = vmatpush2.msra.mxu0 0.0
    %917 = vmatprep.subr.mxu0 0.0
    %918 = vmatpush2.msra.mxu0 0.0
    %919 = vmatprep.subr.mxu0 0.0
    %920 = vmatpush2.msra.mxu0 0.0
    %921 = vmatprep.subr.mxu0 0.0
    %922 = vmatpush2.msra.mxu0 0.0
    %923 = vmatprep.subr.mxu0 0.0
    %924 = vmatpush2.msra.mxu0 0.0
    %925 = vmatprep.subr.mxu0 0.0
    %926 = vmatpush2.msra.mxu0 0.0
    %927 = vmatprep.subr.mxu0 0.0
    %928 = vmatpush2.msra.mxu0 0.0
    %929 = vmatprep.subr.mxu0 0.0
    %930 = vmatpush2.msra.mxu0 0.0
    %931 = vmatprep.subr.mxu0 0.0
    %932 = vmatpush2.msra.mxu0 0.0
    %933 = vmatprep.subr.mxu0 0.0
    %934 = vmatpush2.msra.mxu0 0.0
    %935 = vmatprep.subr.mxu0 0.0
    %936 = vmatpush2.msra.mxu0 0.0
    %937 = vmatprep.subr.mxu0 0.0
    %938 = vmatpush2.msra.mxu0 0.0
    %939 = vmatprep.subr.mxu0 0.0
    %940 = vmatpush2.msra.mxu0 0.0
    %941 = vmatprep.subr.mxu0 0.0
    %942 = vmatpush2.msra.mxu0 0.0
    %943 = vmatprep.mubr.f32.mxu0 0.0
    %944 = vmatmul.mubr.f32.gmra.mxu0 %v877
    %v945 = vpop.f32.mrf.mxu0
    %v946 = vadd.f32 0.0, %v945
    %v947 = vpop.f32.mrf.mxu0
    %948 = vdwg.mxu0
    %v949 = vadd.f32 %v869, %v946
    %s950 = scalar_lea.vmem [#allocation2], 5
    %v951 = vld [vmem:[%s950] ss:$8 sm:$0x3]
    %v952 = vld [vmem:[%s1 + $0x100] sm:$0xff]
    %v953 = vld [vmem:[%s1 + $0x108] sm:$0xff]
    %v954 = vld [vmem:[%s1 + $0x110] sm:$0xff]
    %v955 = vld [vmem:[%s1 + $0x118] sm:$0xff]
    %v957 = vsel %vm379, %v951, 0
    %959 = vmatprep.subr.mxu0 0.0
    %960 = vmatpush1.msra.mxu0 0.0
    %961 = vmatprep.subr.mxu0 0.0
    %962 = vmatpush1.msra.mxu0 0.0
    %963 = vmatprep.subr.mxu0 0.0
    %964 = vmatpush1.msra.mxu0 0.0
    %965 = vmatprep.subr.mxu0 0.0
    %966 = vmatpush1.msra.mxu0 0.0
    %967 = vmatprep.subr.mxu0 0.0
    %968 = vmatpush1.msra.mxu0 0.0
    %969 = vmatprep.subr.mxu0 0.0
    %970 = vmatpush1.msra.mxu0 0.0
    %971 = vmatprep.subr.mxu0 0.0
    %972 = vmatpush1.msra.mxu0 0.0
    %973 = vmatprep.subr.mxu0 0.0
    %974 = vmatpush1.msra.mxu0 0.0
    %975 = vmatprep.subr.mxu0 0.0
    %976 = vmatpush1.msra.mxu0 0.0
    %977 = vmatprep.subr.mxu0 0.0
    %978 = vmatpush1.msra.mxu0 0.0
    %979 = vmatprep.subr.mxu0 0.0
    %980 = vmatpush1.msra.mxu0 0.0
    %981 = vmatprep.subr.mxu0 0.0
    %982 = vmatpush1.msra.mxu0 0.0
    %983 = vmatprep.subr.mxu0 0.0
    %984 = vmatpush1.msra.mxu0 %v955
    %985 = vmatprep.subr.mxu0 0.0
    %986 = vmatpush1.msra.mxu0 %v954
    %987 = vmatprep.subr.mxu0 0.0
    %988 = vmatpush1.msra.mxu0 %v953
    %989 = vmatprep.subr.mxu0 0.0
    %990 = vmatpush1.msra.mxu0 %v952
    %991 = vmatprep.subr.mxu0 0.0
    %992 = vmatpush2.msra.mxu0 0.0
    %993 = vmatprep.subr.mxu0 0.0
    %994 = vmatpush2.msra.mxu0 0.0
    %995 = vmatprep.subr.mxu0 0.0
    %996 = vmatpush2.msra.mxu0 0.0
    %997 = vmatprep.subr.mxu0 0.0
    %998 = vmatpush2.msra.mxu0 0.0
    %999 = vmatprep.subr.mxu0 0.0
    %1000 = vmatpush2.msra.mxu0 0.0
    %1001 = vmatprep.subr.mxu0 0.0
    %1002 = vmatpush2.msra.mxu0 0.0
    %1003 = vmatprep.subr.mxu0 0.0
    %1004 = vmatpush2.msra.mxu0 0.0
    %1005 = vmatprep.subr.mxu0 0.0
    %1006 = vmatpush2.msra.mxu0 0.0
    %1007 = vmatprep.subr.mxu0 0.0
    %1008 = vmatpush2.msra.mxu0 0.0
    %1009 = vmatprep.subr.mxu0 0.0
    %1010 = vmatpush2.msra.mxu0 0.0
    %1011 = vmatprep.subr.mxu0 0.0
    %1012 = vmatpush2.msra.mxu0 0.0
    %1013 = vmatprep.subr.mxu0 0.0
    %1014 = vmatpush2.msra.mxu0 0.0
    %1015 = vmatprep.subr.mxu0 0.0
    %1016 = vmatpush2.msra.mxu0 0.0
    %1017 = vmatprep.subr.mxu0 0.0
    %1018 = vmatpush2.msra.mxu0 0.0
    %1019 = vmatprep.subr.mxu0 0.0
    %1020 = vmatpush2.msra.mxu0 0.0
    %1021 = vmatprep.subr.mxu0 0.0
    %1022 = vmatpush2.msra.mxu0 0.0
    %1023 = vmatprep.mubr.f32.mxu0 0.0
    %1024 = vmatmul.mubr.f32.gmra.mxu0 %v957
    %v1025 = vpop.f32.mrf.mxu0
    %v1026 = vadd.f32 0.0, %v1025
    %v1027 = vpop.f32.mrf.mxu0
    %1028 = vdwg.mxu0
    %v1029 = vadd.f32 %v949, %v1026
    %s1030 = scalar_lea.vmem [#allocation2], 6
    %v1031 = vld [vmem:[%s1030] ss:$8 sm:$0x3]
    %v1032 = vld [vmem:[%s1 + $0x120] sm:$0xff]
    %v1033 = vld [vmem:[%s1 + $0x128] sm:$0xff]
    %v1034 = vld [vmem:[%s1 + $0x130] sm:$0xff]
    %v1035 = vld [vmem:[%s1 + $0x138] sm:$0xff]
    %v1037 = vsel %vm379, %v1031, 0
    %1039 = vmatprep.subr.mxu0 0.0
    %1040 = vmatpush1.msra.mxu0 0.0
    %1041 = vmatprep.subr.mxu0 0.0
    %1042 = vmatpush1.msra.mxu0 0.0
    %1043 = vmatprep.subr.mxu0 0.0
    %1044 = vmatpush1.msra.mxu0 0.0
    %1045 = vmatprep.subr.mxu0 0.0
    %1046 = vmatpush1.msra.mxu0 0.0
    %1047 = vmatprep.subr.mxu0 0.0
    %1048 = vmatpush1.msra.mxu0 0.0
    %1049 = vmatprep.subr.mxu0 0.0
    %1050 = vmatpush1.msra.mxu0 0.0
    %1051 = vmatprep.subr.mxu0 0.0
    %1052 = vmatpush1.msra.mxu0 0.0
    %1053 = vmatprep.subr.mxu0 0.0
    %1054 = vmatpush1.msra.mxu0 0.0
    %1055 = vmatprep.subr.mxu0 0.0
    %1056 = vmatpush1.msra.mxu0 0.0
    %1057 = vmatprep.subr.mxu0 0.0
    %1058 = vmatpush1.msra.mxu0 0.0
    %1059 = vmatprep.subr.mxu0 0.0
    %1060 = vmatpush1.msra.mxu0 0.0
    %1061 = vmatprep.subr.mxu0 0.0
    %1062 = vmatpush1.msra.mxu0 0.0
    %1063 = vmatprep.subr.mxu0 0.0
    %1064 = vmatpush1.msra.mxu0 %v1035
    %1065 = vmatprep.subr.mxu0 0.0
    %1066 = vmatpush1.msra.mxu0 %v1034
    %1067 = vmatprep.subr.mxu0 0.0
    %1068 = vmatpush1.msra.mxu0 %v1033
    %1069 = vmatprep.subr.mxu0 0.0
    %1070 = vmatpush1.msra.mxu0 %v1032
    %1071 = vmatprep.subr.mxu0 0.0
    %1072 = vmatpush2.msra.mxu0 0.0
    %1073 = vmatprep.subr.mxu0 0.0
    %1074 = vmatpush2.msra.mxu0 0.0
    %1075 = vmatprep.subr.mxu0 0.0
    %1076 = vmatpush2.msra.mxu0 0.0
    %1077 = vmatprep.subr.mxu0 0.0
    %1078 = vmatpush2.msra.mxu0 0.0
    %1079 = vmatprep.subr.mxu0 0.0
    %1080 = vmatpush2.msra.mxu0 0.0
    %1081 = vmatprep.subr.mxu0 0.0
    %1082 = vmatpush2.msra.mxu0 0.0
    %1083 = vmatprep.subr.mxu0 0.0
    %1084 = vmatpush2.msra.mxu0 0.0
    %1085 = vmatprep.subr.mxu0 0.0
    %1086 = vmatpush2.msra.mxu0 0.0
    %1087 = vmatprep.subr.mxu0 0.0
    %1088 = vmatpush2.msra.mxu0 0.0
    %1089 = vmatprep.subr.mxu0 0.0
    %1090 = vmatpush2.msra.mxu0 0.0
    %1091 = vmatprep.subr.mxu0 0.0
    %1092 = vmatpush2.msra.mxu0 0.0
    %1093 = vmatprep.subr.mxu0 0.0
    %1094 = vmatpush2.msra.mxu0 0.0
    %1095 = vmatprep.subr.mxu0 0.0
    %1096 = vmatpush2.msra.mxu0 0.0
    %1097 = vmatprep.subr.mxu0 0.0
    %1098 = vmatpush2.msra.mxu0 0.0
    %1099 = vmatprep.subr.mxu0 0.0
    %1100 = vmatpush2.msra.mxu0 0.0
    %1101 = vmatprep.subr.mxu0 0.0
    %1102 = vmatpush2.msra.mxu0 0.0
    %1103 = vmatprep.mubr.f32.mxu0 0.0
    %1104 = vmatmul.mubr.f32.gmra.mxu0 %v1037
    %v1105 = vpop.f32.mrf.mxu0
    %v1106 = vadd.f32 0.0, %v1105
    %v1107 = vpop.f32.mrf.mxu0
    %1108 = vdwg.mxu0
    %v1109 = vadd.f32 %v1029, %v1106
    %s1110 = scalar_lea.vmem [#allocation2], 7
    %v1111 = vld [vmem:[%s1110] ss:$8 sm:$0x3]
    %v1112 = vld [vmem:[%s1 + $0x140] sm:$0xff]
    %v1113 = vld [vmem:[%s1 + $0x148] sm:$0xff]
    %v1114 = vld [vmem:[%s1 + $0x150] sm:$0xff]
    %v1115 = vld [vmem:[%s1 + $0x158] sm:$0xff]
    %v1117 = vsel %vm379, %v1111, 0
    %1119 = vmatprep.subr.mxu0 0.0
    %1120 = vmatpush1.msra.mxu0 0.0
    %1121 = vmatprep.subr.mxu0 0.0
    %1122 = vmatpush1.msra.mxu0 0.0
    %1123 = vmatprep.subr.mxu0 0.0
    %1124 = vmatpush1.msra.mxu0 0.0
    %1125 = vmatprep.subr.mxu0 0.0
    %1126 = vmatpush1.msra.mxu0 0.0
    %1127 = vmatprep.subr.mxu0 0.0
    %1128 = vmatpush1.msra.mxu0 0.0
    %1129 = vmatprep.subr.mxu0 0.0
    %1130 = vmatpush1.msra.mxu0 0.0
    %1131 = vmatprep.subr.mxu0 0.0
    %1132 = vmatpush1.msra.mxu0 0.0
    %1133 = vmatprep.subr.mxu0 0.0
    %1134 = vmatpush1.msra.mxu0 0.0
    %1135 = vmatprep.subr.mxu0 0.0
    %1136 = vmatpush1.msra.mxu0 0.0
    %1137 = vmatprep.subr.mxu0 0.0
    %1138 = vmatpush1.msra.mxu0 0.0
    %1139 = vmatprep.subr.mxu0 0.0
    %1140 = vmatpush1.msra.mxu0 0.0
    %1141 = vmatprep.subr.mxu0 0.0
    %1142 = vmatpush1.msra.mxu0 0.0
    %1143 = vmatprep.subr.mxu0 0.0
    %1144 = vmatpush1.msra.mxu0 %v1115
    %1145 = vmatprep.subr.mxu0 0.0
    %1146 = vmatpush1.msra.mxu0 %v1114
    %1147 = vmatprep.subr.mxu0 0.0
    %1148 = vmatpush1.msra.mxu0 %v1113
    %1149 = vmatprep.subr.mxu0 0.0
    %1150 = vmatpush1.msra.mxu0 %v1112
    %1151 = vmatprep.subr.mxu0 0.0
    %1152 = vmatpush2.msra.mxu0 0.0
    %1153 = vmatprep.subr.mxu0 0.0
    %1154 = vmatpush2.msra.mxu0 0.0
    %1155 = vmatprep.subr.mxu0 0.0
    %1156 = vmatpush2.msra.mxu0 0.0
    %1157 = vmatprep.subr.mxu0 0.0
    %1158 = vmatpush2.msra.mxu0 0.0
    %1159 = vmatprep.subr.mxu0 0.0
    %1160 = vmatpush2.msra.mxu0 0.0
    %1161 = vmatprep.subr.mxu0 0.0
    %1162 = vmatpush2.msra.mxu0 0.0
    %1163 = vmatprep.subr.mxu0 0.0
    %1164 = vmatpush2.msra.mxu0 0.0
    %1165 = vmatprep.subr.mxu0 0.0
    %1166 = vmatpush2.msra.mxu0 0.0
    %1167 = vmatprep.subr.mxu0 0.0
    %1168 = vmatpush2.msra.mxu0 0.0
    %1169 = vmatprep.subr.mxu0 0.0
    %1170 = vmatpush2.msra.mxu0 0.0
    %1171 = vmatprep.subr.mxu0 0.0
    %1172 = vmatpush2.msra.mxu0 0.0
    %1173 = vmatprep.subr.mxu0 0.0
    %1174 = vmatpush2.msra.mxu0 0.0
    %1175 = vmatprep.subr.mxu0 0.0
    %1176 = vmatpush2.msra.mxu0 0.0
    %1177 = vmatprep.subr.mxu0 0.0
    %1178 = vmatpush2.msra.mxu0 0.0
    %1179 = vmatprep.subr.mxu0 0.0
    %1180 = vmatpush2.msra.mxu0 0.0
    %1181 = vmatprep.subr.mxu0 0.0
    %1182 = vmatpush2.msra.mxu0 0.0
    %1183 = vmatprep.mubr.f32.mxu0 0.0
    %1184 = vmatmul.mubr.f32.gmra.mxu0 %v1117
    %v1185 = vpop.f32.mrf.mxu0
    %v1186 = vadd.f32 0.0, %v1185
    %v1187 = vpop.f32.mrf.mxu0
    %1188 = vdwg.mxu0
    %v1189 = vadd.f32 %v1109, %v1186
    %v1190 = vmax.f32 %v1189, 0.0
    %v1191 = vld [vmem:[%s1 + $0x168] sm:$0xff]
    %v1192 = vld [vmem:[%s1 + $0x170] sm:$0xff]
    %v1193 = vld [vmem:[%s1 + $0x178] sm:$0x1]
    %v1194 = vlaneseq
    %v1195 = vshrl.u32 %v1194, 7
    %v1196 = vsub.s32 0, %v1195
    %v1197 = vrot.slane %v1193, %v1196
    %v1199 = vsel %vm329, %v1190, 0
    %1201 = vmatprep.subr.mxu0 0.0
    %1202 = vmatpush1.msra.mxu0 0.0
    %1203 = vmatprep.subr.mxu0 0.0
    %1204 = vmatpush1.msra.mxu0 0.0
    %1205 = vmatprep.subr.mxu0 0.0
    %1206 = vmatpush1.msra.mxu0 0.0
    %1207 = vmatprep.subr.mxu0 0.0
    %1208 = vmatpush1.msra.mxu0 0.0
    %1209 = vmatprep.subr.mxu0 0.0
    %1210 = vmatpush1.msra.mxu0 0.0
    %1211 = vmatprep.subr.mxu0 0.0
    %1212 = vmatpush1.msra.mxu0 0.0
    %1213 = vmatprep.subr.mxu0 0.0
    %1214 = vmatpush1.msra.mxu0 0.0
    %1215 = vmatprep.subr.mxu0 0.0
    %1216 = vmatpush1.msra.mxu0 0.0
    %1217 = vmatprep.subr.mxu0 0.0
    %1218 = vmatpush1.msra.mxu0 0.0
    %1219 = vmatprep.subr.mxu0 0.0
    %1220 = vmatpush1.msra.mxu0 0.0
    %1221 = vmatprep.subr.mxu0 0.0
    %1222 = vmatpush1.msra.mxu0 0.0
    %1223 = vmatprep.subr.mxu0 0.0
    %1224 = vmatpush1.msra.mxu0 0.0
    %1225 = vmatprep.subr.mxu0 0.0
    %1226 = vmatpush1.msra.mxu0 0.0
    %1227 = vmatprep.subr.mxu0 0.0
    %1228 = vmatpush1.msra.mxu0 0.0
    %1229 = vmatprep.subr.mxu0 0.0
    %1230 = vmatpush1.msra.mxu0 %v1192
    %1231 = vmatprep.subr.mxu0 0.0
    %1232 = vmatpush1.msra.mxu0 %v1191
    %1233 = vmatprep.subr.mxu0 0.0
    %1234 = vmatpush2.msra.mxu0 0.0
    %1235 = vmatprep.subr.mxu0 0.0
    %1236 = vmatpush2.msra.mxu0 0.0
    %1237 = vmatprep.subr.mxu0 0.0
    %1238 = vmatpush2.msra.mxu0 0.0
    %1239 = vmatprep.subr.mxu0 0.0
    %1240 = vmatpush2.msra.mxu0 0.0
    %1241 = vmatprep.subr.mxu0 0.0
    %1242 = vmatpush2.msra.mxu0 0.0
    %1243 = vmatprep.subr.mxu0 0.0
    %1244 = vmatpush2.msra.mxu0 0.0
    %1245 = vmatprep.subr.mxu0 0.0
    %1246 = vmatpush2.msra.mxu0 0.0
    %1247 = vmatprep.subr.mxu0 0.0
    %1248 = vmatpush2.msra.mxu0 0.0
    %1249 = vmatprep.subr.mxu0 0.0
    %1250 = vmatpush2.msra.mxu0 0.0
    %1251 = vmatprep.subr.mxu0 0.0
    %1252 = vmatpush2.msra.mxu0 0.0
    %1253 = vmatprep.subr.mxu0 0.0
    %1254 = vmatpush2.msra.mxu0 0.0
    %1255 = vmatprep.subr.mxu0 0.0
    %1256 = vmatpush2.msra.mxu0 0.0
    %1257 = vmatprep.subr.mxu0 0.0
    %1258 = vmatpush2.msra.mxu0 0.0
    %1259 = vmatprep.subr.mxu0 0.0
    %1260 = vmatpush2.msra.mxu0 0.0
    %1261 = vmatprep.subr.mxu0 0.0
    %1262 = vmatpush2.msra.mxu0 0.0
    %1263 = vmatprep.subr.mxu0 0.0
    %1264 = vmatpush2.msra.mxu0 0.0
    %1265 = vmatprep.mubr.f32.mxu0 0.0
    %1266 = vmatmul.mubr.f32.gmra.mxu0 %v1199
    %v1267 = vpop.f32.mrf.mxu0
    %v1268 = vadd.f32 %v1197, %v1267
    %v1269 = vpop.f32.mrf.mxu0
    %1270 = vdwg.mxu0
    %v1271 = vmax.f32 %v1268, 0.0
    %v1272 = vld [vmem:[%s1 + $0x180] sm:$0xff]
    %v1273 = vld [vmem:[%s1 + $0x188] sm:$0xff]
    %v1274 = vld [vmem:[%s1 + $0x190] sm:$0x1]
    %v1275 = vlaneseq
    %v1276 = vshrl.u32 %v1275, 7
    %v1277 = vsub.s32 0, %v1276
    %v1278 = vrot.slane %v1274, %v1277
    %v1280 = vsel %vm329, %v1271, 0
    %1282 = vmatprep.subr.mxu0 0.0
    %1283 = vmatpush1.msra.mxu0 0.0
    %1284 = vmatprep.subr.mxu0 0.0
    %1285 = vmatpush1.msra.mxu0 0.0
    %1286 = vmatprep.subr.mxu0 0.0
    %1287 = vmatpush1.msra.mxu0 0.0
    %1288 = vmatprep.subr.mxu0 0.0
    %1289 = vmatpush1.msra.mxu0 0.0
    %1290 = vmatprep.subr.mxu0 0.0
    %1291 = vmatpush1.msra.mxu0 0.0
    %1292 = vmatprep.subr.mxu0 0.0
    %1293 = vmatpush1.msra.mxu0 0.0
    %1294 = vmatprep.subr.mxu0 0.0
    %1295 = vmatpush1.msra.mxu0 0.0
    %1296 = vmatprep.subr.mxu0 0.0
    %1297 = vmatpush1.msra.mxu0 0.0
    %1298 = vmatprep.subr.mxu0 0.0
    %1299 = vmatpush1.msra.mxu0 0.0
    %1300 = vmatprep.subr.mxu0 0.0
    %1301 = vmatpush1.msra.mxu0 0.0
    %1302 = vmatprep.subr.mxu0 0.0
    %1303 = vmatpush1.msra.mxu0 0.0
    %1304 = vmatprep.subr.mxu0 0.0
    %1305 = vmatpush1.msra.mxu0 0.0
    %1306 = vmatprep.subr.mxu0 0.0
    %1307 = vmatpush1.msra.mxu0 0.0
    %1308 = vmatprep.subr.mxu0 0.0
    %1309 = vmatpush1.msra.mxu0 0.0
    %1310 = vmatprep.subr.mxu0 0.0
    %1311 = vmatpush1.msra.mxu0 %v1273
    %1312 = vmatprep.subr.mxu0 0.0
    %1313 = vmatpush1.msra.mxu0 %v1272
    %1314 = vmatprep.subr.mxu0 0.0
    %1315 = vmatpush2.msra.mxu0 0.0
    %1316 = vmatprep.subr.mxu0 0.0
    %1317 = vmatpush2.msra.mxu0 0.0
    %1318 = vmatprep.subr.mxu0 0.0
    %1319 = vmatpush2.msra.mxu0 0.0
    %1320 = vmatprep.subr.mxu0 0.0
    %1321 = vmatpush2.msra.mxu0 0.0
    %1322 = vmatprep.subr.mxu0 0.0
    %1323 = vmatpush2.msra.mxu0 0.0
    %1324 = vmatprep.subr.mxu0 0.0
    %1325 = vmatpush2.msra.mxu0 0.0
    %1326 = vmatprep.subr.mxu0 0.0
    %1327 = vmatpush2.msra.mxu0 0.0
    %1328 = vmatprep.subr.mxu0 0.0
    %1329 = vmatpush2.msra.mxu0 0.0
    %1330 = vmatprep.subr.mxu0 0.0
    %1331 = vmatpush2.msra.mxu0 0.0
    %1332 = vmatprep.subr.mxu0 0.0
    %1333 = vmatpush2.msra.mxu0 0.0
    %1334 = vmatprep.subr.mxu0 0.0
    %1335 = vmatpush2.msra.mxu0 0.0
    %1336 = vmatprep.subr.mxu0 0.0
    %1337 = vmatpush2.msra.mxu0 0.0
    %1338 = vmatprep.subr.mxu0 0.0
    %1339 = vmatpush2.msra.mxu0 0.0
    %1340 = vmatprep.subr.mxu0 0.0
    %1341 = vmatpush2.msra.mxu0 0.0
    %1342 = vmatprep.subr.mxu0 0.0
    %1343 = vmatpush2.msra.mxu0 0.0
    %1344 = vmatprep.subr.mxu0 0.0
    %1345 = vmatpush2.msra.mxu0 0.0
    %1346 = vmatprep.mubr.f32.mxu0 0.0
    %1347 = vmatmul.mubr.f32.gmra.mxu0 %v1280
    %v1348 = vpop.f32.mrf.mxu0
    %v1349 = vadd.f32 %v1278, %v1348
    %v1350 = vpop.f32.mrf.mxu0
    %1351 = vdwg.mxu0
    %v1352 = vtanh.pop %v1349
    %vm1353 = vcmask 58368
    %1354 = vst.msk [vmem:[#allocation3] sm:$0x3] %vm1353, %v1352
    %v1355 = vld [vmem:[%s1 + $0x198] sm:$0xff]
    %v1356 = vld [vmem:[%s1 + $0x1a0] sm:$0x1]
    %v1357 = vlaneseq
    %v1358 = vshrl.u32 %v1357, 7
    %v1359 = vsub.s32 0, %v1358
    %v1360 = vrot.slane %v1356, %v1359
    %vm1361 = vcmask 64512
    %v1363 = vsel %vm1361, %v1352, 0
    %1365 = vmatprep.subr.mxu0 0.0
    %1366 = vmatpush1.msra.mxu0 0.0
    %1367 = vmatprep.subr.mxu0 0.0
    %1368 = vmatpush1.msra.mxu0 0.0
    %1369 = vmatprep.subr.mxu0 0.0
    %1370 = vmatpush1.msra.mxu0 0.0
    %1371 = vmatprep.subr.mxu0 0.0
    %1372 = vmatpush1.msra.mxu0 0.0
    %1373 = vmatprep.subr.mxu0 0.0
    %1374 = vmatpush1.msra.mxu0 0.0
    %1375 = vmatprep.subr.mxu0 0.0
    %1376 = vmatpush1.msra.mxu0 0.0
    %1377 = vmatprep.subr.mxu0 0.0
    %1378 = vmatpush1.msra.mxu0 0.0
    %1379 = vmatprep.subr.mxu0 0.0
    %1380 = vmatpush1.msra.mxu0 0.0
    %1381 = vmatprep.subr.mxu0 0.0
    %1382 = vmatpush1.msra.mxu0 0.0
    %1383 = vmatprep.subr.mxu0 0.0
    %1384 = vmatpush1.msra.mxu0 0.0
    %1385 = vmatprep.subr.mxu0 0.0
    %1386 = vmatpush1.msra.mxu0 0.0
    %1387 = vmatprep.subr.mxu0 0.0
    %1388 = vmatpush1.msra.mxu0 0.0
    %1389 = vmatprep.subr.mxu0 0.0
    %1390 = vmatpush1.msra.mxu0 0.0
    %1391 = vmatprep.subr.mxu0 0.0
    %1392 = vmatpush1.msra.mxu0 0.0
    %1393 = vmatprep.subr.mxu0 0.0
    %1394 = vmatpush1.msra.mxu0 0.0
    %1395 = vmatprep.subr.mxu0 0.0
    %1396 = vmatpush1.msra.mxu0 %v1355
    %1397 = vmatprep.subr.mxu0 0.0
    %1398 = vmatpush2.msra.mxu0 0.0
    %1399 = vmatprep.subr.mxu0 0.0
    %1400 = vmatpush2.msra.mxu0 0.0
    %1401 = vmatprep.subr.mxu0 0.0
    %1402 = vmatpush2.msra.mxu0 0.0
    %1403 = vmatprep.subr.mxu0 0.0
    %1404 = vmatpush2.msra.mxu0 0.0
    %1405 = vmatprep.subr.mxu0 0.0
    %1406 = vmatpush2.msra.mxu0 0.0
    %1407 = vmatprep.subr.mxu0 0.0
    %1408 = vmatpush2.msra.mxu0 0.0
    %1409 = vmatprep.subr.mxu0 0.0
    %1410 = vmatpush2.msra.mxu0 0.0
    %1411 = vmatprep.subr.mxu0 0.0
    %1412 = vmatpush2.msra.mxu0 0.0
    %1413 = vmatprep.subr.mxu0 0.0
    %1414 = vmatpush2.msra.mxu0 0.0
    %1415 = vmatprep.subr.mxu0 0.0
    %1416 = vmatpush2.msra.mxu0 0.0
    %1417 = vmatprep.subr.mxu0 0.0
    %1418 = vmatpush2.msra.mxu0 0.0
    %1419 = vmatprep.subr.mxu0 0.0
    %1420 = vmatpush2.msra.mxu0 0.0
    %1421 = vmatprep.subr.mxu0 0.0
    %1422 = vmatpush2.msra.mxu0 0.0
    %1423 = vmatprep.subr.mxu0 0.0
    %1424 = vmatpush2.msra.mxu0 0.0
    %1425 = vmatprep.subr.mxu0 0.0
    %1426 = vmatpush2.msra.mxu0 0.0
    %1427 = vmatprep.subr.mxu0 0.0
    %1428 = vmatpush2.msra.mxu0 0.0
    %1429 = vmatprep.mubr.f32.mxu0 0.0
    %1430 = vmatmul.mubr.f32.gmra.mxu0 %v1363
    %v1431 = vpop.f32.mrf.mxu0
    %v1432 = vadd.f32 %v1360, %v1431
    %v1433 = vpop.f32.mrf.mxu0
    %1434 = vdwg.mxu0
    %v1435 = vmax.f32 %v1432, 0.0
    %v1436 = vld [vmem:[%s1 + $0x1a8] sm:$0xff]
    %v1437 = vld [vmem:[%s1 + $0x1b0] sm:$0xff]
    %v1438 = vld [vmem:[%s1 + $0x1b8] sm:$0x1]
    %v1439 = vlaneseq
    %v1440 = vshrl.u32 %v1439, 7
    %v1441 = vsub.s32 0, %v1440
    %v1442 = vrot.slane %v1438, %v1441
    %v1444 = vsel %vm329, %v1435, 0
    %1446 = vmatprep.subr.mxu0 0.0
    %1447 = vmatpush1.msra.mxu0 0.0
    %1448 = vmatprep.subr.mxu0 0.0
    %1449 = vmatpush1.msra.mxu0 0.0
    %1450 = vmatprep.subr.mxu0 0.0
    %1451 = vmatpush1.msra.mxu0 0.0
    %1452 = vmatprep.subr.mxu0 0.0
    %1453 = vmatpush1.msra.mxu0 0.0
    %1454 = vmatprep.subr.mxu0 0.0
    %1455 = vmatpush1.msra.mxu0 0.0
    %1456 = vmatprep.subr.mxu0 0.0
    %1457 = vmatpush1.msra.mxu0 0.0
    %1458 = vmatprep.subr.mxu0 0.0
    %1459 = vmatpush1.msra.mxu0 0.0
    %1460 = vmatprep.subr.mxu0 0.0
    %1461 = vmatpush1.msra.mxu0 0.0
    %1462 = vmatprep.subr.mxu0 0.0
    %1463 = vmatpush1.msra.mxu0 0.0
    %1464 = vmatprep.subr.mxu0 0.0
    %1465 = vmatpush1.msra.mxu0 0.0
    %1466 = vmatprep.subr.mxu0 0.0
    %1467 = vmatpush1.msra.mxu0 0.0
    %1468 = vmatprep.subr.mxu0 0.0
    %1469 = vmatpush1.msra.mxu0 0.0
    %1470 = vmatprep.subr.mxu0 0.0
    %1471 = vmatpush1.msra.mxu0 0.0
    %1472 = vmatprep.subr.mxu0 0.0
    %1473 = vmatpush1.msra.mxu0 0.0
    %1474 = vmatprep.subr.mxu0 0.0
    %1475 = vmatpush1.msra.mxu0 %v1437
    %1476 = vmatprep.subr.mxu0 0.0
    %1477 = vmatpush1.msra.mxu0 %v1436
    %1478 = vmatprep.subr.mxu0 0.0
    %1479 = vmatpush2.msra.mxu0 0.0
    %1480 = vmatprep.subr.mxu0 0.0
    %1481 = vmatpush2.msra.mxu0 0.0
    %1482 = vmatprep.subr.mxu0 0.0
    %1483 = vmatpush2.msra.mxu0 0.0
    %1484 = vmatprep.subr.mxu0 0.0
    %1485 = vmatpush2.msra.mxu0 0.0
    %1486 = vmatprep.subr.mxu0 0.0
    %1487 = vmatpush2.msra.mxu0 0.0
    %1488 = vmatprep.subr.mxu0 0.0
    %1489 = vmatpush2.msra.mxu0 0.0
    %1490 = vmatprep.subr.mxu0 0.0
    %1491 = vmatpush2.msra.mxu0 0.0
    %1492 = vmatprep.subr.mxu0 0.0
    %1493 = vmatpush2.msra.mxu0 0.0
    %1494 = vmatprep.subr.mxu0 0.0
    %1495 = vmatpush2.msra.mxu0 0.0
    %1496 = vmatprep.subr.mxu0 0.0
    %1497 = vmatpush2.msra.mxu0 0.0
    %1498 = vmatprep.subr.mxu0 0.0
    %1499 = vmatpush2.msra.mxu0 0.0
    %1500 = vmatprep.subr.mxu0 0.0
    %1501 = vmatpush2.msra.mxu0 0.0
    %1502 = vmatprep.subr.mxu0 0.0
    %1503 = vmatpush2.msra.mxu0 0.0
    %1504 = vmatprep.subr.mxu0 0.0
    %1505 = vmatpush2.msra.mxu0 0.0
    %1506 = vmatprep.subr.mxu0 0.0
    %1507 = vmatpush2.msra.mxu0 0.0
    %1508 = vmatprep.subr.mxu0 0.0
    %1509 = vmatpush2.msra.mxu0 0.0
    %1510 = vmatprep.mubr.f32.mxu0 0.0
    %1511 = vmatmul.mubr.f32.gmra.mxu0 %v1444
    %v1512 = vpop.f32.mrf.mxu0
    %v1513 = vadd.f32 %v1442, %v1512
    %v1514 = vpop.f32.mrf.mxu0
    %1515 = vdwg.mxu0
    %v1516 = vmax.f32 %v1513, 0.0
    %v1517 = vld [vmem:[%s1 + $0x1c0] sm:$0xff]
    %v1518 = vld [vmem:[%s1 + $0x1c8] sm:$0xff]
    %v1519 = vld [vmem:[%s1 + $0x240] sm:$0x1]
    %v1520 = vlaneseq
    %v1521 = vshrl.u32 %v1520, 7
    %v1522 = vsub.s32 0, %v1521
    %v1523 = vrot.slane %v1519, %v1522
    %v1525 = vsel %vm329, %v1516, 0
    %1527 = vmatprep.subr.mxu0 0.0
    %1528 = vmatpush1.msra.mxu0 0.0
    %1529 = vmatprep.subr.mxu0 0.0
    %1530 = vmatpush1.msra.mxu0 0.0
    %1531 = vmatprep.subr.mxu0 0.0
    %1532 = vmatpush1.msra.mxu0 0.0
    %1533 = vmatprep.subr.mxu0 0.0
    %1534 = vmatpush1.msra.mxu0 0.0
    %1535 = vmatprep.subr.mxu0 0.0
    %1536 = vmatpush1.msra.mxu0 0.0
    %1537 = vmatprep.subr.mxu0 0.0
    %1538 = vmatpush1.msra.mxu0 0.0
    %1539 = vmatprep.subr.mxu0 0.0
    %1540 = vmatpush1.msra.mxu0 0.0
    %1541 = vmatprep.subr.mxu0 0.0
    %1542 = vmatpush1.msra.mxu0 0.0
    %1543 = vmatprep.subr.mxu0 0.0
    %1544 = vmatpush1.msra.mxu0 0.0
    %1545 = vmatprep.subr.mxu0 0.0
    %1546 = vmatpush1.msra.mxu0 0.0
    %1547 = vmatprep.subr.mxu0 0.0
    %1548 = vmatpush1.msra.mxu0 0.0
    %1549 = vmatprep.subr.mxu0 0.0
    %1550 = vmatpush1.msra.mxu0 0.0
    %1551 = vmatprep.subr.mxu0 0.0
    %1552 = vmatpush1.msra.mxu0 0.0
    %1553 = vmatprep.subr.mxu0 0.0
    %1554 = vmatpush1.msra.mxu0 0.0
    %1555 = vmatprep.subr.mxu0 0.0
    %1556 = vmatpush1.msra.mxu0 %v1518
    %1557 = vmatprep.subr.mxu0 0.0
    %1558 = vmatpush1.msra.mxu0 %v1517
    %1559 = vmatprep.subr.mxu0 0.0
    %1560 = vmatpush2.msra.mxu0 0.0
    %1561 = vmatprep.subr.mxu0 0.0
    %1562 = vmatpush2.msra.mxu0 0.0
    %1563 = vmatprep.subr.mxu0 0.0
    %1564 = vmatpush2.msra.mxu0 0.0
    %1565 = vmatprep.subr.mxu0 0.0
    %1566 = vmatpush2.msra.mxu0 0.0
    %1567 = vmatprep.subr.mxu0 0.0
    %1568 = vmatpush2.msra.mxu0 0.0
    %1569 = vmatprep.subr.mxu0 0.0
    %1570 = vmatpush2.msra.mxu0 0.0
    %1571 = vmatprep.subr.mxu0 0.0
    %1572 = vmatpush2.msra.mxu0 0.0
    %1573 = vmatprep.subr.mxu0 0.0
    %1574 = vmatpush2.msra.mxu0 0.0
    %1575 = vmatprep.subr.mxu0 0.0
    %1576 = vmatpush2.msra.mxu0 0.0
    %1577 = vmatprep.subr.mxu0 0.0
    %1578 = vmatpush2.msra.mxu0 0.0
    %1579 = vmatprep.subr.mxu0 0.0
    %1580 = vmatpush2.msra.mxu0 0.0
    %1581 = vmatprep.subr.mxu0 0.0
    %1582 = vmatpush2.msra.mxu0 0.0
    %1583 = vmatprep.subr.mxu0 0.0
    %1584 = vmatpush2.msra.mxu0 0.0
    %1585 = vmatprep.subr.mxu0 0.0
    %1586 = vmatpush2.msra.mxu0 0.0
    %1587 = vmatprep.subr.mxu0 0.0
    %1588 = vmatpush2.msra.mxu0 0.0
    %1589 = vmatprep.subr.mxu0 0.0
    %1590 = vmatpush2.msra.mxu0 0.0
    %1591 = vmatprep.mubr.f32.mxu0 0.0
    %1592 = vmatmul.mubr.f32.gmra.mxu0 %v1525
    %v1593 = vpop.f32.mrf.mxu0
    %v1594 = vadd.f32 %v1523, %v1593
    %v1595 = vpop.f32.mrf.mxu0
    %1596 = vdwg.mxu0
    %v1597 = vmax.f32 %v1594, 0.0
    %1598 = vst [vmem:[#allocation2] ss:$8 sm:$0x3] %v1597
    %1599 = vst [vmem:[#allocation2] ss:$8 sm:$0x0] %v1597
    %v1600 = vld [vmem:[%s1 + $0x1d0] sm:$0xff]
    %v1601 = vld [vmem:[%s1 + $0x1d8] sm:$0xff]
    %v1602 = vld [vmem:[%s1 + $0x241] sm:$0x1]
    %v1603 = vlaneseq
    %v1604 = vshrl.u32 %v1603, 7
    %v1605 = vsub.s32 0, %v1604
    %v1606 = vrot.slane %v1602, %v1605
    %1607 = vmatprep.subr.mxu0 0.0
    %1608 = vmatpush1.msra.mxu0 0.0
    %1609 = vmatprep.subr.mxu0 0.0
    %1610 = vmatpush1.msra.mxu0 0.0
    %1611 = vmatprep.subr.mxu0 0.0
    %1612 = vmatpush1.msra.mxu0 0.0
    %1613 = vmatprep.subr.mxu0 0.0
    %1614 = vmatpush1.msra.mxu0 0.0
    %1615 = vmatprep.subr.mxu0 0.0
    %1616 = vmatpush1.msra.mxu0 0.0
    %1617 = vmatprep.subr.mxu0 0.0
    %1618 = vmatpush1.msra.mxu0 0.0
    %1619 = vmatprep.subr.mxu0 0.0
    %1620 = vmatpush1.msra.mxu0 0.0
    %1621 = vmatprep.subr.mxu0 0.0
    %1622 = vmatpush1.msra.mxu0 0.0
    %1623 = vmatprep.subr.mxu0 0.0
    %1624 = vmatpush1.msra.mxu0 0.0
    %1625 = vmatprep.subr.mxu0 0.0
    %1626 = vmatpush1.msra.mxu0 0.0
    %1627 = vmatprep.subr.mxu0 0.0
    %1628 = vmatpush1.msra.mxu0 0.0
    %1629 = vmatprep.subr.mxu0 0.0
    %1630 = vmatpush1.msra.mxu0 0.0
    %1631 = vmatprep.subr.mxu0 0.0
    %1632 = vmatpush1.msra.mxu0 0.0
    %1633 = vmatprep.subr.mxu0 0.0
    %1634 = vmatpush1.msra.mxu0 0.0
    %1635 = vmatprep.subr.mxu0 0.0
    %1636 = vmatpush1.msra.mxu0 %v1601
    %1637 = vmatprep.subr.mxu0 0.0
    %1638 = vmatpush1.msra.mxu0 %v1600
    %1639 = vmatprep.subr.mxu0 0.0
    %1640 = vmatpush2.msra.mxu0 0.0
    %1641 = vmatprep.subr.mxu0 0.0
    %1642 = vmatpush2.msra.mxu0 0.0
    %1643 = vmatprep.subr.mxu0 0.0
    %1644 = vmatpush2.msra.mxu0 0.0
    %1645 = vmatprep.subr.mxu0 0.0
    %1646 = vmatpush2.msra.mxu0 0.0
    %1647 = vmatprep.subr.mxu0 0.0
    %1648 = vmatpush2.msra.mxu0 0.0
    %1649 = vmatprep.subr.mxu0 0.0
    %1650 = vmatpush2.msra.mxu0 0.0
    %1651 = vmatprep.subr.mxu0 0.0
    %1652 = vmatpush2.msra.mxu0 0.0
    %1653 = vmatprep.subr.mxu0 0.0
    %1654 = vmatpush2.msra.mxu0 0.0
    %1655 = vmatprep.subr.mxu0 0.0
    %1656 = vmatpush2.msra.mxu0 0.0
    %1657 = vmatprep.subr.mxu0 0.0
    %1658 = vmatpush2.msra.mxu0 0.0
    %1659 = vmatprep.subr.mxu0 0.0
    %1660 = vmatpush2.msra.mxu0 0.0
    %1661 = vmatprep.subr.mxu0 0.0
    %1662 = vmatpush2.msra.mxu0 0.0
    %1663 = vmatprep.subr.mxu0 0.0
    %1664 = vmatpush2.msra.mxu0 0.0
    %1665 = vmatprep.subr.mxu0 0.0
    %1666 = vmatpush2.msra.mxu0 0.0
    %1667 = vmatprep.subr.mxu0 0.0
    %1668 = vmatpush2.msra.mxu0 0.0
    %1669 = vmatprep.subr.mxu0 0.0
    %1670 = vmatpush2.msra.mxu0 0.0
    %1671 = vmatprep.mubr.f32.mxu0 0.0
    %1672 = vmatmul.mubr.f32.gmra.mxu0 %v1525
    %v1673 = vpop.f32.mrf.mxu0
    %v1674 = vadd.f32 %v1606, %v1673
    %v1675 = vpop.f32.mrf.mxu0
    %1676 = vdwg.mxu0
    %v1677 = vmax.f32 %v1674, 0.0
    %1678 = vst [vmem:[%s630] ss:$8 sm:$0x3] %v1677
    %1679 = vst [vmem:[%s630] ss:$8 sm:$0x0] %v1677
    %v1680 = vld [vmem:[%s1 + $0x1e0] sm:$0xff]
    %v1681 = vld [vmem:[%s1 + $0x1e8] sm:$0xff]
    %v1682 = vld [vmem:[%s1 + $0x242] sm:$0x1]
    %v1683 = vlaneseq
    %v1684 = vshrl.u32 %v1683, 7
    %v1685 = vsub.s32 0, %v1684
    %v1686 = vrot.slane %v1682, %v1685
    %1687 = vmatprep.subr.mxu0 0.0
    %1688 = vmatpush1.msra.mxu0 0.0
    %1689 = vmatprep.subr.mxu0 0.0
    %1690 = vmatpush1.msra.mxu0 0.0
    %1691 = vmatprep.subr.mxu0 0.0
    %1692 = vmatpush1.msra.mxu0 0.0
    %1693 = vmatprep.subr.mxu0 0.0
    %1694 = vmatpush1.msra.mxu0 0.0
    %1695 = vmatprep.subr.mxu0 0.0
    %1696 = vmatpush1.msra.mxu0 0.0
    %1697 = vmatprep.subr.mxu0 0.0
    %1698 = vmatpush1.msra.mxu0 0.0
    %1699 = vmatprep.subr.mxu0 0.0
    %1700 = vmatpush1.msra.mxu0 0.0
    %1701 = vmatprep.subr.mxu0 0.0
    %1702 = vmatpush1.msra.mxu0 0.0
    %1703 = vmatprep.subr.mxu0 0.0
    %1704 = vmatpush1.msra.mxu0 0.0
    %1705 = vmatprep.subr.mxu0 0.0
    %1706 = vmatpush1.msra.mxu0 0.0
    %1707 = vmatprep.subr.mxu0 0.0
    %1708 = vmatpush1.msra.mxu0 0.0
    %1709 = vmatprep.subr.mxu0 0.0
    %1710 = vmatpush1.msra.mxu0 0.0
    %1711 = vmatprep.subr.mxu0 0.0
    %1712 = vmatpush1.msra.mxu0 0.0
    %1713 = vmatprep.subr.mxu0 0.0
    %1714 = vmatpush1.msra.mxu0 0.0
    %1715 = vmatprep.subr.mxu0 0.0
    %1716 = vmatpush1.msra.mxu0 %v1681
    %1717 = vmatprep.subr.mxu0 0.0
    %1718 = vmatpush1.msra.mxu0 %v1680
    %1719 = vmatprep.subr.mxu0 0.0
    %1720 = vmatpush2.msra.mxu0 0.0
    %1721 = vmatprep.subr.mxu0 0.0
    %1722 = vmatpush2.msra.mxu0 0.0
    %1723 = vmatprep.subr.mxu0 0.0
    %1724 = vmatpush2.msra.mxu0 0.0
    %1725 = vmatprep.subr.mxu0 0.0
    %1726 = vmatpush2.msra.mxu0 0.0
    %1727 = vmatprep.subr.mxu0 0.0
    %1728 = vmatpush2.msra.mxu0 0.0
    %1729 = vmatprep.subr.mxu0 0.0
    %1730 = vmatpush2.msra.mxu0 0.0
    %1731 = vmatprep.subr.mxu0 0.0
    %1732 = vmatpush2.msra.mxu0 0.0
    %1733 = vmatprep.subr.mxu0 0.0
    %1734 = vmatpush2.msra.mxu0 0.0
    %1735 = vmatprep.subr.mxu0 0.0
    %1736 = vmatpush2.msra.mxu0 0.0
    %1737 = vmatprep.subr.mxu0 0.0
    %1738 = vmatpush2.msra.mxu0 0.0
    %1739 = vmatprep.subr.mxu0 0.0
    %1740 = vmatpush2.msra.mxu0 0.0
    %1741 = vmatprep.subr.mxu0 0.0
    %1742 = vmatpush2.msra.mxu0 0.0
    %1743 = vmatprep.subr.mxu0 0.0
    %1744 = vmatpush2.msra.mxu0 0.0
    %1745 = vmatprep.subr.mxu0 0.0
    %1746 = vmatpush2.msra.mxu0 0.0
    %1747 = vmatprep.subr.mxu0 0.0
    %1748 = vmatpush2.msra.mxu0 0.0
    %1749 = vmatprep.subr.mxu0 0.0
    %1750 = vmatpush2.msra.mxu0 0.0
    %1751 = vmatprep.mubr.f32.mxu0 0.0
    %1752 = vmatmul.mubr.f32.gmra.mxu0 %v1525
    %v1753 = vpop.f32.mrf.mxu0
    %v1754 = vadd.f32 %v1686, %v1753
    %v1755 = vpop.f32.mrf.mxu0
    %1756 = vdwg.mxu0
    %v1757 = vmax.f32 %v1754, 0.0
    %1758 = vst [vmem:[%s710] ss:$8 sm:$0x3] %v1757
    %1759 = vst [vmem:[%s710] ss:$8 sm:$0x0] %v1757
    %v1760 = vld [vmem:[%s1 + $0x1f0] sm:$0xff]
    %v1761 = vld [vmem:[%s1 + $0x1f8] sm:$0xff]
    %v1762 = vld [vmem:[%s1 + $0x243] sm:$0x1]
    %v1763 = vlaneseq
    %v1764 = vshrl.u32 %v1763, 7
    %v1765 = vsub.s32 0, %v1764
    %v1766 = vrot.slane %v1762, %v1765
    %1767 = vmatprep.subr.mxu0 0.0
    %1768 = vmatpush1.msra.mxu0 0.0
    %1769 = vmatprep.subr.mxu0 0.0
    %1770 = vmatpush1.msra.mxu0 0.0
    %1771 = vmatprep.subr.mxu0 0.0
    %1772 = vmatpush1.msra.mxu0 0.0
    %1773 = vmatprep.subr.mxu0 0.0
    %1774 = vmatpush1.msra.mxu0 0.0
    %1775 = vmatprep.subr.mxu0 0.0
    %1776 = vmatpush1.msra.mxu0 0.0
    %1777 = vmatprep.subr.mxu0 0.0
    %1778 = vmatpush1.msra.mxu0 0.0
    %1779 = vmatprep.subr.mxu0 0.0
    %1780 = vmatpush1.msra.mxu0 0.0
    %1781 = vmatprep.subr.mxu0 0.0
    %1782 = vmatpush1.msra.mxu0 0.0
    %1783 = vmatprep.subr.mxu0 0.0
    %1784 = vmatpush1.msra.mxu0 0.0
    %1785 = vmatprep.subr.mxu0 0.0
    %1786 = vmatpush1.msra.mxu0 0.0
    %1787 = vmatprep.subr.mxu0 0.0
    %1788 = vmatpush1.msra.mxu0 0.0
    %1789 = vmatprep.subr.mxu0 0.0
    %1790 = vmatpush1.msra.mxu0 0.0
    %1791 = vmatprep.subr.mxu0 0.0
    %1792 = vmatpush1.msra.mxu0 0.0
    %1793 = vmatprep.subr.mxu0 0.0
    %1794 = vmatpush1.msra.mxu0 0.0
    %1795 = vmatprep.subr.mxu0 0.0
    %1796 = vmatpush1.msra.mxu0 %v1761
    %1797 = vmatprep.subr.mxu0 0.0
    %1798 = vmatpush1.msra.mxu0 %v1760
    %1799 = vmatprep.subr.mxu0 0.0
    %1800 = vmatpush2.msra.mxu0 0.0
    %1801 = vmatprep.subr.mxu0 0.0
    %1802 = vmatpush2.msra.mxu0 0.0
    %1803 = vmatprep.subr.mxu0 0.0
    %1804 = vmatpush2.msra.mxu0 0.0
    %1805 = vmatprep.subr.mxu0 0.0
    %1806 = vmatpush2.msra.mxu0 0.0
    %1807 = vmatprep.subr.mxu0 0.0
    %1808 = vmatpush2.msra.mxu0 0.0
    %1809 = vmatprep.subr.mxu0 0.0
    %1810 = vmatpush2.msra.mxu0 0.0
    %1811 = vmatprep.subr.mxu0 0.0
    %1812 = vmatpush2.msra.mxu0 0.0
    %1813 = vmatprep.subr.mxu0 0.0
    %1814 = vmatpush2.msra.mxu0 0.0
    %1815 = vmatprep.subr.mxu0 0.0
    %1816 = vmatpush2.msra.mxu0 0.0
    %1817 = vmatprep.subr.mxu0 0.0
    %1818 = vmatpush2.msra.mxu0 0.0
    %1819 = vmatprep.subr.mxu0 0.0
    %1820 = vmatpush2.msra.mxu0 0.0
    %1821 = vmatprep.subr.mxu0 0.0
    %1822 = vmatpush2.msra.mxu0 0.0
    %1823 = vmatprep.subr.mxu0 0.0
    %1824 = vmatpush2.msra.mxu0 0.0
    %1825 = vmatprep.subr.mxu0 0.0
    %1826 = vmatpush2.msra.mxu0 0.0
    %1827 = vmatprep.subr.mxu0 0.0
    %1828 = vmatpush2.msra.mxu0 0.0
    %1829 = vmatprep.subr.mxu0 0.0
    %1830 = vmatpush2.msra.mxu0 0.0
    %1831 = vmatprep.mubr.f32.mxu0 0.0
    %1832 = vmatmul.mubr.f32.gmra.mxu0 %v1525
    %v1833 = vpop.f32.mrf.mxu0
    %v1834 = vadd.f32 %v1766, %v1833
    %v1835 = vpop.f32.mrf.mxu0
    %1836 = vdwg.mxu0
    %v1837 = vmax.f32 %v1834, 0.0
    %1838 = vst [vmem:[%s790] ss:$8 sm:$0x3] %v1837
    %1839 = vst [vmem:[%s790] ss:$8 sm:$0x0] %v1837
    %v1840 = vld [vmem:[%s1 + $0x200] sm:$0xff]
    %v1841 = vld [vmem:[%s1 + $0x208] sm:$0xff]
    %v1842 = vld [vmem:[%s1 + $0x244] sm:$0x1]
    %v1843 = vlaneseq
    %v1844 = vshrl.u32 %v1843, 7
    %v1845 = vsub.s32 0, %v1844
    %v1846 = vrot.slane %v1842, %v1845
    %1847 = vmatprep.subr.mxu0 0.0
    %1848 = vmatpush1.msra.mxu0 0.0
    %1849 = vmatprep.subr.mxu0 0.0
    %1850 = vmatpush1.msra.mxu0 0.0
    %1851 = vmatprep.subr.mxu0 0.0
    %1852 = vmatpush1.msra.mxu0 0.0
    %1853 = vmatprep.subr.mxu0 0.0
    %1854 = vmatpush1.msra.mxu0 0.0
    %1855 = vmatprep.subr.mxu0 0.0
    %1856 = vmatpush1.msra.mxu0 0.0
    %1857 = vmatprep.subr.mxu0 0.0
    %1858 = vmatpush1.msra.mxu0 0.0
    %1859 = vmatprep.subr.mxu0 0.0
    %1860 = vmatpush1.msra.mxu0 0.0
    %1861 = vmatprep.subr.mxu0 0.0
    %1862 = vmatpush1.msra.mxu0 0.0
    %1863 = vmatprep.subr.mxu0 0.0
    %1864 = vmatpush1.msra.mxu0 0.0
    %1865 = vmatprep.subr.mxu0 0.0
    %1866 = vmatpush1.msra.mxu0 0.0
    %1867 = vmatprep.subr.mxu0 0.0
    %1868 = vmatpush1.msra.mxu0 0.0
    %1869 = vmatprep.subr.mxu0 0.0
    %1870 = vmatpush1.msra.mxu0 0.0
    %1871 = vmatprep.subr.mxu0 0.0
    %1872 = vmatpush1.msra.mxu0 0.0
    %1873 = vmatprep.subr.mxu0 0.0
    %1874 = vmatpush1.msra.mxu0 0.0
    %1875 = vmatprep.subr.mxu0 0.0
    %1876 = vmatpush1.msra.mxu0 %v1841
    %1877 = vmatprep.subr.mxu0 0.0
    %1878 = vmatpush1.msra.mxu0 %v1840
    %1879 = vmatprep.subr.mxu0 0.0
    %1880 = vmatpush2.msra.mxu0 0.0
    %1881 = vmatprep.subr.mxu0 0.0
    %1882 = vmatpush2.msra.mxu0 0.0
    %1883 = vmatprep.subr.mxu0 0.0
    %1884 = vmatpush2.msra.mxu0 0.0
    %1885 = vmatprep.subr.mxu0 0.0
    %1886 = vmatpush2.msra.mxu0 0.0
    %1887 = vmatprep.subr.mxu0 0.0
    %1888 = vmatpush2.msra.mxu0 0.0
    %1889 = vmatprep.subr.mxu0 0.0
    %1890 = vmatpush2.msra.mxu0 0.0
    %1891 = vmatprep.subr.mxu0 0.0
    %1892 = vmatpush2.msra.mxu0 0.0
    %1893 = vmatprep.subr.mxu0 0.0
    %1894 = vmatpush2.msra.mxu0 0.0
    %1895 = vmatprep.subr.mxu0 0.0
    %1896 = vmatpush2.msra.mxu0 0.0
    %1897 = vmatprep.subr.mxu0 0.0
    %1898 = vmatpush2.msra.mxu0 0.0
    %1899 = vmatprep.subr.mxu0 0.0
    %1900 = vmatpush2.msra.mxu0 0.0
    %1901 = vmatprep.subr.mxu0 0.0
    %1902 = vmatpush2.msra.mxu0 0.0
    %1903 = vmatprep.subr.mxu0 0.0
    %1904 = vmatpush2.msra.mxu0 0.0
    %1905 = vmatprep.subr.mxu0 0.0
    %1906 = vmatpush2.msra.mxu0 0.0
    %1907 = vmatprep.subr.mxu0 0.0
    %1908 = vmatpush2.msra.mxu0 0.0
    %1909 = vmatprep.subr.mxu0 0.0
    %1910 = vmatpush2.msra.mxu0 0.0
    %1911 = vmatprep.mubr.f32.mxu0 0.0
    %1912 = vmatmul.mubr.f32.gmra.mxu0 %v1525
    %v1913 = vpop.f32.mrf.mxu0
    %v1914 = vadd.f32 %v1846, %v1913
    %v1915 = vpop.f32.mrf.mxu0
    %1916 = vdwg.mxu0
    %v1917 = vmax.f32 %v1914, 0.0
    %1918 = vst [vmem:[%s870] ss:$8 sm:$0x3] %v1917
    %1919 = vst [vmem:[%s870] ss:$8 sm:$0x0] %v1917
    %v1920 = vld [vmem:[%s1 + $0x210] sm:$0xff]
    %v1921 = vld [vmem:[%s1 + $0x218] sm:$0xff]
    %v1922 = vld [vmem:[%s1 + $0x245] sm:$0x1]
    %v1923 = vlaneseq
    %v1924 = vshrl.u32 %v1923, 7
    %v1925 = vsub.s32 0, %v1924
    %v1926 = vrot.slane %v1922, %v1925
    %1927 = vmatprep.subr.mxu0 0.0
    %1928 = vmatpush1.msra.mxu0 0.0
    %1929 = vmatprep.subr.mxu0 0.0
    %1930 = vmatpush1.msra.mxu0 0.0
    %1931 = vmatprep.subr.mxu0 0.0
    %1932 = vmatpush1.msra.mxu0 0.0
    %1933 = vmatprep.subr.mxu0 0.0
    %1934 = vmatpush1.msra.mxu0 0.0
    %1935 = vmatprep.subr.mxu0 0.0
    %1936 = vmatpush1.msra.mxu0 0.0
    %1937 = vmatprep.subr.mxu0 0.0
    %1938 = vmatpush1.msra.mxu0 0.0
    %1939 = vmatprep.subr.mxu0 0.0
    %1940 = vmatpush1.msra.mxu0 0.0
    %1941 = vmatprep.subr.mxu0 0.0
    %1942 = vmatpush1.msra.mxu0 0.0
    %1943 = vmatprep.subr.mxu0 0.0
    %1944 = vmatpush1.msra.mxu0 0.0
    %1945 = vmatprep.subr.mxu0 0.0
    %1946 = vmatpush1.msra.mxu0 0.0
    %1947 = vmatprep.subr.mxu0 0.0
    %1948 = vmatpush1.msra.mxu0 0.0
    %1949 = vmatprep.subr.mxu0 0.0
    %1950 = vmatpush1.msra.mxu0 0.0
    %1951 = vmatprep.subr.mxu0 0.0
    %1952 = vmatpush1.msra.mxu0 0.0
    %1953 = vmatprep.subr.mxu0 0.0
    %1954 = vmatpush1.msra.mxu0 0.0
    %1955 = vmatprep.subr.mxu0 0.0
    %1956 = vmatpush1.msra.mxu0 %v1921
    %1957 = vmatprep.subr.mxu0 0.0
    %1958 = vmatpush1.msra.mxu0 %v1920
    %1959 = vmatprep.subr.mxu0 0.0
    %1960 = vmatpush2.msra.mxu0 0.0
    %1961 = vmatprep.subr.mxu0 0.0
    %1962 = vmatpush2.msra.mxu0 0.0
    %1963 = vmatprep.subr.mxu0 0.0
    %1964 = vmatpush2.msra.mxu0 0.0
    %1965 = vmatprep.subr.mxu0 0.0
    %1966 = vmatpush2.msra.mxu0 0.0
    %1967 = vmatprep.subr.mxu0 0.0
    %1968 = vmatpush2.msra.mxu0 0.0
    %1969 = vmatprep.subr.mxu0 0.0
    %1970 = vmatpush2.msra.mxu0 0.0
    %1971 = vmatprep.subr.mxu0 0.0
    %1972 = vmatpush2.msra.mxu0 0.0
    %1973 = vmatprep.subr.mxu0 0.0
    %1974 = vmatpush2.msra.mxu0 0.0
    %1975 = vmatprep.subr.mxu0 0.0
    %1976 = vmatpush2.msra.mxu0 0.0
    %1977 = vmatprep.subr.mxu0 0.0
    %1978 = vmatpush2.msra.mxu0 0.0
    %1979 = vmatprep.subr.mxu0 0.0
    %1980 = vmatpush2.msra.mxu0 0.0
    %1981 = vmatprep.subr.mxu0 0.0
    %1982 = vmatpush2.msra.mxu0 0.0
    %1983 = vmatprep.subr.mxu0 0.0
    %1984 = vmatpush2.msra.mxu0 0.0
    %1985 = vmatprep.subr.mxu0 0.0
    %1986 = vmatpush2.msra.mxu0 0.0
    %1987 = vmatprep.subr.mxu0 0.0
    %1988 = vmatpush2.msra.mxu0 0.0
    %1989 = vmatprep.subr.mxu0 0.0
    %1990 = vmatpush2.msra.mxu0 0.0
    %1991 = vmatprep.mubr.f32.mxu0 0.0
    %1992 = vmatmul.mubr.f32.gmra.mxu0 %v1525
    %v1993 = vpop.f32.mrf.mxu0
    %v1994 = vadd.f32 %v1926, %v1993
    %v1995 = vpop.f32.mrf.mxu0
    %1996 = vdwg.mxu0
    %v1997 = vmax.f32 %v1994, 0.0
    %1998 = vst [vmem:[%s950] ss:$8 sm:$0x3] %v1997
    %1999 = vst [vmem:[%s950] ss:$8 sm:$0x0] %v1997
    %v2000 = vld [vmem:[%s1 + $0x220] sm:$0xff]
    %v2001 = vld [vmem:[%s1 + $0x228] sm:$0xff]
    %v2002 = vld [vmem:[%s1 + $0x246] sm:$0x1]
    %v2003 = vlaneseq
    %v2004 = vshrl.u32 %v2003, 7
    %v2005 = vsub.s32 0, %v2004
    %v2006 = vrot.slane %v2002, %v2005
    %2007 = vmatprep.subr.mxu0 0.0
    %2008 = vmatpush1.msra.mxu0 0.0
    %2009 = vmatprep.subr.mxu0 0.0
    %2010 = vmatpush1.msra.mxu0 0.0
    %2011 = vmatprep.subr.mxu0 0.0
    %2012 = vmatpush1.msra.mxu0 0.0
    %2013 = vmatprep.subr.mxu0 0.0
    %2014 = vmatpush1.msra.mxu0 0.0
    %2015 = vmatprep.subr.mxu0 0.0
    %2016 = vmatpush1.msra.mxu0 0.0
    %2017 = vmatprep.subr.mxu0 0.0
    %2018 = vmatpush1.msra.mxu0 0.0
    %2019 = vmatprep.subr.mxu0 0.0
    %2020 = vmatpush1.msra.mxu0 0.0
    %2021 = vmatprep.subr.mxu0 0.0
    %2022 = vmatpush1.msra.mxu0 0.0
    %2023 = vmatprep.subr.mxu0 0.0
    %2024 = vmatpush1.msra.mxu0 0.0
    %2025 = vmatprep.subr.mxu0 0.0
    %2026 = vmatpush1.msra.mxu0 0.0
    %2027 = vmatprep.subr.mxu0 0.0
    %2028 = vmatpush1.msra.mxu0 0.0
    %2029 = vmatprep.subr.mxu0 0.0
    %2030 = vmatpush1.msra.mxu0 0.0
    %2031 = vmatprep.subr.mxu0 0.0
    %2032 = vmatpush1.msra.mxu0 0.0
    %2033 = vmatprep.subr.mxu0 0.0
    %2034 = vmatpush1.msra.mxu0 0.0
    %2035 = vmatprep.subr.mxu0 0.0
    %2036 = vmatpush1.msra.mxu0 %v2001
    %2037 = vmatprep.subr.mxu0 0.0
    %2038 = vmatpush1.msra.mxu0 %v2000
    %2039 = vmatprep.subr.mxu0 0.0
    %2040 = vmatpush2.msra.mxu0 0.0
    %2041 = vmatprep.subr.mxu0 0.0
    %2042 = vmatpush2.msra.mxu0 0.0
    %2043 = vmatprep.subr.mxu0 0.0
    %2044 = vmatpush2.msra.mxu0 0.0
    %2045 = vmatprep.subr.mxu0 0.0
    %2046 = vmatpush2.msra.mxu0 0.0
    %2047 = vmatprep.subr.mxu0 0.0
    %2048 = vmatpush2.msra.mxu0 0.0
    %2049 = vmatprep.subr.mxu0 0.0
    %2050 = vmatpush2.msra.mxu0 0.0
    %2051 = vmatprep.subr.mxu0 0.0
    %2052 = vmatpush2.msra.mxu0 0.0
    %2053 = vmatprep.subr.mxu0 0.0
    %2054 = vmatpush2.msra.mxu0 0.0
    %2055 = vmatprep.subr.mxu0 0.0
    %2056 = vmatpush2.msra.mxu0 0.0
    %2057 = vmatprep.subr.mxu0 0.0
    %2058 = vmatpush2.msra.mxu0 0.0
    %2059 = vmatprep.subr.mxu0 0.0
    %2060 = vmatpush2.msra.mxu0 0.0
    %2061 = vmatprep.subr.mxu0 0.0
    %2062 = vmatpush2.msra.mxu0 0.0
    %2063 = vmatprep.subr.mxu0 0.0
    %2064 = vmatpush2.msra.mxu0 0.0
    %2065 = vmatprep.subr.mxu0 0.0
    %2066 = vmatpush2.msra.mxu0 0.0
    %2067 = vmatprep.subr.mxu0 0.0
    %2068 = vmatpush2.msra.mxu0 0.0
    %2069 = vmatprep.subr.mxu0 0.0
    %2070 = vmatpush2.msra.mxu0 0.0
    %2071 = vmatprep.mubr.f32.mxu0 0.0
    %2072 = vmatmul.mubr.f32.gmra.mxu0 %v1525
    %v2073 = vpop.f32.mrf.mxu0
    %v2074 = vadd.f32 %v2006, %v2073
    %v2075 = vpop.f32.mrf.mxu0
    %2076 = vdwg.mxu0
    %v2077 = vmax.f32 %v2074, 0.0
    %2078 = vst [vmem:[%s1030] ss:$8 sm:$0x3] %v2077
    %2079 = vst [vmem:[%s1030] ss:$8 sm:$0x0] %v2077
    %v2080 = vld [vmem:[%s1 + $0x230] sm:$0xff]
    %v2081 = vld [vmem:[%s1 + $0x238] sm:$0xff]
    %v2082 = vld [vmem:[%s1 + $0x247] sm:$0x1]
    %v2083 = vlaneseq
    %v2084 = vshrl.u32 %v2083, 7
    %v2085 = vsub.s32 0, %v2084
    %v2086 = vrot.slane %v2082, %v2085
    %2087 = vmatprep.subr.mxu0 0.0
    %2088 = vmatpush1.msra.mxu0 0.0
    %2089 = vmatprep.subr.mxu0 0.0
    %2090 = vmatpush1.msra.mxu0 0.0
    %2091 = vmatprep.subr.mxu0 0.0
    %2092 = vmatpush1.msra.mxu0 0.0
    %2093 = vmatprep.subr.mxu0 0.0
    %2094 = vmatpush1.msra.mxu0 0.0
    %2095 = vmatprep.subr.mxu0 0.0
    %2096 = vmatpush1.msra.mxu0 0.0
    %2097 = vmatprep.subr.mxu0 0.0
    %2098 = vmatpush1.msra.mxu0 0.0
    %2099 = vmatprep.subr.mxu0 0.0
    %2100 = vmatpush1.msra.mxu0 0.0
    %2101 = vmatprep.subr.mxu0 0.0
    %2102 = vmatpush1.msra.mxu0 0.0
    %2103 = vmatprep.subr.mxu0 0.0
    %2104 = vmatpush1.msra.mxu0 0.0
    %2105 = vmatprep.subr.mxu0 0.0
    %2106 = vmatpush1.msra.mxu0 0.0
    %2107 = vmatprep.subr.mxu0 0.0
    %2108 = vmatpush1.msra.mxu0 0.0
    %2109 = vmatprep.subr.mxu0 0.0
    %2110 = vmatpush1.msra.mxu0 0.0
    %2111 = vmatprep.subr.mxu0 0.0
    %2112 = vmatpush1.msra.mxu0 0.0
    %2113 = vmatprep.subr.mxu0 0.0
    %2114 = vmatpush1.msra.mxu0 0.0
    %2115 = vmatprep.subr.mxu0 0.0
    %2116 = vmatpush1.msra.mxu0 %v2081
    %2117 = vmatprep.subr.mxu0 0.0
    %2118 = vmatpush1.msra.mxu0 %v2080
    %2119 = vmatprep.subr.mxu0 0.0
    %2120 = vmatpush2.msra.mxu0 0.0
    %2121 = vmatprep.subr.mxu0 0.0
    %2122 = vmatpush2.msra.mxu0 0.0
    %2123 = vmatprep.subr.mxu0 0.0
    %2124 = vmatpush2.msra.mxu0 0.0
    %2125 = vmatprep.subr.mxu0 0.0
    %2126 = vmatpush2.msra.mxu0 0.0
    %2127 = vmatprep.subr.mxu0 0.0
    %2128 = vmatpush2.msra.mxu0 0.0
    %2129 = vmatprep.subr.mxu0 0.0
    %2130 = vmatpush2.msra.mxu0 0.0
    %2131 = vmatprep.subr.mxu0 0.0
    %2132 = vmatpush2.msra.mxu0 0.0
    %2133 = vmatprep.subr.mxu0 0.0
    %2134 = vmatpush2.msra.mxu0 0.0
    %2135 = vmatprep.subr.mxu0 0.0
    %2136 = vmatpush2.msra.mxu0 0.0
    %2137 = vmatprep.subr.mxu0 0.0
    %2138 = vmatpush2.msra.mxu0 0.0
    %2139 = vmatprep.subr.mxu0 0.0
    %2140 = vmatpush2.msra.mxu0 0.0
    %2141 = vmatprep.subr.mxu0 0.0
    %2142 = vmatpush2.msra.mxu0 0.0
    %2143 = vmatprep.subr.mxu0 0.0
    %2144 = vmatpush2.msra.mxu0 0.0
    %2145 = vmatprep.subr.mxu0 0.0
    %2146 = vmatpush2.msra.mxu0 0.0
    %2147 = vmatprep.subr.mxu0 0.0
    %2148 = vmatpush2.msra.mxu0 0.0
    %2149 = vmatprep.subr.mxu0 0.0
    %2150 = vmatpush2.msra.mxu0 0.0
    %2151 = vmatprep.mubr.f32.mxu0 0.0
    %2152 = vmatmul.mubr.f32.gmra.mxu0 %v1525
    %v2153 = vpop.f32.mrf.mxu0
    %v2154 = vadd.f32 %v2086, %v2153
    %v2155 = vpop.f32.mrf.mxu0
    %2156 = vdwg.mxu0
    %v2157 = vmax.f32 %v2154, 0.0
    %2158 = vst [vmem:[%s1110] ss:$8 sm:$0x3] %v2157
    %2159 = vst [vmem:[%s1110] ss:$8 sm:$0x0] %v2157
    %v2160 = vld [vmem:[#allocation2] sm:$0xff]
    %v2161 = vld [vmem:[#allocation2 + $0x8] sm:$0xff]
    %2162 = vst [vmem:[#allocation2] ss:$2 sm:$0xff] %v2160
    %2163 = vst [vmem:[%s630] ss:$2 sm:$0xff] %v2160
    %2164 = vst [vmem:[%s339] ss:$2 sm:$0xff] %v2161
    %s2165 = scalar_lea.vmem [#allocation2], 17
    %2166 = vst [vmem:[%s2165] ss:$2 sm:$0xff] %v2161
    %v2167 = vld [vmem:[#allocation2] sm:$0xff]
    %v2168 = vld [vmem:[#allocation2 + $0x8] sm:$0xff]
    %v2169 = vld [vmem:[#allocation2 + $0x10] sm:$0xff]
    %v2170 = vld [vmem:[#allocation2 + $0x18] sm:$0xff]
    %v2173 = vrot.slane %v2167, 1
    %v2174 = vrot.slane %v2168, 1
    %v2175 = vsel %vm26, %v2173, %v2174
    %v2176 = vsel %vm26, %v2174, %v2173
    %2177 = vrot.lane.b32.xlu0 %v2175, 32
    %v2178 = vpop.permute.xlu0 %2177
    %2179 = vrot.lane.b32.xlu0 %v2176, 32
    %v2180 = vpop.permute.xlu0 %2179
    %v2183 = vrot.slane %v2167, 2
    %v2184 = vrot.slane %v2168, 2
    %v2185 = vsel %vm47, %v2183, %v2184
    %v2186 = vsel %vm47, %v2184, %v2183
    %2187 = vrot.lane.b32.xlu0 %v2185, 64
    %v2188 = vpop.permute.xlu0 %2187
    %2189 = vrot.lane.b32.xlu0 %v2186, 64
    %v2190 = vpop.permute.xlu0 %2189
    %v2193 = vrot.slane %v2167, 3
    %v2194 = vrot.slane %v2168, 3
    %v2195 = vsel %vm68, %v2193, %v2194
    %v2196 = vsel %vm68, %v2194, %v2193
    %2197 = vrot.lane.b32.xlu0 %v2195, 96
    %v2198 = vpop.permute.xlu0 %2197
    %2199 = vrot.lane.b32.xlu0 %v2196, 96
    %v2200 = vpop.permute.xlu0 %2199
    %v2203 = vsel %vm379, %v2167, %v2178
    %v2204 = vsel %vm379, %v2168, %v2180
    %v2205 = vsel %vm436, %v2203, %v2188
    %v2206 = vsel %vm436, %v2204, %v2190
    %vm2207 = vcmask 785408
    %v2208 = vsel %vm2207, %v2205, %v2198
    %v2209 = vsel %vm2207, %v2206, %v2200
    %v2212 = vrot.slane %v2169, 1
    %v2213 = vrot.slane %v2170, 1
    %v2214 = vsel %vm26, %v2212, %v2213
    %v2215 = vsel %vm26, %v2213, %v2212
    %2216 = vrot.lane.b32.xlu0 %v2214, 32
    %v2217 = vpop.permute.xlu0 %2216
    %2218 = vrot.lane.b32.xlu0 %v2215, 32
    %v2219 = vpop.permute.xlu0 %2218
    %v2222 = vrot.slane %v2169, 2
    %v2223 = vrot.slane %v2170, 2
    %v2224 = vsel %vm47, %v2222, %v2223
    %v2225 = vsel %vm47, %v2223, %v2222
    %2226 = vrot.lane.b32.xlu0 %v2224, 64
    %v2227 = vpop.permute.xlu0 %2226
    %2228 = vrot.lane.b32.xlu0 %v2225, 64
    %v2229 = vpop.permute.xlu0 %2228
    %v2232 = vrot.slane %v2169, 3
    %v2233 = vrot.slane %v2170, 3
    %v2234 = vsel %vm68, %v2232, %v2233
    %v2235 = vsel %vm68, %v2233, %v2232
    %2236 = vrot.lane.b32.xlu0 %v2234, 96
    %v2237 = vpop.permute.xlu0 %2236
    %2238 = vrot.lane.b32.xlu0 %v2235, 96
    %v2239 = vpop.permute.xlu0 %2238
    %v2242 = vsel %vm379, %v2169, %v2217
    %v2243 = vsel %vm379, %v2170, %v2219
    %v2244 = vsel %vm436, %v2242, %v2227
    %v2245 = vsel %vm436, %v2243, %v2229
    %v2246 = vsel %vm2207, %v2244, %v2237
    %v2247 = vsel %vm2207, %v2245, %v2239
    %v2248 = vld [vmem:[%s1 + $0x248] sm:$0xff]
    %v2249 = vld [vmem:[%s1 + $0x250] sm:$0xff]
    %v2250 = vld [vmem:[%s1 + $0x258] sm:$0xff]
    %v2251 = vld [vmem:[%s1 + $0x260] sm:$0xff]
    %v2252 = vld [vmem:[%s1 + $0x268] sm:$0xff]
    %v2253 = vld [vmem:[%s1 + $0x270] sm:$0xff]
    %v2254 = vld [vmem:[%s1 + $0x278] sm:$0xff]
    %v2255 = vld [vmem:[%s1 + $0x280] sm:$0xff]
    %v2256 = vld [vmem:[%s1 + $0x288] sm:$0xff]
    %v2257 = vld [vmem:[%s1 + $0x290] sm:$0xff]
    %v2258 = vld [vmem:[%s1 + $0x298] sm:$0xff]
    %v2259 = vld [vmem:[%s1 + $0x2a0] sm:$0xff]
    %v2260 = vld [vmem:[%s1 + $0x2a8] sm:$0xff]
    %v2261 = vld [vmem:[%s1 + $0x2b0] sm:$0xff]
    %v2262 = vld [vmem:[%s1 + $0x2b8] sm:$0xff]
    %v2263 = vld [vmem:[%s1 + $0x2c0] sm:$0xff]
    %v2264 = vld [vmem:[%s1 + $0x2c8] sm:$0x1]
    %v2265 = vlaneseq
    %v2266 = vshrl.u32 %v2265, 7
    %v2267 = vsub.s32 0, %v2266
    %v2268 = vrot.slane %v2264, %v2267
    %2269 = vmatprep.subr.mxu0 0.0
    %2270 = vmatpush1.msra.mxu0 %v2263
    %2271 = vmatprep.subr.mxu0 0.0
    %2272 = vmatpush1.msra.mxu0 %v2262
    %2273 = vmatprep.subr.mxu0 0.0
    %2274 = vmatpush1.msra.mxu0 %v2261
    %2275 = vmatprep.subr.mxu0 0.0
    %2276 = vmatpush1.msra.mxu0 %v2260
    %2277 = vmatprep.subr.mxu0 0.0
    %2278 = vmatpush1.msra.mxu0 %v2259
    %2279 = vmatprep.subr.mxu0 0.0
    %2280 = vmatpush1.msra.mxu0 %v2258
    %2281 = vmatprep.subr.mxu0 0.0
    %2282 = vmatpush1.msra.mxu0 %v2257
    %2283 = vmatprep.subr.mxu0 0.0
    %2284 = vmatpush1.msra.mxu0 %v2256
    %2285 = vmatprep.subr.mxu0 0.0
    %2286 = vmatpush1.msra.mxu0 %v2255
    %2287 = vmatprep.subr.mxu0 0.0
    %2288 = vmatpush1.msra.mxu0 %v2254
    %2289 = vmatprep.subr.mxu0 0.0
    %2290 = vmatpush1.msra.mxu0 %v2253
    %2291 = vmatprep.subr.mxu0 0.0
    %2292 = vmatpush1.msra.mxu0 %v2252
    %2293 = vmatprep.subr.mxu0 0.0
    %2294 = vmatpush1.msra.mxu0 %v2251
    %2295 = vmatprep.subr.mxu0 0.0
    %2296 = vmatpush1.msra.mxu0 %v2250
    %2297 = vmatprep.subr.mxu0 0.0
    %2298 = vmatpush1.msra.mxu0 %v2249
    %2299 = vmatprep.subr.mxu0 0.0
    %2300 = vmatpush1.msra.mxu0 %v2248
    %2301 = vmatprep.subr.mxu0 0.0
    %2302 = vmatpush2.msra.mxu0 0.0
    %2303 = vmatprep.subr.mxu0 0.0
    %2304 = vmatpush2.msra.mxu0 0.0
    %2305 = vmatprep.subr.mxu0 0.0
    %2306 = vmatpush2.msra.mxu0 0.0
    %2307 = vmatprep.subr.mxu0 0.0
    %2308 = vmatpush2.msra.mxu0 0.0
    %2309 = vmatprep.subr.mxu0 0.0
    %2310 = vmatpush2.msra.mxu0 0.0
    %2311 = vmatprep.subr.mxu0 0.0
    %2312 = vmatpush2.msra.mxu0 0.0
    %2313 = vmatprep.subr.mxu0 0.0
    %2314 = vmatpush2.msra.mxu0 0.0
    %2315 = vmatprep.subr.mxu0 0.0
    %2316 = vmatpush2.msra.mxu0 0.0
    %2317 = vmatprep.subr.mxu0 0.0
    %2318 = vmatpush2.msra.mxu0 0.0
    %2319 = vmatprep.subr.mxu0 0.0
    %2320 = vmatpush2.msra.mxu0 0.0
    %2321 = vmatprep.subr.mxu0 0.0
    %2322 = vmatpush2.msra.mxu0 0.0
    %2323 = vmatprep.subr.mxu0 0.0
    %2324 = vmatpush2.msra.mxu0 0.0
    %2325 = vmatprep.subr.mxu0 0.0
    %2326 = vmatpush2.msra.mxu0 0.0
    %2327 = vmatprep.subr.mxu0 0.0
    %2328 = vmatpush2.msra.mxu0 0.0
    %2329 = vmatprep.subr.mxu0 0.0
    %2330 = vmatpush2.msra.mxu0 0.0
    %2331 = vmatprep.subr.mxu0 0.0
    %2332 = vmatpush2.msra.mxu0 0.0
    %2333 = vmatprep.mubr.f32.mxu0 0.0
    %2334 = vmatmul.mubr.f32.gmra.mxu0 %v2208
    %v2335 = vpop.f32.mrf.mxu0
    %v2336 = vadd.f32 %v2268, %v2335
    %v2337 = vpop.f32.mrf.mxu0
    %2338 = vmatprep.mubr.f32.mxu0 0.0
    %2339 = vmatmul.mubr.f32.gmra.mxu0 %v2209
    %v2340 = vpop.f32.mrf.mxu0
    %v2341 = vadd.f32 %v2268, %v2340
    %v2342 = vpop.f32.mrf.mxu0
    %2343 = vmatprep.mubr.f32.mxu0 0.0
    %2344 = vmatmul.mubr.f32.gmra.mxu0 %v2246
    %v2345 = vpop.f32.mrf.mxu0
    %v2346 = vadd.f32 %v2268, %v2345
    %v2347 = vpop.f32.mrf.mxu0
    %2348 = vmatprep.mubr.f32.mxu0 0.0
    %2349 = vmatmul.mubr.f32.gmra.mxu0 %v2247
    %v2350 = vpop.f32.mrf.mxu0
    %v2351 = vadd.f32 %v2268, %v2350
    %v2352 = vpop.f32.mrf.mxu0
    %2353 = vdwg.mxu0
    %v2354 = vmax.f32 %v2336, 0.0
    %v2355 = vmax.f32 %v2341, 0.0
    %v2356 = vmax.f32 %v2346, 0.0
    %v2357 = vmax.f32 %v2351, 0.0
    %2358 = vst [vmem:[#allocation2] ss:$2 sm:$0xff] %v2354
    %2359 = vst [vmem:[%s339] ss:$2 sm:$0xff] %v2355
    %2360 = vst [vmem:[%s630] ss:$2 sm:$0xff] %v2354
    %2361 = vst [vmem:[%s2165] ss:$2 sm:$0xff] %v2355
    %2362 = vst [vmem:[%s341] ss:$2 sm:$0xff] %v2356
    %2363 = vst [vmem:[%s343] ss:$2 sm:$0xff] %v2357
    %s2364 = scalar_lea.vmem [#allocation2], 33
    %2365 = vst [vmem:[%s2364] ss:$2 sm:$0xff] %v2356
    %s2366 = scalar_lea.vmem [#allocation2], 49
    %2367 = vst [vmem:[%s2366] ss:$2 sm:$0xff] %v2357
    %v2368 = vld [vmem:[#allocation2] sm:$0xff]
    %v2369 = vld [vmem:[#allocation2 + $0x8] sm:$0xff]
    %v2370 = vld [vmem:[#allocation2 + $0x10] sm:$0xff]
    %v2371 = vld [vmem:[#allocation2 + $0x18] sm:$0xff]
    %v2372 = vld [vmem:[#allocation2 + $0x20] sm:$0xff]
    %v2373 = vld [vmem:[#allocation2 + $0x28] sm:$0xff]
    %v2374 = vld [vmem:[#allocation2 + $0x30] sm:$0xff]
    %v2375 = vld [vmem:[#allocation2 + $0x38] sm:$0xff]
    %v2380 = vrot.slane %v2368, 1
    %v2381 = vrot.slane %v2369, 1
    %v2382 = vsel %vm26, %v2380, %v2381
    %v2383 = vrot.slane %v2370, 1
    %v2384 = vsel %vm26, %v2381, %v2383
    %v2385 = vrot.slane %v2371, 1
    %v2386 = vsel %vm26, %v2383, %v2385
    %v2387 = vsel %vm26, %v2385, %v2380
    %2388 = vrot.lane.b32.xlu0 %v2382, 16
    %v2389 = vpop.permute.xlu0 %2388
    %2390 = vrot.lane.b32.xlu0 %v2384, 16
    %v2391 = vpop.permute.xlu0 %2390
    %2392 = vrot.lane.b32.xlu0 %v2386, 16
    %v2393 = vpop.permute.xlu0 %2392
    %2394 = vrot.lane.b32.xlu0 %v2387, 16
    %v2395 = vpop.permute.xlu0 %2394
    %v2400 = vrot.slane %v2368, 2
    %v2401 = vrot.slane %v2369, 2
    %v2402 = vsel %vm47, %v2400, %v2401
    %v2403 = vrot.slane %v2370, 2
    %v2404 = vsel %vm47, %v2401, %v2403
    %v2405 = vrot.slane %v2371, 2
    %v2406 = vsel %vm47, %v2403, %v2405
    %v2407 = vsel %vm47, %v2405, %v2400
    %2408 = vrot.lane.b32.xlu0 %v2402, 32
    %v2409 = vpop.permute.xlu0 %2408
    %2410 = vrot.lane.b32.xlu0 %v2404, 32
    %v2411 = vpop.permute.xlu0 %2410
    %2412 = vrot.lane.b32.xlu0 %v2406, 32
    %v2413 = vpop.permute.xlu0 %2412
    %2414 = vrot.lane.b32.xlu0 %v2407, 32
    %v2415 = vpop.permute.xlu0 %2414
    %v2420 = vrot.slane %v2368, 3
    %v2421 = vrot.slane %v2369, 3
    %v2422 = vsel %vm68, %v2420, %v2421
    %v2423 = vrot.slane %v2370, 3
    %v2424 = vsel %vm68, %v2421, %v2423
    %v2425 = vrot.slane %v2371, 3
    %v2426 = vsel %vm68, %v2423, %v2425
    %v2427 = vsel %vm68, %v2425, %v2420
    %2428 = vrot.lane.b32.xlu0 %v2422, 48
    %v2429 = vpop.permute.xlu0 %2428
    %2430 = vrot.lane.b32.xlu0 %v2424, 48
    %v2431 = vpop.permute.xlu0 %2430
    %2432 = vrot.lane.b32.xlu0 %v2426, 48
    %v2433 = vpop.permute.xlu0 %2432
    %2434 = vrot.lane.b32.xlu0 %v2427, 48
    %v2435 = vpop.permute.xlu0 %2434
    %v2440 = vsel %vm329, %v2368, %v2389
    %v2441 = vsel %vm329, %v2369, %v2391
    %v2442 = vsel %vm329, %v2370, %v2393
    %v2443 = vsel %vm329, %v2371, %v2395
    %v2444 = vsel %vm379, %v2440, %v2409
    %v2445 = vsel %vm379, %v2441, %v2411
    %v2446 = vsel %vm379, %v2442, %v2413
    %v2447 = vsel %vm379, %v2443, %v2415
    %v2448 = vsel %vm382, %v2444, %v2429
    %v2449 = vsel %vm382, %v2445, %v2431
    %v2450 = vsel %vm382, %v2446, %v2433
    %v2451 = vsel %vm382, %v2447, %v2435
    %v2456 = vrot.slane %v2372, 1
    %v2457 = vrot.slane %v2373, 1
    %v2458 = vsel %vm26, %v2456, %v2457
    %v2459 = vrot.slane %v2374, 1
    %v2460 = vsel %vm26, %v2457, %v2459
    %v2461 = vrot.slane %v2375, 1
    %v2462 = vsel %vm26, %v2459, %v2461
    %v2463 = vsel %vm26, %v2461, %v2456
    %2464 = vrot.lane.b32.xlu0 %v2458, 16
    %v2465 = vpop.permute.xlu0 %2464
    %2466 = vrot.lane.b32.xlu0 %v2460, 16
    %v2467 = vpop.permute.xlu0 %2466
    %2468 = vrot.lane.b32.xlu0 %v2462, 16
    %v2469 = vpop.permute.xlu0 %2468
    %2470 = vrot.lane.b32.xlu0 %v2463, 16
    %v2471 = vpop.permute.xlu0 %2470
    %v2476 = vrot.slane %v2372, 2
    %v2477 = vrot.slane %v2373, 2
    %v2478 = vsel %vm47, %v2476, %v2477
    %v2479 = vrot.slane %v2374, 2
    %v2480 = vsel %vm47, %v2477, %v2479
    %v2481 = vrot.slane %v2375, 2
    %v2482 = vsel %vm47, %v2479, %v2481
    %v2483 = vsel %vm47, %v2481, %v2476
    %2484 = vrot.lane.b32.xlu0 %v2478, 32
    %v2485 = vpop.permute.xlu0 %2484
    %2486 = vrot.lane.b32.xlu0 %v2480, 32
    %v2487 = vpop.permute.xlu0 %2486
    %2488 = vrot.lane.b32.xlu0 %v2482, 32
    %v2489 = vpop.permute.xlu0 %2488
    %2490 = vrot.lane.b32.xlu0 %v2483, 32
    %v2491 = vpop.permute.xlu0 %2490
    %v2496 = vrot.slane %v2372, 3
    %v2497 = vrot.slane %v2373, 3
    %v2498 = vsel %vm68, %v2496, %v2497
    %v2499 = vrot.slane %v2374, 3
    %v2500 = vsel %vm68, %v2497, %v2499
    %v2501 = vrot.slane %v2375, 3
    %v2502 = vsel %vm68, %v2499, %v2501
    %v2503 = vsel %vm68, %v2501, %v2496
    %2504 = vrot.lane.b32.xlu0 %v2498, 48
    %v2505 = vpop.permute.xlu0 %2504
    %2506 = vrot.lane.b32.xlu0 %v2500, 48
    %v2507 = vpop.permute.xlu0 %2506
    %2508 = vrot.lane.b32.xlu0 %v2502, 48
    %v2509 = vpop.permute.xlu0 %2508
    %2510 = vrot.lane.b32.xlu0 %v2503, 48
    %v2511 = vpop.permute.xlu0 %2510
    %v2516 = vsel %vm329, %v2372, %v2465
    %v2517 = vsel %vm329, %v2373, %v2467
    %v2518 = vsel %vm329, %v2374, %v2469
    %v2519 = vsel %vm329, %v2375, %v2471
    %v2520 = vsel %vm379, %v2516, %v2485
    %v2521 = vsel %vm379, %v2517, %v2487
    %v2522 = vsel %vm379, %v2518, %v2489
    %v2523 = vsel %vm379, %v2519, %v2491
    %v2524 = vsel %vm382, %v2520, %v2505
    %v2525 = vsel %vm382, %v2521, %v2507
    %v2526 = vsel %vm382, %v2522, %v2509
    %v2527 = vsel %vm382, %v2523, %v2511
    %v2528 = vld [vmem:[%s1 + $0x2d0] sm:$0xff]
    %v2529 = vld [vmem:[%s1 + $0x2d8] sm:$0xff]
    %v2530 = vld [vmem:[%s1 + $0x2e0] sm:$0xff]
    %v2531 = vld [vmem:[%s1 + $0x2e8] sm:$0xff]
    %v2532 = vld [vmem:[%s1 + $0x2f0] sm:$0xff]
    %v2533 = vld [vmem:[%s1 + $0x2f8] sm:$0xff]
    %v2534 = vld [vmem:[%s1 + $0x300] sm:$0xff]
    %v2535 = vld [vmem:[%s1 + $0x308] sm:$0xff]
    %v2536 = vld [vmem:[%s1 + $0x310] sm:$0x1]
    %v2537 = vlaneseq
    %v2538 = vshrl.u32 %v2537, 7
    %v2539 = vsub.s32 0, %v2538
    %v2540 = vrot.slane %v2536, %v2539
    %v2542 = vsel %vm436, %v2448, 0
    %v2545 = vsel %vm436, %v2449, 0
    %v2548 = vsel %vm436, %v2450, 0
    %v2551 = vsel %vm436, %v2451, 0
    %v2554 = vsel %vm436, %v2524, 0
    %v2557 = vsel %vm436, %v2525, 0
    %v2560 = vsel %vm436, %v2526, 0
    %v2563 = vsel %vm436, %v2527, 0
    %2565 = vmatprep.subr.mxu0 0.0
    %2566 = vmatpush1.msra.mxu0 0.0
    %2567 = vmatprep.subr.mxu0 0.0
    %2568 = vmatpush1.msra.mxu0 0.0
    %2569 = vmatprep.subr.mxu0 0.0
    %2570 = vmatpush1.msra.mxu0 0.0
    %2571 = vmatprep.subr.mxu0 0.0
    %2572 = vmatpush1.msra.mxu0 0.0
    %2573 = vmatprep.subr.mxu0 0.0
    %2574 = vmatpush1.msra.mxu0 0.0
    %2575 = vmatprep.subr.mxu0 0.0
    %2576 = vmatpush1.msra.mxu0 0.0
    %2577 = vmatprep.subr.mxu0 0.0
    %2578 = vmatpush1.msra.mxu0 0.0
    %2579 = vmatprep.subr.mxu0 0.0
    %2580 = vmatpush1.msra.mxu0 0.0
    %2581 = vmatprep.subr.mxu0 0.0
    %2582 = vmatpush1.msra.mxu0 %v2535
    %2583 = vmatprep.subr.mxu0 0.0
    %2584 = vmatpush1.msra.mxu0 %v2534
    %2585 = vmatprep.subr.mxu0 0.0
    %2586 = vmatpush1.msra.mxu0 %v2533
    %2587 = vmatprep.subr.mxu0 0.0
    %2588 = vmatpush1.msra.mxu0 %v2532
    %2589 = vmatprep.subr.mxu0 0.0
    %2590 = vmatpush1.msra.mxu0 %v2531
    %2591 = vmatprep.subr.mxu0 0.0
    %2592 = vmatpush1.msra.mxu0 %v2530
    %2593 = vmatprep.subr.mxu0 0.0
    %2594 = vmatpush1.msra.mxu0 %v2529
    %2595 = vmatprep.subr.mxu0 0.0
    %2596 = vmatpush1.msra.mxu0 %v2528
    %2597 = vmatprep.subr.mxu0 0.0
    %2598 = vmatpush2.msra.mxu0 0.0
    %2599 = vmatprep.subr.mxu0 0.0
    %2600 = vmatpush2.msra.mxu0 0.0
    %2601 = vmatprep.subr.mxu0 0.0
    %2602 = vmatpush2.msra.mxu0 0.0
    %2603 = vmatprep.subr.mxu0 0.0
    %2604 = vmatpush2.msra.mxu0 0.0
    %2605 = vmatprep.subr.mxu0 0.0
    %2606 = vmatpush2.msra.mxu0 0.0
    %2607 = vmatprep.subr.mxu0 0.0
    %2608 = vmatpush2.msra.mxu0 0.0
    %2609 = vmatprep.subr.mxu0 0.0
    %2610 = vmatpush2.msra.mxu0 0.0
    %2611 = vmatprep.subr.mxu0 0.0
    %2612 = vmatpush2.msra.mxu0 0.0
    %2613 = vmatprep.subr.mxu0 0.0
    %2614 = vmatpush2.msra.mxu0 0.0
    %2615 = vmatprep.subr.mxu0 0.0
    %2616 = vmatpush2.msra.mxu0 0.0
    %2617 = vmatprep.subr.mxu0 0.0
    %2618 = vmatpush2.msra.mxu0 0.0
    %2619 = vmatprep.subr.mxu0 0.0
    %2620 = vmatpush2.msra.mxu0 0.0
    %2621 = vmatprep.subr.mxu0 0.0
    %2622 = vmatpush2.msra.mxu0 0.0
    %2623 = vmatprep.subr.mxu0 0.0
    %2624 = vmatpush2.msra.mxu0 0.0
    %2625 = vmatprep.subr.mxu0 0.0
    %2626 = vmatpush2.msra.mxu0 0.0
    %2627 = vmatprep.subr.mxu0 0.0
    %2628 = vmatpush2.msra.mxu0 0.0
    %2629 = vmatprep.mubr.f32.mxu0 0.0
    %2630 = vmatmul.mubr.f32.gmra.mxu0 %v2542
    %v2631 = vpop.f32.mrf.mxu0
    %v2632 = vadd.f32 %v2540, %v2631
    %v2633 = vpop.f32.mrf.mxu0
    %2634 = vmatprep.mubr.f32.mxu0 0.0
    %2635 = vmatmul.mubr.f32.gmra.mxu0 %v2545
    %v2636 = vpop.f32.mrf.mxu0
    %v2637 = vadd.f32 %v2540, %v2636
    %v2638 = vpop.f32.mrf.mxu0
    %2639 = vmatprep.mubr.f32.mxu0 0.0
    %2640 = vmatmul.mubr.f32.gmra.mxu0 %v2548
    %v2641 = vpop.f32.mrf.mxu0
    %v2642 = vadd.f32 %v2540, %v2641
    %v2643 = vpop.f32.mrf.mxu0
    %2644 = vmatprep.mubr.f32.mxu0 0.0
    %2645 = vmatmul.mubr.f32.gmra.mxu0 %v2551
    %v2646 = vpop.f32.mrf.mxu0
    %v2647 = vadd.f32 %v2540, %v2646
    %v2648 = vpop.f32.mrf.mxu0
    %2649 = vmatprep.mubr.f32.mxu0 0.0
    %2650 = vmatmul.mubr.f32.gmra.mxu0 %v2554
    %v2651 = vpop.f32.mrf.mxu0
    %v2652 = vadd.f32 %v2540, %v2651
    %v2653 = vpop.f32.mrf.mxu0
    %2654 = vmatprep.mubr.f32.mxu0 0.0
    %2655 = vmatmul.mubr.f32.gmra.mxu0 %v2557
    %v2656 = vpop.f32.mrf.mxu0
    %v2657 = vadd.f32 %v2540, %v2656
    %v2658 = vpop.f32.mrf.mxu0
    %2659 = vmatprep.mubr.f32.mxu0 0.0
    %2660 = vmatmul.mubr.f32.gmra.mxu0 %v2560
    %v2661 = vpop.f32.mrf.mxu0
    %v2662 = vadd.f32 %v2540, %v2661
    %v2663 = vpop.f32.mrf.mxu0
    %2664 = vmatprep.mubr.f32.mxu0 0.0
    %2665 = vmatmul.mubr.f32.gmra.mxu0 %v2563
    %v2666 = vpop.f32.mrf.mxu0
    %v2667 = vadd.f32 %v2540, %v2666
    %v2668 = vpop.f32.mrf.mxu0
    %2669 = vdwg.mxu0
    %2670 = vst.msk [vmem:[%s2] sm:$0xff] %vm89, %v2632
    %2671 = vst.msk [vmem:[%s2 + $0x8] sm:$0xff] %vm89, %v2637
    %2672 = vst.msk [vmem:[%s2 + $0x10] sm:$0xff] %vm89, %v2642
    %2673 = vst.msk [vmem:[%s2 + $0x18] sm:$0xff] %vm89, %v2647
    %s2674 = scalar_lea.vmem %s2, 32
    %2675 = vst.msk [vmem:[%s2674] sm:$0xff] %vm89, %v2652
    %2676 = vst.msk [vmem:[%s2674 + $0x8] sm:$0xff] %vm89, %v2657
    %2677 = vst.msk [vmem:[%s2674 + $0x10] sm:$0xff] %vm89, %v2662
    %2678 = vst.msk [vmem:[%s2674 + $0x18] sm:$0xff] %vm89, %v2667
    // Predicated region
    $region10: #{tpu_custom_call.1} parent=1 // pred_check
      _
    $region11: #{tpu_custom_call.1} parent=1 // pred_check_branch
      %2680 = sbr.rel (0) target = $region13
    $region12: #{tpu_custom_call.1} parent=1 // pred_region
      _
    $region13: #{tpu_custom_call.1} parent=1 // pred_fallthru
      _
    // Predicated region
    $region14: #{tpu_custom_call.1} parent=1 // pred_check
      _
    $region15: #{tpu_custom_call.1} parent=1 // pred_check_branch
      %2682 = sbr.rel (0) target = $region17
    $region16: #{tpu_custom_call.1} parent=1 // pred_region
      %s2684 = ssub.s32 32, 32
      %2685 = vsyncadd [#allocation4], %s2684
      %s2687 = sshll.u32 [#allocation3], 4
      %s2688 = int_to_ptr.vmem [resolvable:$true] %s2687
      %2690 = dma.vmem_to_hbm [thread:$0]  %s2688, 32, %s3, [#allocation4]
    $region17: #{tpu_custom_call.1} parent=1 // pred_fallthru
      _
    // Predicated region
    $region18: #{tpu_custom_call.1} parent=1 // pred_check
      _
    $region19: #{tpu_custom_call.1} parent=1 // pred_check_branch
      %2692 = sbr.rel (0) target = $region21
    $region20: #{tpu_custom_call.1} parent=1 // pred_region
      _
    $region21: #{tpu_custom_call.1} parent=1 // pred_fallthru
      _
    // Predicated region
    $region22: #{tpu_custom_call.1} parent=1 // pred_check
      _
    $region23: #{tpu_custom_call.1} parent=1 // pred_check_branch
      %2694 = sbr.rel (0) target = $region25
    $region24: #{tpu_custom_call.1} parent=1 // pred_region
      %2695 = dma.done [#allocation4], 32
    $region25: #{tpu_custom_call.1} parent=1 // pred_fallthru
      _
    %2696 = vsyncpa [#allocation4], 1

</llo_original>
